<compile_context>
chip_gen: v6e
topology: v6e:2x2x1
jax: 0.10.0
libtpu: 0.0.40
codegen_flags: <defaults>
</compile_context>

<pallas_src>
import functools

import jax
import jax.numpy as jnp
from jax.experimental import pallas as pl
from jax.experimental.pallas import tpu as pltpu


LANE = 128
NUM_CLASSES = 2
_PW_CHANNELS = [(32, 64), (64, 128), (128, 128), (128, 256),
                (256, 256), (256, 512), (512, 512)]


# ---------------------------------------------------------------------------
# Fused Pallas kernel: all conv layers + pool + FC for one image per grid step
# ---------------------------------------------------------------------------

def _fused_net_kernel(cols_ref, *refs, n_layers, hw):
    w_refs = refs[:n_layers]
    b_refs = refs[n_layers:2 * n_layers]
    o_ref = refs[2 * n_layers]

    # (hw, Kpad) bf16 im2col rows of this image.
    x = cols_ref[...]

    # Stem conv + 7 pointwise conv blocks, each: matmul (bf16 in, f32 acc) + bias + ReLU.
    for i in range(n_layers - 1):
        acc = jnp.dot(x, w_refs[i][...], preferred_element_type=jnp.float32)
        x = jnp.maximum(acc + b_refs[i][...], 0.0).astype(jnp.bfloat16)

    # Global average pool over this image's hw spatial rows (f32), then FC.
    pooled = jnp.sum(x.astype(jnp.float32), axis=0, keepdims=True) * (1.0 / hw)  # (1, C)
    pooled8 = jnp.broadcast_to(pooled, (8, pooled.shape[1]))                      # full 8 sublanes
    logits = jnp.dot(pooled8.astype(jnp.bfloat16), w_refs[-1][...],
                     preferred_element_type=jnp.float32) + b_refs[-1][...]        # (8, Cout_pad)
    o_ref[0] = logits                                                             # full-tile store


def fused_forward(cols, ws, bs, *, n, hw):
    """cols: (n*hw, Kpad) bf16 batch-major im2col rows; ws/bs: padded folded weights."""
    n_layers = len(ws)
    k_pad = cols.shape[1]
    c_out = ws[-1].shape[1]

    in_specs = [pl.BlockSpec((hw, k_pad), lambda b: (b, 0))]          # per-image M tile
    in_specs += [pl.BlockSpec(w.shape, lambda b: (0, 0)) for w in ws]  # weights stay resident
    in_specs += [pl.BlockSpec(v.shape, lambda b: (0, 0)) for v in bs]

    return pl.pallas_call(
        functools.partial(_fused_net_kernel, n_layers=n_layers, hw=hw),
        out_shape=jax.ShapeDtypeStruct((n, 8, c_out), jnp.float32),
        grid=(n,),
        in_specs=in_specs,
        out_specs=pl.BlockSpec((1, 8, c_out), lambda b: (b, 0, 0)),
        compiler_params=pltpu.CompilerParams(
            dimension_semantics=("parallel",),
            vmem_limit_bytes=32 * 1024 * 1024,   # total footprint is only a few MiB; safe on v5e/v6e/v7x
        ),
    )(cols, *ws, *bs)


# ---------------------------------------------------------------------------
# Glue: im2col for the 3x3/stride-2/pad-1 stem conv, BN folding, padding
# ---------------------------------------------------------------------------

def im2col_3x3_s2_p1(x_nhwc):
    n, h, w, c = x_nhwc.shape
    ho = (h + 2 - 3) // 2 + 1
    wo = (w + 2 - 3) // 2 + 1
    xp = jnp.pad(x_nhwc, ((0, 0), (1, 1), (1, 1), (0, 0)))
    cols = []
    for kh in range(3):
        for kw in range(3):
            cols.append(xp[:, kh:kh + 2 * ho:2, kw:kw + 2 * wo:2, :])   # (n,ho,wo,c)
    patches = jnp.stack(cols, axis=3)                                   # (n,ho,wo,9,c)
    return patches.reshape(n * ho * wo, 9 * c), (n, ho, wo)


def fold_bn(w2d, gamma, beta, mean, var, eps=1e-5):
    """Fold inference-mode BatchNorm into a (K, Cout) matmul weight + bias."""
    scale = gamma / jnp.sqrt(var + eps)
    return w2d * scale[None, :], beta - mean * scale


def _round_up(v, m):
    return ((v + m - 1) // m) * m


def _pad_mat(w, rows, cols):
    return jnp.pad(w, ((0, rows - w.shape[0]), (0, cols - w.shape[1])))


def _pad_vec(v, n):
    return jnp.pad(v, (0, n - v.shape[0]))


def prepare_weights(params):
    """Fold BN, zero-pad channels to lane-dense (multiple-of-128) widths, cast to bf16.

    Run ONCE outside the jitted forward; returns (weights, biases) lists.
    """
    ws, bs = [], []

    # Stem 3x3 conv as im2col matmul: K = 9*Cin = 27 -> 32 (sublane), Cout 32 -> 128.
    wf, bf = fold_bn(params["conv1_w"], *params["conv1_bn"])
    k_pad = _round_up(wf.shape[0], 8)
    c_pad = _round_up(wf.shape[1], LANE)
    ws.append(_pad_mat(wf, k_pad, c_pad).astype(jnp.bfloat16))
    bs.append(_pad_vec(bf, c_pad).reshape(1, c_pad).astype(jnp.float32))
    prev = c_pad

    # Seven 1x1 conv blocks (zero-padded input channels contribute exactly zero).
    for w_pw, bn in zip(params["pw_w"], params["pw_bn"]):
        wf, bf = fold_bn(w_pw, *bn)
        c_pad = _round_up(wf.shape[1], LANE)
        ws.append(_pad_mat(wf, prev, c_pad).astype(jnp.bfloat16))
        bs.append(_pad_vec(bf, c_pad).reshape(1, c_pad).astype(jnp.float32))
        prev = c_pad

    # Final FC: 512 -> num_classes, classes padded to 128 lanes (sliced off outside).
    c_pad = _round_up(params["fc_w"].shape[1], LANE)
    ws.append(_pad_mat(params["fc_w"], prev, c_pad).astype(jnp.bfloat16))
    bs.append(_pad_vec(params["fc_b"], c_pad).reshape(1, c_pad).astype(jnp.float32))
    return ws, bs


# ---------------------------------------------------------------------------
# Parameter init matching the PyTorch module's init scheme
# ---------------------------------------------------------------------------

def init_params(key, num_classes=NUM_CLASSES):
    n_layers = 1 + len(_PW_CHANNELS) + 1
    keys = jax.random.split(key, n_layers)
    params = {}

    # Stem conv: torch (32, 3, 3, 3); init normal(0, sqrt(2/(3*3*32))).
    std = (2.0 / (3 * 3 * 32)) ** 0.5
    w1 = jax.random.normal(keys[0], (3, 3, 3, 32), jnp.float32) * std   # (Kh,Kw,Cin,Cout)
    params["conv1_w"] = w1.reshape(9 * 3, 32)
    params["conv1_bn"] = (jnp.ones(32), jnp.zeros(32), jnp.zeros(32), jnp.ones(32))

    params["pw_w"] = []
    params["pw_bn"] = []
    for i, (cin, cout) in enumerate(_PW_CHANNELS):
        std = (2.0 / (1 * 1 * cout)) ** 0.5
        w = jax.random.normal(keys[1 + i], (cin, cout), jnp.float32) * std
        params["pw_w"].append(w)
        params["pw_bn"].append((jnp.ones(cout), jnp.zeros(cout),
                                jnp.zeros(cout), jnp.ones(cout)))

    params["fc_w"] = jax.random.normal(keys[-1], (512, num_classes),
                                       jnp.float32) * (1.0 / 512.0) ** 0.5
    params["fc_b"] = jnp.zeros((num_classes,), jnp.float32)
    return params


# ---------------------------------------------------------------------------
# Forward pass
# ---------------------------------------------------------------------------

@jax.jit
def _forward_padded(x_nchw, ws, bs):
    x = jnp.transpose(x_nchw, (0, 2, 3, 1)).astype(jnp.float32)      # NCHW -> NHWC
    cols, (n, ho, wo) = im2col_3x3_s2_p1(x)
    k_pad = ws[0].shape[0]
    cols = jnp.pad(cols, ((0, 0), (0, k_pad - cols.shape[1]))).astype(jnp.bfloat16)
    out = fused_forward(cols, ws, bs, n=n, hw=ho * wo)               # (n, 8, Cout_pad)
    return out[:, 0, :]                                              # (n, Cout_pad)


def mobilenet_v1_forward(x_nchw, ws, bs, num_classes=NUM_CLASSES):
    return _forward_padded(x_nchw, list(ws), list(bs))[:, :num_classes]


# ---------------------------------------------------------------------------
# Plain-JAX f32 reference (same math path, no padding / bf16) for self-check
# ---------------------------------------------------------------------------

def _reference_forward(x_nchw, params):
    x = jnp.transpose(x_nchw, (0, 2, 3, 1)).astype(jnp.float32)
    cols, (n, ho, wo) = im2col_3x3_s2_p1(x)
    wf, bf = fold_bn(params["conv1_w"], *params["conv1_bn"])
    y = jnp.maximum(cols @ wf + bf, 0.0)
    for w_pw, bn in zip(params["pw_w"], params["pw_bn"]):
        wf, bf = fold_bn(w_pw, *bn)
        y = jnp.maximum(y @ wf + bf, 0.0)
    pooled = y.reshape(n, ho * wo, -1).mean(axis=1)
    return pooled @ params["fc_w"] + params["fc_b"]


if __name__ == "__main__":
    key = jax.random.PRNGKey(0)
    pkey, xkey = jax.random.split(key)

    params = init_params(pkey, num_classes=NUM_CLASSES)
    ws, bs = prepare_weights(params)                      # fold/pad/cast once, outside jit

    # Small input consistent with the module: batch=2, RGB (3 channels), 16x16 spatial.
    x = jax.random.normal(xkey, (2, 3, 16, 16), jnp.float32)

    out = mobilenet_v1_forward(x, ws, bs, num_classes=NUM_CLASSES)
    out = jax.block_until_ready(out)
    assert out.shape == (2, NUM_CLASSES), out.shape
    assert bool(jnp.all(jnp.isfinite(out)))

    # Loose tolerance: bf16 operands (f32 accumulation) vs f32 reference.
    ref = jax.block_until_ready(_reference_forward(x, params))
    assert bool(jnp.allclose(out, ref, rtol=2e-1, atol=2e-1)), (out, ref)

    print("KERNEL_OK")
</pallas_src>

<mosaic_0001>
module attributes {stable_mosaic.version = 11 : i64} {
  func.func @_fused_net_kernel(%arg0: i32, %arg1: memref<64x32xbf16, #tpu.memory_space<vmem>>, %arg2: memref<32x128xbf16, #tpu.memory_space<vmem>>, %arg3: memref<128x128xbf16, #tpu.memory_space<vmem>>, %arg4: memref<128x128xbf16, #tpu.memory_space<vmem>>, %arg5: memref<128x128xbf16, #tpu.memory_space<vmem>>, %arg6: memref<128x256xbf16, #tpu.memory_space<vmem>>, %arg7: memref<256x256xbf16, #tpu.memory_space<vmem>>, %arg8: memref<256x512xbf16, #tpu.memory_space<vmem>>, %arg9: memref<512x512xbf16, #tpu.memory_space<vmem>>, %arg10: memref<512x128xbf16, #tpu.memory_space<vmem>>, %arg11: memref<1x128xf32, #tpu.memory_space<vmem>>, %arg12: memref<1x128xf32, #tpu.memory_space<vmem>>, %arg13: memref<1x128xf32, #tpu.memory_space<vmem>>, %arg14: memref<1x128xf32, #tpu.memory_space<vmem>>, %arg15: memref<1x256xf32, #tpu.memory_space<vmem>>, %arg16: memref<1x256xf32, #tpu.memory_space<vmem>>, %arg17: memref<1x512xf32, #tpu.memory_space<vmem>>, %arg18: memref<1x512xf32, #tpu.memory_space<vmem>>, %arg19: memref<1x128xf32, #tpu.memory_space<vmem>>, %arg20: memref<1x8x128xf32, #tpu.memory_space<vmem>>) attributes {dimension_semantics = [#tpu.dimension_semantics<parallel>], iteration_bounds = array<i64: 2>, scalar_prefetch = 0 : i64, scratch_operands = 0 : i64, tpu.core_type = #tpu.core_type<tc>, window_params = [{transform_indices = @transform_0, window_bounds = array<i64: 64, 32>}, {pipeline_mode = #tpu.pipeline_mode<synchronous>, transform_indices = @transform_1, window_bounds = array<i64: 32, 128>}, {pipeline_mode = #tpu.pipeline_mode<synchronous>, transform_indices = @transform_2, window_bounds = array<i64: 128, 128>}, {pipeline_mode = #tpu.pipeline_mode<synchronous>, transform_indices = @transform_3, window_bounds = array<i64: 128, 128>}, {pipeline_mode = #tpu.pipeline_mode<synchronous>, transform_indices = @transform_4, window_bounds = array<i64: 128, 128>}, {pipeline_mode = #tpu.pipeline_mode<synchronous>, transform_indices = @transform_5, window_bounds = array<i64: 128, 256>}, {pipeline_mode = #tpu.pipeline_mode<synchronous>, transform_indices = @transform_6, window_bounds = array<i64: 256, 256>}, {pipeline_mode = #tpu.pipeline_mode<synchronous>, transform_indices = @transform_7, window_bounds = array<i64: 256, 512>}, {pipeline_mode = #tpu.pipeline_mode<synchronous>, transform_indices = @transform_8, window_bounds = array<i64: 512, 512>}, {pipeline_mode = #tpu.pipeline_mode<synchronous>, transform_indices = @transform_9, window_bounds = array<i64: 512, 128>}, {pipeline_mode = #tpu.pipeline_mode<synchronous>, transform_indices = @transform_10, window_bounds = array<i64: 1, 128>}, {pipeline_mode = #tpu.pipeline_mode<synchronous>, transform_indices = @transform_11, window_bounds = array<i64: 1, 128>}, {pipeline_mode = #tpu.pipeline_mode<synchronous>, transform_indices = @transform_12, window_bounds = array<i64: 1, 128>}, {pipeline_mode = #tpu.pipeline_mode<synchronous>, transform_indices = @transform_13, window_bounds = array<i64: 1, 128>}, {pipeline_mode = #tpu.pipeline_mode<synchronous>, transform_indices = @transform_14, window_bounds = array<i64: 1, 256>}, {pipeline_mode = #tpu.pipeline_mode<synchronous>, transform_indices = @transform_15, window_bounds = array<i64: 1, 256>}, {pipeline_mode = #tpu.pipeline_mode<synchronous>, transform_indices = @transform_16, window_bounds = array<i64: 1, 512>}, {pipeline_mode = #tpu.pipeline_mode<synchronous>, transform_indices = @transform_17, window_bounds = array<i64: 1, 512>}, {pipeline_mode = #tpu.pipeline_mode<synchronous>, transform_indices = @transform_18, window_bounds = array<i64: 1, 128>}, {transform_indices = @transform_19, window_bounds = array<i64: 1, 8, 128>}]} {
    %c0 = arith.constant 0 : index
    %c0_0 = arith.constant 0 : index
    %0 = vector.load %arg1[%c0, %c0_0] : memref<64x32xbf16, #tpu.memory_space<vmem>>, vector<64x32xbf16>
    %c0_1 = arith.constant 0 : index
    %c0_2 = arith.constant 0 : index
    %1 = vector.load %arg2[%c0_1, %c0_2] : memref<32x128xbf16, #tpu.memory_space<vmem>>, vector<32x128xbf16>
    %cst = arith.constant dense<0.000000e+00> : vector<64x128xf32>
    %2 = tpu.matmul %0, %1, %cst {dimension_numbers = #tpu.dot_dimension_numbers<[1], [0], [0], [1], [0, 0, 1, 1], [], []>} : vector<64x32xbf16>, vector<32x128xbf16>, vector<64x128xf32> -> vector<64x128xf32>
    %c0_3 = arith.constant 0 : index
    %c0_4 = arith.constant 0 : index
    %3 = vector.load %arg11[%c0_3, %c0_4] : memref<1x128xf32, #tpu.memory_space<vmem>>, vector<1x128xf32>
    %4 = vector.broadcast %3 : vector<1x128xf32> to vector<64x128xf32>
    %5 = arith.addf %2, %4 : vector<64x128xf32>
    %cst_5 = arith.constant 0.000000e+00 : f32
    %6 = vector.broadcast %cst_5 : f32 to vector<64x128xf32>
    %7 = arith.maximumf %5, %6 : vector<64x128xf32>
    %8 = arith.truncf %7 : vector<64x128xf32> to vector<64x128xbf16>
    %c0_6 = arith.constant 0 : index
    %c0_7 = arith.constant 0 : index
    %9 = vector.load %arg3[%c0_6, %c0_7] : memref<128x128xbf16, #tpu.memory_space<vmem>>, vector<128x128xbf16>
    %cst_8 = arith.constant dense<0.000000e+00> : vector<64x128xf32>
    %10 = tpu.matmul %8, %9, %cst_8 {dimension_numbers = #tpu.dot_dimension_numbers<[1], [0], [0], [1], [0, 0, 1, 1], [], []>} : vector<64x128xbf16>, vector<128x128xbf16>, vector<64x128xf32> -> vector<64x128xf32>
    %c0_9 = arith.constant 0 : index
    %c0_10 = arith.constant 0 : index
    %11 = vector.load %arg12[%c0_9, %c0_10] : memref<1x128xf32, #tpu.memory_space<vmem>>, vector<1x128xf32>
    %12 = vector.broadcast %11 : vector<1x128xf32> to vector<64x128xf32>
    %13 = arith.addf %10, %12 : vector<64x128xf32>
    %cst_11 = arith.constant 0.000000e+00 : f32
    %14 = vector.broadcast %cst_11 : f32 to vector<64x128xf32>
    %15 = arith.maximumf %13, %14 : vector<64x128xf32>
    %16 = arith.truncf %15 : vector<64x128xf32> to vector<64x128xbf16>
    %c0_12 = arith.constant 0 : index
    %c0_13 = arith.constant 0 : index
    %17 = vector.load %arg4[%c0_12, %c0_13] : memref<128x128xbf16, #tpu.memory_space<vmem>>, vector<128x128xbf16>
    %cst_14 = arith.constant dense<0.000000e+00> : vector<64x128xf32>
    %18 = tpu.matmul %16, %17, %cst_14 {dimension_numbers = #tpu.dot_dimension_numbers<[1], [0], [0], [1], [0, 0, 1, 1], [], []>} : vector<64x128xbf16>, vector<128x128xbf16>, vector<64x128xf32> -> vector<64x128xf32>
    %c0_15 = arith.constant 0 : index
    %c0_16 = arith.constant 0 : index
    %19 = vector.load %arg13[%c0_15, %c0_16] : memref<1x128xf32, #tpu.memory_space<vmem>>, vector<1x128xf32>
    %20 = vector.broadcast %19 : vector<1x128xf32> to vector<64x128xf32>
    %21 = arith.addf %18, %20 : vector<64x128xf32>
    %cst_17 = arith.constant 0.000000e+00 : f32
    %22 = vector.broadcast %cst_17 : f32 to vector<64x128xf32>
    %23 = arith.maximumf %21, %22 : vector<64x128xf32>
    %24 = arith.truncf %23 : vector<64x128xf32> to vector<64x128xbf16>
    %c0_18 = arith.constant 0 : index
    %c0_19 = arith.constant 0 : index
    %25 = vector.load %arg5[%c0_18, %c0_19] : memref<128x128xbf16, #tpu.memory_space<vmem>>, vector<128x128xbf16>
    %cst_20 = arith.constant dense<0.000000e+00> : vector<64x128xf32>
    %26 = tpu.matmul %24, %25, %cst_20 {dimension_numbers = #tpu.dot_dimension_numbers<[1], [0], [0], [1], [0, 0, 1, 1], [], []>} : vector<64x128xbf16>, vector<128x128xbf16>, vector<64x128xf32> -> vector<64x128xf32>
    %c0_21 = arith.constant 0 : index
    %c0_22 = arith.constant 0 : index
    %27 = vector.load %arg14[%c0_21, %c0_22] : memref<1x128xf32, #tpu.memory_space<vmem>>, vector<1x128xf32>
    %28 = vector.broadcast %27 : vector<1x128xf32> to vector<64x128xf32>
    %29 = arith.addf %26, %28 : vector<64x128xf32>
    %cst_23 = arith.constant 0.000000e+00 : f32
    %30 = vector.broadcast %cst_23 : f32 to vector<64x128xf32>
    %31 = arith.maximumf %29, %30 : vector<64x128xf32>
    %32 = arith.truncf %31 : vector<64x128xf32> to vector<64x128xbf16>
    %c0_24 = arith.constant 0 : index
    %c0_25 = arith.constant 0 : index
    %33 = vector.load %arg6[%c0_24, %c0_25] : memref<128x256xbf16, #tpu.memory_space<vmem>>, vector<128x256xbf16>
    %cst_26 = arith.constant dense<0.000000e+00> : vector<64x256xf32>
    %34 = tpu.matmul %32, %33, %cst_26 {dimension_numbers = #tpu.dot_dimension_numbers<[1], [0], [0], [1], [0, 0, 1, 1], [], []>} : vector<64x128xbf16>, vector<128x256xbf16>, vector<64x256xf32> -> vector<64x256xf32>
    %c0_27 = arith.constant 0 : index
    %c0_28 = arith.constant 0 : index
    %35 = vector.load %arg15[%c0_27, %c0_28] : memref<1x256xf32, #tpu.memory_space<vmem>>, vector<1x256xf32>
    %36 = vector.broadcast %35 : vector<1x256xf32> to vector<64x256xf32>
    %37 = arith.addf %34, %36 : vector<64x256xf32>
    %cst_29 = arith.constant 0.000000e+00 : f32
    %38 = vector.broadcast %cst_29 : f32 to vector<64x256xf32>
    %39 = arith.maximumf %37, %38 : vector<64x256xf32>
    %40 = arith.truncf %39 : vector<64x256xf32> to vector<64x256xbf16>
    %c0_30 = arith.constant 0 : index
    %c0_31 = arith.constant 0 : index
    %41 = vector.load %arg7[%c0_30, %c0_31] : memref<256x256xbf16, #tpu.memory_space<vmem>>, vector<256x256xbf16>
    %cst_32 = arith.constant dense<0.000000e+00> : vector<64x256xf32>
    %42 = tpu.matmul %40, %41, %cst_32 {dimension_numbers = #tpu.dot_dimension_numbers<[1], [0], [0], [1], [0, 0, 1, 1], [], []>} : vector<64x256xbf16>, vector<256x256xbf16>, vector<64x256xf32> -> vector<64x256xf32>
    %c0_33 = arith.constant 0 : index
    %c0_34 = arith.constant 0 : index
    %43 = vector.load %arg16[%c0_33, %c0_34] : memref<1x256xf32, #tpu.memory_space<vmem>>, vector<1x256xf32>
    %44 = vector.broadcast %43 : vector<1x256xf32> to vector<64x256xf32>
    %45 = arith.addf %42, %44 : vector<64x256xf32>
    %cst_35 = arith.constant 0.000000e+00 : f32
    %46 = vector.broadcast %cst_35 : f32 to vector<64x256xf32>
    %47 = arith.maximumf %45, %46 : vector<64x256xf32>
    %48 = arith.truncf %47 : vector<64x256xf32> to vector<64x256xbf16>
    %c0_36 = arith.constant 0 : index
    %c0_37 = arith.constant 0 : index
    %49 = vector.load %arg8[%c0_36, %c0_37] : memref<256x512xbf16, #tpu.memory_space<vmem>>, vector<256x512xbf16>
    %cst_38 = arith.constant dense<0.000000e+00> : vector<64x512xf32>
    %50 = tpu.matmul %48, %49, %cst_38 {dimension_numbers = #tpu.dot_dimension_numbers<[1], [0], [0], [1], [0, 0, 1, 1], [], []>} : vector<64x256xbf16>, vector<256x512xbf16>, vector<64x512xf32> -> vector<64x512xf32>
    %c0_39 = arith.constant 0 : index
    %c0_40 = arith.constant 0 : index
    %51 = vector.load %arg17[%c0_39, %c0_40] : memref<1x512xf32, #tpu.memory_space<vmem>>, vector<1x512xf32>
    %52 = vector.broadcast %51 : vector<1x512xf32> to vector<64x512xf32>
    %53 = arith.addf %50, %52 : vector<64x512xf32>
    %cst_41 = arith.constant 0.000000e+00 : f32
    %54 = vector.broadcast %cst_41 : f32 to vector<64x512xf32>
    %55 = arith.maximumf %53, %54 : vector<64x512xf32>
    %56 = arith.truncf %55 : vector<64x512xf32> to vector<64x512xbf16>
    %c0_42 = arith.constant 0 : index
    %c0_43 = arith.constant 0 : index
    %57 = vector.load %arg9[%c0_42, %c0_43] : memref<512x512xbf16, #tpu.memory_space<vmem>>, vector<512x512xbf16>
    %cst_44 = arith.constant dense<0.000000e+00> : vector<64x512xf32>
    %58 = tpu.matmul %56, %57, %cst_44 {dimension_numbers = #tpu.dot_dimension_numbers<[1], [0], [0], [1], [0, 0, 1, 1], [], []>} : vector<64x512xbf16>, vector<512x512xbf16>, vector<64x512xf32> -> vector<64x512xf32>
    %c0_45 = arith.constant 0 : index
    %c0_46 = arith.constant 0 : index
    %59 = vector.load %arg18[%c0_45, %c0_46] : memref<1x512xf32, #tpu.memory_space<vmem>>, vector<1x512xf32>
    %60 = vector.broadcast %59 : vector<1x512xf32> to vector<64x512xf32>
    %61 = arith.addf %58, %60 : vector<64x512xf32>
    %cst_47 = arith.constant 0.000000e+00 : f32
    %62 = vector.broadcast %cst_47 : f32 to vector<64x512xf32>
    %63 = arith.maximumf %61, %62 : vector<64x512xf32>
    %64 = arith.truncf %63 : vector<64x512xf32> to vector<64x512xbf16>
    %65 = arith.extf %64 : vector<64x512xbf16> to vector<64x512xf32>
    %cst_48 = arith.constant dense<0.000000e+00> : vector<512xf32>
    %66 = vector.multi_reduction <add>, %65, %cst_48 [0] : vector<64x512xf32> to vector<512xf32>
    %67 = vector.shape_cast %66 : vector<512xf32> to vector<1x512xf32>
    %cst_49 = arith.constant 1.562500e-02 : f32
    %68 = vector.broadcast %cst_49 : f32 to vector<1x512xf32>
    %69 = arith.mulf %67, %68 : vector<1x512xf32>
    %70 = vector.shape_cast %69 : vector<1x512xf32> to vector<1x512xf32>
    %71 = vector.broadcast %70 : vector<1x512xf32> to vector<8x512xf32>
    %72 = arith.truncf %71 : vector<8x512xf32> to vector<8x512xbf16>
    %c0_50 = arith.constant 0 : index
    %c0_51 = arith.constant 0 : index
    %73 = vector.load %arg10[%c0_50, %c0_51] : memref<512x128xbf16, #tpu.memory_space<vmem>>, vector<512x128xbf16>
    %cst_52 = arith.constant dense<0.000000e+00> : vector<8x128xf32>
    %74 = tpu.matmul %72, %73, %cst_52 {dimension_numbers = #tpu.dot_dimension_numbers<[1], [0], [0], [1], [0, 0, 1, 1], [], []>} : vector<8x512xbf16>, vector<512x128xbf16>, vector<8x128xf32> -> vector<8x128xf32>
    %c0_53 = arith.constant 0 : index
    %c0_54 = arith.constant 0 : index
    %75 = vector.load %arg19[%c0_53, %c0_54] : memref<1x128xf32, #tpu.memory_space<vmem>>, vector<1x128xf32>
    %76 = vector.broadcast %75 : vector<1x128xf32> to vector<8x128xf32>
    %77 = arith.addf %74, %76 : vector<8x128xf32>
    %c0_55 = arith.constant 0 : index
    %c0_56 = arith.constant 0 : index
    %c0_57 = arith.constant 0 : index
    %78 = vector.load %arg20[%c0_55, %c0_56, %c0_57] : memref<1x8x128xf32, #tpu.memory_space<vmem>>, vector<1x8x128xf32>
    %79 = vector.shape_cast %78 : vector<1x8x128xf32> to vector<8x128xf32>
    %80 = vector.shape_cast %77 : vector<8x128xf32> to vector<1x8x128xf32>
    tpu.vector_store %arg20[%c0_55, %c0_56, %c0_57], %80 {strides = array<i32>} : memref<1x8x128xf32, #tpu.memory_space<vmem>>, vector<1x8x128xf32>,
    return
  }
  func.func @transform_0(%arg0: i32) -> (i32, i32) {
    %c0_i32 = arith.constant 0 : i32
    %c0_i32_0 = arith.constant 0 : i32
    return %arg0, %c0_i32 : i32, i32
  }
  func.func @transform_1(%arg0: i32) -> (i32, i32) {
    %c0_i32 = arith.constant 0 : i32
    %c0_i32_0 = arith.constant 0 : i32
    %c0_i32_1 = arith.constant 0 : i32
    return %c0_i32, %c0_i32_0 : i32, i32
  }
  func.func @transform_2(%arg0: i32) -> (i32, i32) {
    %c0_i32 = arith.constant 0 : i32
    %c0_i32_0 = arith.constant 0 : i32
    %c0_i32_1 = arith.constant 0 : i32
    return %c0_i32, %c0_i32_0 : i32, i32
  }
  func.func @transform_3(%arg0: i32) -> (i32, i32) {
    %c0_i32 = arith.constant 0 : i32
    %c0_i32_0 = arith.constant 0 : i32
    %c0_i32_1 = arith.constant 0 : i32
    return %c0_i32, %c0_i32_0 : i32, i32
  }
  func.func @transform_4(%arg0: i32) -> (i32, i32) {
    %c0_i32 = arith.constant 0 : i32
    %c0_i32_0 = arith.constant 0 : i32
    %c0_i32_1 = arith.constant 0 : i32
    return %c0_i32, %c0_i32_0 : i32, i32
  }
  func.func @transform_5(%arg0: i32) -> (i32, i32) {
    %c0_i32 = arith.constant 0 : i32
    %c0_i32_0 = arith.constant 0 : i32
    %c0_i32_1 = arith.constant 0 : i32
    return %c0_i32, %c0_i32_0 : i32, i32
  }
  func.func @transform_6(%arg0: i32) -> (i32, i32) {
    %c0_i32 = arith.constant 0 : i32
    %c0_i32_0 = arith.constant 0 : i32
    %c0_i32_1 = arith.constant 0 : i32
    return %c0_i32, %c0_i32_0 : i32, i32
  }
  func.func @transform_7(%arg0: i32) -> (i32, i32) {
    %c0_i32 = arith.constant 0 : i32
    %c0_i32_0 = arith.constant 0 : i32
    %c0_i32_1 = arith.constant 0 : i32
    return %c0_i32, %c0_i32_0 : i32, i32
  }
  func.func @transform_8(%arg0: i32) -> (i32, i32) {
    %c0_i32 = arith.constant 0 : i32
    %c0_i32_0 = arith.constant 0 : i32
    %c0_i32_1 = arith.constant 0 : i32
    return %c0_i32, %c0_i32_0 : i32, i32
  }
  func.func @transform_9(%arg0: i32) -> (i32, i32) {
    %c0_i32 = arith.constant 0 : i32
    %c0_i32_0 = arith.constant 0 : i32
    %c0_i32_1 = arith.constant 0 : i32
    return %c0_i32, %c0_i32_0 : i32, i32
  }
  func.func @transform_10(%arg0: i32) -> (i32, i32) {
    %c0_i32 = arith.constant 0 : i32
    %c0_i32_0 = arith.constant 0 : i32
    %c0_i32_1 = arith.constant 0 : i32
    return %c0_i32, %c0_i32_0 : i32, i32
  }
  func.func @transform_11(%arg0: i32) -> (i32, i32) {
    %c0_i32 = arith.constant 0 : i32
    %c0_i32_0 = arith.constant 0 : i32
    %c0_i32_1 = arith.constant 0 : i32
    return %c0_i32, %c0_i32_0 : i32, i32
  }
  func.func @transform_12(%arg0: i32) -> (i32, i32) {
    %c0_i32 = arith.constant 0 : i32
    %c0_i32_0 = arith.constant 0 : i32
    %c0_i32_1 = arith.constant 0 : i32
    return %c0_i32, %c0_i32_0 : i32, i32
  }
  func.func @transform_13(%arg0: i32) -> (i32, i32) {
    %c0_i32 = arith.constant 0 : i32
    %c0_i32_0 = arith.constant 0 : i32
    %c0_i32_1 = arith.constant 0 : i32
    return %c0_i32, %c0_i32_0 : i32, i32
  }
  func.func @transform_14(%arg0: i32) -> (i32, i32) {
    %c0_i32 = arith.constant 0 : i32
    %c0_i32_0 = arith.constant 0 : i32
    %c0_i32_1 = arith.constant 0 : i32
    return %c0_i32, %c0_i32_0 : i32, i32
  }
  func.func @transform_15(%arg0: i32) -> (i32, i32) {
    %c0_i32 = arith.constant 0 : i32
    %c0_i32_0 = arith.constant 0 : i32
    %c0_i32_1 = arith.constant 0 : i32
    return %c0_i32, %c0_i32_0 : i32, i32
  }
  func.func @transform_16(%arg0: i32) -> (i32, i32) {
    %c0_i32 = arith.constant 0 : i32
    %c0_i32_0 = arith.constant 0 : i32
    %c0_i32_1 = arith.constant 0 : i32
    return %c0_i32, %c0_i32_0 : i32, i32
  }
  func.func @transform_17(%arg0: i32) -> (i32, i32) {
    %c0_i32 = arith.constant 0 : i32
    %c0_i32_0 = arith.constant 0 : i32
    %c0_i32_1 = arith.constant 0 : i32
    return %c0_i32, %c0_i32_0 : i32, i32
  }
  func.func @transform_18(%arg0: i32) -> (i32, i32) {
    %c0_i32 = arith.constant 0 : i32
    %c0_i32_0 = arith.constant 0 : i32
    %c0_i32_1 = arith.constant 0 : i32
    return %c0_i32, %c0_i32_0 : i32, i32
  }
  func.func @transform_19(%arg0: i32) -> (i32, i32, i32) {
    %c0_i32 = arith.constant 0 : i32
    %c0_i32_0 = arith.constant 0 : i32
    %c0_i32_1 = arith.constant 0 : i32
    return %arg0, %c0_i32, %c0_i32_0 : i32, i32, i32
  }
}

</mosaic_0001>

<llo_original>
// kernel: _forward_padded.1
$region0: #{_forward_padded.1}
  #allocation0 [shape = 'u32[]', space=smem, size = 0x4, offset = 0x4, fixed_abs, tag = 'smem constant byte address 0x4 - core index']
  #allocation1 [shape = 'u32[144,128]{1,0:T(1,128)}', space=vmem, size = 0x12000, scoped, tag = 'internal scratch']
  %s0 = inlined_call_operand.vmem [shape: bf16[128,32], index: 0, kind: input, shape index: {}]
  %s1 = inlined_call_operand.vmem [shape: bf16[32,128], index: 1, kind: input, shape index: {}]
  %s2 = inlined_call_operand.vmem [shape: bf16[128,128], index: 2, kind: input, shape index: {}]
  %s3 = inlined_call_operand.hbm [shape: bf16[128,128], index: 3, kind: input, shape index: {}]
  %s4 = inlined_call_operand.hbm [shape: bf16[128,128], index: 4, kind: input, shape index: {}]
  %s5 = inlined_call_operand.hbm [shape: bf16[128,256], index: 5, kind: input, shape index: {}]
  %s6 = inlined_call_operand.vmem [shape: bf16[256,256], index: 6, kind: input, shape index: {}]
  %s7 = inlined_call_operand.vmem [shape: bf16[256,512], index: 7, kind: input, shape index: {}]
  %s8 = inlined_call_operand.vmem [shape: bf16[512,512], index: 8, kind: input, shape index: {}]
  %s9 = inlined_call_operand.hbm [shape: bf16[512,128], index: 9, kind: input, shape index: {}]
  %s10 = inlined_call_operand.vmem [shape: f32[1,128], index: 10, kind: input, shape index: {}]
  %s11 = inlined_call_operand.vmem [shape: f32[1,128], index: 11, kind: input, shape index: {}]
  %s12 = inlined_call_operand.vmem [shape: f32[1,128], index: 12, kind: input, shape index: {}]
  %s13 = inlined_call_operand.vmem [shape: f32[1,128], index: 13, kind: input, shape index: {}]
  %s14 = inlined_call_operand.vmem [shape: f32[1,256], index: 14, kind: input, shape index: {}]
  %s15 = inlined_call_operand.vmem [shape: f32[1,256], index: 15, kind: input, shape index: {}]
  %s16 = inlined_call_operand.vmem [shape: f32[1,512], index: 16, kind: input, shape index: {}]
  %s17 = inlined_call_operand.vmem [shape: f32[1,512], index: 17, kind: input, shape index: {}]
  %s18 = inlined_call_operand.vmem [shape: f32[1,128], index: 18, kind: input, shape index: {}]
  %s19 = inlined_call_operand.vmem [shape: f32[2,8,128], index: 19, kind: output, shape index: {}]
  %s20 = sld [smem:[#allocation0]]
  $region125: #{_forward_padded.1} parent=0
    _
  %s22 = ssub.s32 1, %s20
  %s23 = scalar_select 0, %s22, %s20
  $region1: #{_forward_padded.1} parent=0
    #allocation2 [shape = 'u8[32768]{0}', space=vmem, size = 0x8000, scoped, tag = 'input window, operand 3, single buffered']
    #allocation3 [shape = 's32[2]{0}', space=sflag, size = 0x8, scoped, tag = 'scoped memory for _forward_padded.1']
    #allocation4 [shape = 'u8[32768]{0}', space=vmem, size = 0x8000, scoped, tag = 'input window, operand 4, single buffered']
    #allocation5 [shape = 's32[1]{0}', space=sflag, size = 0x4, scoped, tag = 'scoped memory for _forward_padded.1']
    #allocation6 [shape = 'u8[65536]{0}', space=vmem, size = 0x10000, scoped, tag = 'input window, operand 5, single buffered']
    #allocation7 [shape = 'u8[131072]{0}', space=vmem, size = 0x20000, scoped, tag = 'input window, operand 9, single buffered']
    #allocation8 [shape = 's32[1]{0}', space=sflag, size = 0x4, scoped, tag = 'scoped memory for _forward_padded.1']
    %24 = vsyncpa [#allocation3], 0
    %25 = vsyncpa [#allocation5], 0
    %26 = vsyncpa [#allocation8], 0
    loop: start=0, step=1, limit=4
    $region2: #{_forward_padded.1} parent=1 // loop_pre_header
      _
    $region3: #{_forward_padded.1} parent=1 // loop_header
      %s28 = sphi 0, %s32
      %p29 = scmp.ge.s32.totalorder %s28, 4
      %s38 = sphi 0, %s40
      %s41 = sphi 0, %s38
      %s42 = sphi 0, %s41
      %s58 = sphi 0, %s42
      %s62 = sphi 0, %s62
      %s64 = sphi 0, %s62
      %s65 = sphi 0, %s64
      %s79 = sphi 0, %s65
      %s83 = sphi 0, %s83
      %s85 = sphi 0, %s83
      %s86 = sphi 0, %s85
      %s100 = sphi 0, %s86
      %s104 = sphi 0, %s104
      %s106 = sphi 0, %s104
      %s107 = sphi 0, %s106
      %s121 = sphi 0, %s107
      %s125 = sphi 0, %s125
      %s127 = sphi 0, %s125
      %s128 = sphi 0, %s127
      %s142 = sphi 0, %s128
      %s146 = sphi 0, %s146
      %s148 = sphi 0, %s146
      %s149 = sphi 0, %s148
      %s163 = sphi 0, %s149
      %s167 = sphi 0, %s167
      %s169 = sphi 0, %s167
      %s170 = sphi 0, %s169
      %s184 = sphi 0, %s170
      %s188 = sphi 0, %s188
      %s190 = sphi 0, %s188
      %s191 = sphi 0, %s190
      %s205 = sphi 0, %s191
      %s209 = sphi 0, %s209
      %s211 = sphi 0, %s209
      %s212 = sphi 0, %s211
      %s226 = sphi 0, %s212
      %s230 = sphi 0, %s230
      %s232 = sphi 0, %s230
      %s233 = sphi 0, %s232
      %s247 = sphi 0, %s233
      %s251 = sphi 0, %s251
      %s253 = sphi 0, %s251
      %s254 = sphi 0, %s253
      %s268 = sphi 0, %s254
      %s272 = sphi 0, %s272
      %s274 = sphi 0, %s272
      %s275 = sphi 0, %s274
      %s289 = sphi 0, %s275
      %s293 = sphi 0, %s293
      %s295 = sphi 0, %s293
      %s296 = sphi 0, %s295
      %s310 = sphi 0, %s296
      %s314 = sphi 0, %s314
      %s316 = sphi 0, %s314
      %s317 = sphi 0, %s316
      %s331 = sphi 0, %s317
      %s335 = sphi 0, %s335
      %s337 = sphi 0, %s335
      %s338 = sphi 0, %s337
      %s352 = sphi 0, %s338
      %s356 = sphi 0, %s356
      %s358 = sphi 0, %s356
      %s359 = sphi 0, %s358
      %s373 = sphi 0, %s359
      %s377 = sphi 0, %s377
      %s379 = sphi 0, %s377
      %s380 = sphi 0, %s379
      %s394 = sphi 0, %s380
      %s398 = sphi 0, %s398
      %s400 = sphi 0, %s398
      %s401 = sphi 0, %s400
      %s415 = sphi 0, %s401
      %s419 = sphi 0, %s419
      %s421 = sphi 0, %s419
      %s422 = sphi 0, %s421
      %s436 = sphi 0, %s422
      %s442 = sphi 0, %s444
      %s445 = sphi 0, %s442
      %s446 = sphi 0, %s445
      %s462 = sphi 0, %s446
    $region4: #{_forward_padded.1} parent=1 // loop_header_branch
      %31 = sbr.rel (%p29) target = $region8
    $region5: #{_forward_padded.1} parent=1 // loop_body
      %s33 = ssub.s32 %s28, 1
      %s34 = ssub.s32 %s28, 2
      %s35 = sadd.s32 %s28, 1
      %s36 = ssub.s32 %s28, %s35
      %p37 = scmp.eq.s32.totalorder %s36, 0
      %s39 = sadd.s32 %s38, 1
      %s40 = scalar_select %p37, %s38, %s39
      %p43 = pneg %p37
      %p44 = scmp.eq.s32.totalorder %s28, 1
      %p45 = por %p43, %p44
      %p46 = scmp.ne.s32.totalorder %s38, %s41
      %p47 = scmp.eq.s32.totalorder %s28, 0
      %p48 = por %p46, %p47
      %p49 = scmp.ne.s32.totalorder %s38, %s41
      %p50 = scmp.eq.s32.totalorder %s33, 1
      %p51 = por %p49, %p50
      %p52 = scmp.ne.s32.totalorder %s41, %s42
      %p53 = scmp.eq.s32.totalorder %s33, 0
      %p54 = por %p52, %p53
      %p55 = scmp.ne.s32.totalorder %s41, %s42
      %p56 = scmp.eq.s32.totalorder %s34, 1
      %p57 = por %p55, %p56
      %p59 = scmp.ne.s32.totalorder %s42, %s58
      %p60 = scmp.eq.s32.totalorder %s34, 0
      %p61 = por %p59, %p60
      %s63 = sadd.s32 %s62, 1
      %p66 = scmp.eq.s32.totalorder %s28, 1
      %p67 = scmp.ne.s32.totalorder %s62, %s64
      %p68 = scmp.eq.s32.totalorder %s28, 0
      %p69 = por %p67, %p68
      %p70 = scmp.ne.s32.totalorder %s62, %s64
      %p71 = scmp.eq.s32.totalorder %s33, 1
      %p72 = por %p70, %p71
      %p73 = scmp.ne.s32.totalorder %s64, %s65
      %p74 = scmp.eq.s32.totalorder %s33, 0
      %p75 = por %p73, %p74
      %p76 = scmp.ne.s32.totalorder %s64, %s65
      %p77 = scmp.eq.s32.totalorder %s34, 1
      %p78 = por %p76, %p77
      %p80 = scmp.ne.s32.totalorder %s65, %s79
      %p81 = scmp.eq.s32.totalorder %s34, 0
      %p82 = por %p80, %p81
      %s84 = sadd.s32 %s83, 1
      %p87 = scmp.eq.s32.totalorder %s28, 1
      %p88 = scmp.ne.s32.totalorder %s83, %s85
      %p89 = scmp.eq.s32.totalorder %s28, 0
      %p90 = por %p88, %p89
      %p91 = scmp.ne.s32.totalorder %s83, %s85
      %p92 = scmp.eq.s32.totalorder %s33, 1
      %p93 = por %p91, %p92
      %p94 = scmp.ne.s32.totalorder %s85, %s86
      %p95 = scmp.eq.s32.totalorder %s33, 0
      %p96 = por %p94, %p95
      %p97 = scmp.ne.s32.totalorder %s85, %s86
      %p98 = scmp.eq.s32.totalorder %s34, 1
      %p99 = por %p97, %p98
      %p101 = scmp.ne.s32.totalorder %s86, %s100
      %p102 = scmp.eq.s32.totalorder %s34, 0
      %p103 = por %p101, %p102
      %s105 = sadd.s32 %s104, 1
      %p108 = scmp.eq.s32.totalorder %s28, 1
      %p109 = scmp.ne.s32.totalorder %s104, %s106
      %p110 = scmp.eq.s32.totalorder %s28, 0
      %p111 = por %p109, %p110
      %p112 = scmp.ne.s32.totalorder %s104, %s106
      %p113 = scmp.eq.s32.totalorder %s33, 1
      %p114 = por %p112, %p113
      %p115 = scmp.ne.s32.totalorder %s106, %s107
      %p116 = scmp.eq.s32.totalorder %s33, 0
      %p117 = por %p115, %p116
      %p118 = scmp.ne.s32.totalorder %s106, %s107
      %p119 = scmp.eq.s32.totalorder %s34, 1
      %p120 = por %p118, %p119
      %p122 = scmp.ne.s32.totalorder %s107, %s121
      %p123 = scmp.eq.s32.totalorder %s34, 0
      %p124 = por %p122, %p123
      %s126 = sadd.s32 %s125, 1
      %p129 = scmp.eq.s32.totalorder %s28, 1
      %p130 = scmp.ne.s32.totalorder %s125, %s127
      %p131 = scmp.eq.s32.totalorder %s28, 0
      %p132 = por %p130, %p131
      %p133 = scmp.ne.s32.totalorder %s125, %s127
      %p134 = scmp.eq.s32.totalorder %s33, 1
      %p135 = por %p133, %p134
      %p136 = scmp.ne.s32.totalorder %s127, %s128
      %p137 = scmp.eq.s32.totalorder %s33, 0
      %p138 = por %p136, %p137
      %p139 = scmp.ne.s32.totalorder %s127, %s128
      %p140 = scmp.eq.s32.totalorder %s34, 1
      %p141 = por %p139, %p140
      %p143 = scmp.ne.s32.totalorder %s128, %s142
      %p144 = scmp.eq.s32.totalorder %s34, 0
      %p145 = por %p143, %p144
      %s147 = sadd.s32 %s146, 1
      %p150 = scmp.eq.s32.totalorder %s28, 1
      %p151 = scmp.ne.s32.totalorder %s146, %s148
      %p152 = scmp.eq.s32.totalorder %s28, 0
      %p153 = por %p151, %p152
      %p154 = scmp.ne.s32.totalorder %s146, %s148
      %p155 = scmp.eq.s32.totalorder %s33, 1
      %p156 = por %p154, %p155
      %p157 = scmp.ne.s32.totalorder %s148, %s149
      %p158 = scmp.eq.s32.totalorder %s33, 0
      %p159 = por %p157, %p158
      %p160 = scmp.ne.s32.totalorder %s148, %s149
      %p161 = scmp.eq.s32.totalorder %s34, 1
      %p162 = por %p160, %p161
      %p164 = scmp.ne.s32.totalorder %s149, %s163
      %p165 = scmp.eq.s32.totalorder %s34, 0
      %p166 = por %p164, %p165
      %s168 = sadd.s32 %s167, 1
      %p171 = scmp.eq.s32.totalorder %s28, 1
      %p172 = scmp.ne.s32.totalorder %s167, %s169
      %p173 = scmp.eq.s32.totalorder %s28, 0
      %p174 = por %p172, %p173
      %p175 = scmp.ne.s32.totalorder %s167, %s169
      %p176 = scmp.eq.s32.totalorder %s33, 1
      %p177 = por %p175, %p176
      %p178 = scmp.ne.s32.totalorder %s169, %s170
      %p179 = scmp.eq.s32.totalorder %s33, 0
      %p180 = por %p178, %p179
      %p181 = scmp.ne.s32.totalorder %s169, %s170
      %p182 = scmp.eq.s32.totalorder %s34, 1
      %p183 = por %p181, %p182
      %p185 = scmp.ne.s32.totalorder %s170, %s184
      %p186 = scmp.eq.s32.totalorder %s34, 0
      %p187 = por %p185, %p186
      %s189 = sadd.s32 %s188, 1
      %p192 = scmp.eq.s32.totalorder %s28, 1
      %p193 = scmp.ne.s32.totalorder %s188, %s190
      %p194 = scmp.eq.s32.totalorder %s28, 0
      %p195 = por %p193, %p194
      %p196 = scmp.ne.s32.totalorder %s188, %s190
      %p197 = scmp.eq.s32.totalorder %s33, 1
      %p198 = por %p196, %p197
      %p199 = scmp.ne.s32.totalorder %s190, %s191
      %p200 = scmp.eq.s32.totalorder %s33, 0
      %p201 = por %p199, %p200
      %p202 = scmp.ne.s32.totalorder %s190, %s191
      %p203 = scmp.eq.s32.totalorder %s34, 1
      %p204 = por %p202, %p203
      %p206 = scmp.ne.s32.totalorder %s191, %s205
      %p207 = scmp.eq.s32.totalorder %s34, 0
      %p208 = por %p206, %p207
      %s210 = sadd.s32 %s209, 1
      %p213 = scmp.eq.s32.totalorder %s28, 1
      %p214 = scmp.ne.s32.totalorder %s209, %s211
      %p215 = scmp.eq.s32.totalorder %s28, 0
      %p216 = por %p214, %p215
      %p217 = scmp.ne.s32.totalorder %s209, %s211
      %p218 = scmp.eq.s32.totalorder %s33, 1
      %p219 = por %p217, %p218
      %p220 = scmp.ne.s32.totalorder %s211, %s212
      %p221 = scmp.eq.s32.totalorder %s33, 0
      %p222 = por %p220, %p221
      %p223 = scmp.ne.s32.totalorder %s211, %s212
      %p224 = scmp.eq.s32.totalorder %s34, 1
      %p225 = por %p223, %p224
      %p227 = scmp.ne.s32.totalorder %s212, %s226
      %p228 = scmp.eq.s32.totalorder %s34, 0
      %p229 = por %p227, %p228
      %s231 = sadd.s32 %s230, 1
      %p234 = scmp.eq.s32.totalorder %s28, 1
      %p235 = scmp.ne.s32.totalorder %s230, %s232
      %p236 = scmp.eq.s32.totalorder %s28, 0
      %p237 = por %p235, %p236
      %p238 = scmp.ne.s32.totalorder %s230, %s232
      %p239 = scmp.eq.s32.totalorder %s33, 1
      %p240 = por %p238, %p239
      %p241 = scmp.ne.s32.totalorder %s232, %s233
      %p242 = scmp.eq.s32.totalorder %s33, 0
      %p243 = por %p241, %p242
      %p244 = scmp.ne.s32.totalorder %s232, %s233
      %p245 = scmp.eq.s32.totalorder %s34, 1
      %p246 = por %p244, %p245
      %p248 = scmp.ne.s32.totalorder %s233, %s247
      %p249 = scmp.eq.s32.totalorder %s34, 0
      %p250 = por %p248, %p249
      %s252 = sadd.s32 %s251, 1
      %p255 = scmp.eq.s32.totalorder %s28, 1
      %p256 = scmp.ne.s32.totalorder %s251, %s253
      %p257 = scmp.eq.s32.totalorder %s28, 0
      %p258 = por %p256, %p257
      %p259 = scmp.ne.s32.totalorder %s251, %s253
      %p260 = scmp.eq.s32.totalorder %s33, 1
      %p261 = por %p259, %p260
      %p262 = scmp.ne.s32.totalorder %s253, %s254
      %p263 = scmp.eq.s32.totalorder %s33, 0
      %p264 = por %p262, %p263
      %p265 = scmp.ne.s32.totalorder %s253, %s254
      %p266 = scmp.eq.s32.totalorder %s34, 1
      %p267 = por %p265, %p266
      %p269 = scmp.ne.s32.totalorder %s254, %s268
      %p270 = scmp.eq.s32.totalorder %s34, 0
      %p271 = por %p269, %p270
      %s273 = sadd.s32 %s272, 1
      %p276 = scmp.eq.s32.totalorder %s28, 1
      %p277 = scmp.ne.s32.totalorder %s272, %s274
      %p278 = scmp.eq.s32.totalorder %s28, 0
      %p279 = por %p277, %p278
      %p280 = scmp.ne.s32.totalorder %s272, %s274
      %p281 = scmp.eq.s32.totalorder %s33, 1
      %p282 = por %p280, %p281
      %p283 = scmp.ne.s32.totalorder %s274, %s275
      %p284 = scmp.eq.s32.totalorder %s33, 0
      %p285 = por %p283, %p284
      %p286 = scmp.ne.s32.totalorder %s274, %s275
      %p287 = scmp.eq.s32.totalorder %s34, 1
      %p288 = por %p286, %p287
      %p290 = scmp.ne.s32.totalorder %s275, %s289
      %p291 = scmp.eq.s32.totalorder %s34, 0
      %p292 = por %p290, %p291
      %s294 = sadd.s32 %s293, 1
      %p297 = scmp.eq.s32.totalorder %s28, 1
      %p298 = scmp.ne.s32.totalorder %s293, %s295
      %p299 = scmp.eq.s32.totalorder %s28, 0
      %p300 = por %p298, %p299
      %p301 = scmp.ne.s32.totalorder %s293, %s295
      %p302 = scmp.eq.s32.totalorder %s33, 1
      %p303 = por %p301, %p302
      %p304 = scmp.ne.s32.totalorder %s295, %s296
      %p305 = scmp.eq.s32.totalorder %s33, 0
      %p306 = por %p304, %p305
      %p307 = scmp.ne.s32.totalorder %s295, %s296
      %p308 = scmp.eq.s32.totalorder %s34, 1
      %p309 = por %p307, %p308
      %p311 = scmp.ne.s32.totalorder %s296, %s310
      %p312 = scmp.eq.s32.totalorder %s34, 0
      %p313 = por %p311, %p312
      %s315 = sadd.s32 %s314, 1
      %p318 = scmp.eq.s32.totalorder %s28, 1
      %p319 = scmp.ne.s32.totalorder %s314, %s316
      %p320 = scmp.eq.s32.totalorder %s28, 0
      %p321 = por %p319, %p320
      %p322 = scmp.ne.s32.totalorder %s314, %s316
      %p323 = scmp.eq.s32.totalorder %s33, 1
      %p324 = por %p322, %p323
      %p325 = scmp.ne.s32.totalorder %s316, %s317
      %p326 = scmp.eq.s32.totalorder %s33, 0
      %p327 = por %p325, %p326
      %p328 = scmp.ne.s32.totalorder %s316, %s317
      %p329 = scmp.eq.s32.totalorder %s34, 1
      %p330 = por %p328, %p329
      %p332 = scmp.ne.s32.totalorder %s317, %s331
      %p333 = scmp.eq.s32.totalorder %s34, 0
      %p334 = por %p332, %p333
      %s336 = sadd.s32 %s335, 1
      %p339 = scmp.eq.s32.totalorder %s28, 1
      %p340 = scmp.ne.s32.totalorder %s335, %s337
      %p341 = scmp.eq.s32.totalorder %s28, 0
      %p342 = por %p340, %p341
      %p343 = scmp.ne.s32.totalorder %s335, %s337
      %p344 = scmp.eq.s32.totalorder %s33, 1
      %p345 = por %p343, %p344
      %p346 = scmp.ne.s32.totalorder %s337, %s338
      %p347 = scmp.eq.s32.totalorder %s33, 0
      %p348 = por %p346, %p347
      %p349 = scmp.ne.s32.totalorder %s337, %s338
      %p350 = scmp.eq.s32.totalorder %s34, 1
      %p351 = por %p349, %p350
      %p353 = scmp.ne.s32.totalorder %s338, %s352
      %p354 = scmp.eq.s32.totalorder %s34, 0
      %p355 = por %p353, %p354
      %s357 = sadd.s32 %s356, 1
      %p360 = scmp.eq.s32.totalorder %s28, 1
      %p361 = scmp.ne.s32.totalorder %s356, %s358
      %p362 = scmp.eq.s32.totalorder %s28, 0
      %p363 = por %p361, %p362
      %p364 = scmp.ne.s32.totalorder %s356, %s358
      %p365 = scmp.eq.s32.totalorder %s33, 1
      %p366 = por %p364, %p365
      %p367 = scmp.ne.s32.totalorder %s358, %s359
      %p368 = scmp.eq.s32.totalorder %s33, 0
      %p369 = por %p367, %p368
      %p370 = scmp.ne.s32.totalorder %s358, %s359
      %p371 = scmp.eq.s32.totalorder %s34, 1
      %p372 = por %p370, %p371
      %p374 = scmp.ne.s32.totalorder %s359, %s373
      %p375 = scmp.eq.s32.totalorder %s34, 0
      %p376 = por %p374, %p375
      %s378 = sadd.s32 %s377, 1
      %p381 = scmp.eq.s32.totalorder %s28, 1
      %p382 = scmp.ne.s32.totalorder %s377, %s379
      %p383 = scmp.eq.s32.totalorder %s28, 0
      %p384 = por %p382, %p383
      %p385 = scmp.ne.s32.totalorder %s377, %s379
      %p386 = scmp.eq.s32.totalorder %s33, 1
      %p387 = por %p385, %p386
      %p388 = scmp.ne.s32.totalorder %s379, %s380
      %p389 = scmp.eq.s32.totalorder %s33, 0
      %p390 = por %p388, %p389
      %p391 = scmp.ne.s32.totalorder %s379, %s380
      %p392 = scmp.eq.s32.totalorder %s34, 1
      %p393 = por %p391, %p392
      %p395 = scmp.ne.s32.totalorder %s380, %s394
      %p396 = scmp.eq.s32.totalorder %s34, 0
      %p397 = por %p395, %p396
      %s399 = sadd.s32 %s398, 1
      %p402 = scmp.eq.s32.totalorder %s28, 1
      %p403 = scmp.ne.s32.totalorder %s398, %s400
      %p404 = scmp.eq.s32.totalorder %s28, 0
      %p405 = por %p403, %p404
      %p406 = scmp.ne.s32.totalorder %s398, %s400
      %p407 = scmp.eq.s32.totalorder %s33, 1
      %p408 = por %p406, %p407
      %p409 = scmp.ne.s32.totalorder %s400, %s401
      %p410 = scmp.eq.s32.totalorder %s33, 0
      %p411 = por %p409, %p410
      %p412 = scmp.ne.s32.totalorder %s400, %s401
      %p413 = scmp.eq.s32.totalorder %s34, 1
      %p414 = por %p412, %p413
      %p416 = scmp.ne.s32.totalorder %s401, %s415
      %p417 = scmp.eq.s32.totalorder %s34, 0
      %p418 = por %p416, %p417
      %s420 = sadd.s32 %s419, 1
      %p423 = scmp.eq.s32.totalorder %s28, 1
      %p424 = scmp.ne.s32.totalorder %s419, %s421
      %p425 = scmp.eq.s32.totalorder %s28, 0
      %p426 = por %p424, %p425
      %p427 = scmp.ne.s32.totalorder %s419, %s421
      %p428 = scmp.eq.s32.totalorder %s33, 1
      %p429 = por %p427, %p428
      %p430 = scmp.ne.s32.totalorder %s421, %s422
      %p431 = scmp.eq.s32.totalorder %s33, 0
      %p432 = por %p430, %p431
      %p433 = scmp.ne.s32.totalorder %s421, %s422
      %p434 = scmp.eq.s32.totalorder %s34, 1
      %p435 = por %p433, %p434
      %p437 = scmp.ne.s32.totalorder %s422, %s436
      %p438 = scmp.eq.s32.totalorder %s34, 0
      %p439 = por %p437, %p438
      %s440 = ssub.s32 %s28, %s35
      %p441 = scmp.eq.s32.totalorder %s440, 0
      %s443 = sadd.s32 %s442, 1
      %s444 = scalar_select %p441, %s442, %s443
      %p447 = pneg %p441
      %p448 = scmp.eq.s32.totalorder %s28, 1
      %p449 = por %p447, %p448
      %p450 = scmp.ne.s32.totalorder %s442, %s445
      %p451 = scmp.eq.s32.totalorder %s28, 0
      %p452 = por %p450, %p451
      %p453 = scmp.ne.s32.totalorder %s442, %s445
      %p454 = scmp.eq.s32.totalorder %s33, 1
      %p455 = por %p453, %p454
      %p456 = scmp.ne.s32.totalorder %s445, %s446
      %p457 = scmp.eq.s32.totalorder %s33, 0
      %p458 = por %p456, %p457
      %p459 = scmp.ne.s32.totalorder %s445, %s446
      %p460 = scmp.eq.s32.totalorder %s34, 1
      %p461 = por %p459, %p460
      %p463 = scmp.ne.s32.totalorder %s446, %s462
      %p464 = scmp.eq.s32.totalorder %s34, 0
      %p465 = por %p463, %p464
      %p466 = scmp.le.s32.totalorder 1, %s28
      %p467 = scmp.lt.s32.totalorder %s28, 3
      %p468 = pnand %p466, %p467
      %p469 = pneg %p468
      // Predicated region
      $region9: #{_forward_padded.1} parent=5 // pred_check
        _
      $region10: #{_forward_padded.1} parent=5 // pred_check_branch
        %471 = sbr.rel (%p468) target = $region12
      $region11: #{_forward_padded.1} parent=5 // pred_region
        %s472 = ssub.s32 %s28, 1
        // Predicated region
        $region13: #{_forward_padded.1} parent=11 // pred_check
          %p473 = pneg %p75
        $region14: #{_forward_padded.1} parent=11 // pred_check_branch
          %475 = sbr.rel (%p473) target = $region16
        $region15: #{_forward_padded.1} parent=11 // pred_region
          _
        $region16: #{_forward_padded.1} parent=11 // pred_fallthru
          _
        // Predicated region
        $region17: #{_forward_padded.1} parent=11 // pred_check
          %p476 = pneg %p96
        $region18: #{_forward_padded.1} parent=11 // pred_check_branch
          %478 = sbr.rel (%p476) target = $region20
        $region19: #{_forward_padded.1} parent=11 // pred_region
          _
        $region20: #{_forward_padded.1} parent=11 // pred_fallthru
          _
        // Predicated region
        $region21: #{_forward_padded.1} parent=11 // pred_check
          %p479 = pneg %p117
        $region22: #{_forward_padded.1} parent=11 // pred_check_branch
          %481 = sbr.rel (%p479) target = $region24
        $region23: #{_forward_padded.1} parent=11 // pred_region
          %s483 = ssub.s32 1024, 1024
          %484 = vsyncadd [#allocation3], %s483
          %s485 = sshll.u32 [#allocation2], 4
          %s486 = int_to_ptr.vmem [resolvable:$true] %s485
          %491 = dma.hbm_to_vmem [thread:$0]  %s3, 1024, %s486, [#allocation3], 64, 64, 4
        $region24: #{_forward_padded.1} parent=11 // pred_fallthru
          _
        // Predicated region
        $region25: #{_forward_padded.1} parent=11 // pred_check
          %p492 = pneg %p138
        $region26: #{_forward_padded.1} parent=11 // pred_check_branch
          %494 = sbr.rel (%p492) target = $region28
        $region27: #{_forward_padded.1} parent=11 // pred_region
          %s496 = ssub.s32 1024, 1024
          %497 = vsyncadd [#allocation5], %s496
          %s498 = sshll.u32 [#allocation4], 4
          %s499 = int_to_ptr.vmem [resolvable:$true] %s498
          %504 = dma.hbm_to_vmem [thread:$0]  %s4, 1024, %s499, [#allocation5], 64, 64, 4
        $region28: #{_forward_padded.1} parent=11 // pred_fallthru
          _
        // Predicated region
        $region29: #{_forward_padded.1} parent=11 // pred_check
          %p505 = pneg %p159
        $region30: #{_forward_padded.1} parent=11 // pred_check_branch
          %507 = sbr.rel (%p505) target = $region32
        $region31: #{_forward_padded.1} parent=11 // pred_region
          %s509 = ssub.s32 2048, 2048
          %510 = vsyncadd [#allocation5], %s509
          %s511 = sshll.u32 [#allocation6], 4
          %s512 = int_to_ptr.vmem [resolvable:$true] %s511
          %517 = dma.hbm_to_vmem [thread:$0]  %s5, 2048, %s512, [#allocation5], 128, 128, 8
        $region32: #{_forward_padded.1} parent=11 // pred_fallthru
          _
        // Predicated region
        $region33: #{_forward_padded.1} parent=11 // pred_check
          %p518 = pneg %p180
        $region34: #{_forward_padded.1} parent=11 // pred_check_branch
          %520 = sbr.rel (%p518) target = $region36
        $region35: #{_forward_padded.1} parent=11 // pred_region
          _
        $region36: #{_forward_padded.1} parent=11 // pred_fallthru
          _
        // Predicated region
        $region37: #{_forward_padded.1} parent=11 // pred_check
          %p521 = pneg %p201
        $region38: #{_forward_padded.1} parent=11 // pred_check_branch
          %523 = sbr.rel (%p521) target = $region40
        $region39: #{_forward_padded.1} parent=11 // pred_region
          _
        $region40: #{_forward_padded.1} parent=11 // pred_fallthru
          _
        // Predicated region
        $region41: #{_forward_padded.1} parent=11 // pred_check
          %p524 = pneg %p222
        $region42: #{_forward_padded.1} parent=11 // pred_check_branch
          %526 = sbr.rel (%p524) target = $region44
        $region43: #{_forward_padded.1} parent=11 // pred_region
          _
        $region44: #{_forward_padded.1} parent=11 // pred_fallthru
          _
        // Predicated region
        $region45: #{_forward_padded.1} parent=11 // pred_check
          %p527 = pneg %p243
        $region46: #{_forward_padded.1} parent=11 // pred_check_branch
          %529 = sbr.rel (%p527) target = $region48
        $region47: #{_forward_padded.1} parent=11 // pred_region
          %s531 = ssub.s32 4096, 4096
          %532 = vsyncadd [#allocation8], %s531
          %s533 = sshll.u32 [#allocation7], 4
          %s534 = int_to_ptr.vmem [resolvable:$true] %s533
          %539 = dma.hbm_to_vmem [thread:$0]  %s9, 4096, %s534, [#allocation8], 64, 64, 4
        $region48: #{_forward_padded.1} parent=11 // pred_fallthru
          _
        // Predicated region
        $region49: #{_forward_padded.1} parent=11 // pred_check
          %p540 = pneg %p264
        $region50: #{_forward_padded.1} parent=11 // pred_check_branch
          %542 = sbr.rel (%p540) target = $region52
        $region51: #{_forward_padded.1} parent=11 // pred_region
          _
        $region52: #{_forward_padded.1} parent=11 // pred_fallthru
          _
        // Predicated region
        $region53: #{_forward_padded.1} parent=11 // pred_check
          %p543 = pneg %p285
        $region54: #{_forward_padded.1} parent=11 // pred_check_branch
          %545 = sbr.rel (%p543) target = $region56
        $region55: #{_forward_padded.1} parent=11 // pred_region
          _
        $region56: #{_forward_padded.1} parent=11 // pred_fallthru
          _
        // Predicated region
        $region57: #{_forward_padded.1} parent=11 // pred_check
          %p546 = pneg %p306
        $region58: #{_forward_padded.1} parent=11 // pred_check_branch
          %548 = sbr.rel (%p546) target = $region60
        $region59: #{_forward_padded.1} parent=11 // pred_region
          _
        $region60: #{_forward_padded.1} parent=11 // pred_fallthru
          _
        // Predicated region
        $region61: #{_forward_padded.1} parent=11 // pred_check
          %p549 = pneg %p327
        $region62: #{_forward_padded.1} parent=11 // pred_check_branch
          %551 = sbr.rel (%p549) target = $region64
        $region63: #{_forward_padded.1} parent=11 // pred_region
          _
        $region64: #{_forward_padded.1} parent=11 // pred_fallthru
          _
        // Predicated region
        $region65: #{_forward_padded.1} parent=11 // pred_check
          %p552 = pneg %p348
        $region66: #{_forward_padded.1} parent=11 // pred_check_branch
          %554 = sbr.rel (%p552) target = $region68
        $region67: #{_forward_padded.1} parent=11 // pred_region
          _
        $region68: #{_forward_padded.1} parent=11 // pred_fallthru
          _
        // Predicated region
        $region69: #{_forward_padded.1} parent=11 // pred_check
          %p555 = pneg %p369
        $region70: #{_forward_padded.1} parent=11 // pred_check_branch
          %557 = sbr.rel (%p555) target = $region72
        $region71: #{_forward_padded.1} parent=11 // pred_region
          _
        $region72: #{_forward_padded.1} parent=11 // pred_fallthru
          _
        // Predicated region
        $region73: #{_forward_padded.1} parent=11 // pred_check
          %p558 = pneg %p390
        $region74: #{_forward_padded.1} parent=11 // pred_check_branch
          %560 = sbr.rel (%p558) target = $region76
        $region75: #{_forward_padded.1} parent=11 // pred_region
          _
        $region76: #{_forward_padded.1} parent=11 // pred_fallthru
          _
        // Predicated region
        $region77: #{_forward_padded.1} parent=11 // pred_check
          %p561 = pneg %p411
        $region78: #{_forward_padded.1} parent=11 // pred_check_branch
          %563 = sbr.rel (%p561) target = $region80
        $region79: #{_forward_padded.1} parent=11 // pred_region
          _
        $region80: #{_forward_padded.1} parent=11 // pred_fallthru
          _
        // Predicated region
        $region81: #{_forward_padded.1} parent=11 // pred_check
          %p564 = pneg %p432
        $region82: #{_forward_padded.1} parent=11 // pred_check_branch
          %566 = sbr.rel (%p564) target = $region84
        $region83: #{_forward_padded.1} parent=11 // pred_region
          _
        $region84: #{_forward_padded.1} parent=11 // pred_fallthru
          _
      $region12: #{_forward_padded.1} parent=5 // pred_fallthru
        _
      %p567 = scmp.lt.s32.totalorder %s28, 2
      // Predicated region
      $region85: #{_forward_padded.1} parent=5 // pred_check
        %p568 = pneg %p567
      $region86: #{_forward_padded.1} parent=5 // pred_check_branch
        %570 = sbr.rel (%p568) target = $region88
      $region87: #{_forward_padded.1} parent=5 // pred_region
        // Predicated region
        $region89: #{_forward_padded.1} parent=87 // pred_check
          %p571 = pneg %p48
        $region90: #{_forward_padded.1} parent=87 // pred_check_branch
          %573 = sbr.rel (%p571) target = $region92
        $region91: #{_forward_padded.1} parent=87 // pred_region
          %s574 = smul.u32 8, %s28
          %p575 = scmp.lt.s32.totalorder %s574, 15
          %s576 = scalar_select %p575, %s574, 15
          %s577 = smul.addr %s576, 4
          %s578 = scalar_lea.vmem %s0, %s577
          %s579 = smul.u32 8, %s28
        $region92: #{_forward_padded.1} parent=87 // pred_fallthru
          _
      $region88: #{_forward_padded.1} parent=5 // pred_fallthru
        _
      %p580 = scmp.le.s32.totalorder 1, %s28
      %p581 = scmp.lt.s32.totalorder %s28, 3
      %p582 = pnand %p580, %p581
      %p583 = pneg %p582
      // Predicated region
      $region93: #{_forward_padded.1} parent=5 // pred_check
        _
      $region94: #{_forward_padded.1} parent=5 // pred_check_branch
        %585 = sbr.rel (%p582) target = $region96
      $region95: #{_forward_padded.1} parent=5 // pred_region
        %s586 = ssub.s32 %s28, 1
        // Predicated region
        $region97: #{_forward_padded.1} parent=95 // pred_check
          %p587 = pneg %p117
        $region98: #{_forward_padded.1} parent=95 // pred_check_branch
          %589 = sbr.rel (%p587) target = $region100
        $region99: #{_forward_padded.1} parent=95 // pred_region
          %590 = dma.done [#allocation3], 1024
        $region100: #{_forward_padded.1} parent=95 // pred_fallthru
          _
        // Predicated region
        $region101: #{_forward_padded.1} parent=95 // pred_check
          %p591 = pneg %p138
        $region102: #{_forward_padded.1} parent=95 // pred_check_branch
          %593 = sbr.rel (%p591) target = $region104
        $region103: #{_forward_padded.1} parent=95 // pred_region
          %594 = dma.done [#allocation5], 1024
        $region104: #{_forward_padded.1} parent=95 // pred_fallthru
          _
        // Predicated region
        $region105: #{_forward_padded.1} parent=95 // pred_check
          %p595 = pneg %p159
        $region106: #{_forward_padded.1} parent=95 // pred_check_branch
          %597 = sbr.rel (%p595) target = $region108
        $region107: #{_forward_padded.1} parent=95 // pred_region
          %598 = dma.done [#allocation5], 2048
        $region108: #{_forward_padded.1} parent=95 // pred_fallthru
          _
        // Predicated region
        $region109: #{_forward_padded.1} parent=95 // pred_check
          %p599 = pneg %p243
        $region110: #{_forward_padded.1} parent=95 // pred_check_branch
          %601 = sbr.rel (%p599) target = $region112
        $region111: #{_forward_padded.1} parent=95 // pred_region
          %602 = dma.done [#allocation8], 4096
        $region112: #{_forward_padded.1} parent=95 // pred_fallthru
          _
        %s603 = smul.u32 8, %s33
        %p604 = scmp.lt.s32.totalorder %s603, 15
        %s605 = scalar_select %p604, %s603, 15
        %s606 = smul.addr %s605, 4
        %s607 = scalar_lea.vmem %s0, %s606
        %p608 = pneg %p54
        %p609 = pneg %p51
        %p610 = pneg %p75
        %p611 = pneg %p72
        %p612 = pneg %p96
        %p613 = pneg %p93
        %p614 = pneg %p117
        %p615 = pneg %p114
        %p616 = pneg %p138
        %p617 = pneg %p135
        %p618 = pneg %p159
        %p619 = pneg %p156
        %p620 = pneg %p180
        %p621 = pneg %p177
        %p622 = pneg %p201
        %p623 = pneg %p198
        %p624 = pneg %p222
        %p625 = pneg %p219
        %p626 = pneg %p243
        %p627 = pneg %p240
        %p628 = pneg %p264
        %p629 = pneg %p261
        %p630 = pneg %p285
        %p631 = pneg %p282
        %p632 = pneg %p306
        %p633 = pneg %p303
        %p634 = pneg %p327
        %p635 = pneg %p324
        %p636 = pneg %p348
        %p637 = pneg %p345
        %p638 = pneg %p369
        %p639 = pneg %p366
        %p640 = pneg %p390
        %p641 = pneg %p387
        %p642 = pneg %p411
        %p643 = pneg %p408
        %p644 = pneg %p432
        %p645 = pneg %p429
        %p646 = pneg %p458
        %p647 = pneg %p455
        %p648 = scmp.lt.s32.totalorder %s33, 1
        %s649 = scalar_select %p648, %s33, 1
        %s650 = smul.addr %s649, 8
        %s651 = scalar_lea.vmem %s19, %s650
        %s652 = smul.u32 8, %s33
        %p653 = scmp.lt.s32.totalorder %s652, 15
        %s654 = scalar_select %p653, %s652, 15
        %s655 = smul.addr %s654, 4
        %s656 = scalar_lea.vmem %s0, %s655
        %s657 = smul.u32 8, %s33
        %p658 = scmp.lt.s32.totalorder %s33, 1
        %s659 = scalar_select %p658, %s33, 1
        %s660 = smul.addr %s659, 8
        %s661 = scalar_lea.vmem %s19, %s660
        %v663 = vld [vmem:[%s656] sm:$0xf]
        %v664 = vld [vmem:[%s656 + $0x4] sm:$0xf]
        %v665 = vld [vmem:[%s656 + $0x8] sm:$0xf]
        %v666 = vld [vmem:[%s656 + $0xc] sm:$0xf]
        %v667 = vld [vmem:[%s656 + $0x10] sm:$0xf]
        %v668 = vld [vmem:[%s656 + $0x14] sm:$0xf]
        %v669 = vld [vmem:[%s656 + $0x18] sm:$0xf]
        %v670 = vld [vmem:[%s656 + $0x1c] sm:$0xf]
        %v671 = vld [vmem:[%s1] sm:$0xf]
        %v672 = vld [vmem:[%s1 + $0x4] sm:$0xf]
        %v673 = vld [vmem:[%s1 + $0x8] sm:$0xf]
        %v674 = vld [vmem:[%s1 + $0xc] sm:$0xf]
        %v675 = vld [vmem:[%s10] sm:$0x1]
        %v677 = vlaneseq
        %v678 = vshrl.u32 %v677, 7
        %v679 = vsub.s32 0, %v678
        %v680 = vrot.slane %v675, %v679
        %v690 = vunpack.c.l.b16 %v663
        %v691 = vunpack.c.l.b16 %v664
        %v692 = vunpack.c.l.b16 %v665
        %v693 = vunpack.c.l.b16 %v666
        %v694 = vunpack.c.l.b16 %v667
        %v695 = vunpack.c.l.b16 %v668
        %v696 = vunpack.c.l.b16 %v669
        %v697 = vunpack.c.l.b16 %v670
        %v698 = vpack.c.b16 %v691, %v690
        %v699 = vpack.c.b16 %v693, %v692
        %v700 = vpack.c.b16 %v695, %v694
        %v701 = vpack.c.b16 %v697, %v696
        %v706 = vunpack.c.l.b16 %v671
        %v707 = vunpack.c.l.b16 %v672
        %v708 = vunpack.c.l.b16 %v673
        %v709 = vunpack.c.l.b16 %v674
        %v710 = vpack.c.b16 %v707, %v706
        %v711 = vpack.c.b16 %v709, %v708
        %vm714 = vcmask 261120
        %v716 = vsel %vm714, %v698, 0
        %v719 = vsel %vm714, %v699, 0
        %v722 = vsel %vm714, %v700, 0
        %v725 = vsel %vm714, %v701, 0
        %727 = vmatprep.subr.bf16.mxu0 0
        %728 = vmatpush1.bf16.msra.mxu0 0
        %729 = vmatprep.subr.bf16.mxu0 0
        %730 = vmatpush1.bf16.msra.mxu0 0
        %731 = vmatprep.subr.bf16.mxu0 0
        %732 = vmatpush1.bf16.msra.mxu0 0
        %733 = vmatprep.subr.bf16.mxu0 0
        %734 = vmatpush1.bf16.msra.mxu0 0
        %735 = vmatprep.subr.bf16.mxu0 0
        %736 = vmatpush1.bf16.msra.mxu0 0
        %737 = vmatprep.subr.bf16.mxu0 0
        %738 = vmatpush1.bf16.msra.mxu0 0
        %739 = vmatprep.subr.bf16.mxu0 0
        %740 = vmatpush1.bf16.msra.mxu0 %v711
        %741 = vmatprep.subr.bf16.mxu0 0
        %742 = vmatpush1.bf16.msra.mxu0 %v710
        %743 = vmatprep.subr.bf16.mxu0 0
        %744 = vmatpush2.bf16.msra.mxu0 0
        %745 = vmatprep.subr.bf16.mxu0 0
        %746 = vmatpush2.bf16.msra.mxu0 0
        %747 = vmatprep.subr.bf16.mxu0 0
        %748 = vmatpush2.bf16.msra.mxu0 0
        %749 = vmatprep.subr.bf16.mxu0 0
        %750 = vmatpush2.bf16.msra.mxu0 0
        %751 = vmatprep.subr.bf16.mxu0 0
        %752 = vmatpush2.bf16.msra.mxu0 0
        %753 = vmatprep.subr.bf16.mxu0 0
        %754 = vmatpush2.bf16.msra.mxu0 0
        %755 = vmatprep.subr.bf16.mxu0 0
        %756 = vmatpush2.bf16.msra.mxu0 0
        %757 = vmatprep.subr.bf16.mxu0 0
        %758 = vmatpush2.bf16.msra.mxu0 0
        %759 = vmatprep.mubr.bf16.mxu0 0
        %760 = vmatmul.mubr.bf16.gmra.mxu0 %v716
        %v761 = vpop.f32.mrf.mxu0
        %v762 = vadd.f32 %v680, %v761
        %v763 = vpop.f32.mrf.mxu0
        %v764 = vpop.f32.mrf.mxu0
        %v765 = vadd.f32 %v680, %v764
        %v766 = vpop.f32.mrf.mxu0
        %767 = vmatprep.mubr.bf16.mxu0 0
        %768 = vmatmul.mubr.bf16.gmra.mxu0 %v719
        %v769 = vpop.f32.mrf.mxu0
        %v770 = vadd.f32 %v680, %v769
        %v771 = vpop.f32.mrf.mxu0
        %v772 = vpop.f32.mrf.mxu0
        %v773 = vadd.f32 %v680, %v772
        %v774 = vpop.f32.mrf.mxu0
        %775 = vmatprep.mubr.bf16.mxu0 0
        %776 = vmatmul.mubr.bf16.gmra.mxu0 %v722
        %v777 = vpop.f32.mrf.mxu0
        %v778 = vadd.f32 %v680, %v777
        %v779 = vpop.f32.mrf.mxu0
        %v780 = vpop.f32.mrf.mxu0
        %v781 = vadd.f32 %v680, %v780
        %v782 = vpop.f32.mrf.mxu0
        %783 = vmatprep.mubr.bf16.mxu0 0
        %784 = vmatmul.mubr.bf16.gmra.mxu0 %v725
        %v785 = vpop.f32.mrf.mxu0
        %v786 = vadd.f32 %v680, %v785
        %v787 = vpop.f32.mrf.mxu0
        %v788 = vpop.f32.mrf.mxu0
        %v789 = vadd.f32 %v680, %v788
        %v790 = vpop.f32.mrf.mxu0
        %791 = vdwg.mxu0
        %v792 = vmax.f32 %v762, 0.0
        %v793 = vmax.f32 %v765, 0.0
        %v794 = vmax.f32 %v770, 0.0
        %v795 = vmax.f32 %v773, 0.0
        %v796 = vmax.f32 %v778, 0.0
        %v797 = vmax.f32 %v781, 0.0
        %v798 = vmax.f32 %v786, 0.0
        %v799 = vmax.f32 %v789, 0.0
        %v800 = vpack.c.bf16 %v793, %v792
        %v801 = vpack.c.bf16 %v795, %v794
        %v802 = vpack.c.bf16 %v797, %v796
        %v803 = vpack.c.bf16 %v799, %v798
        %v804 = vld [vmem:[%s2] sm:$0xf]
        %v805 = vld [vmem:[%s2 + $0x4] sm:$0xf]
        %v806 = vld [vmem:[%s2 + $0x8] sm:$0xf]
        %v807 = vld [vmem:[%s2 + $0xc] sm:$0xf]
        %v808 = vld [vmem:[%s2 + $0x10] sm:$0xf]
        %v809 = vld [vmem:[%s2 + $0x14] sm:$0xf]
        %v810 = vld [vmem:[%s2 + $0x18] sm:$0xf]
        %v811 = vld [vmem:[%s2 + $0x1c] sm:$0xf]
        %v812 = vld [vmem:[%s2 + $0x20] sm:$0xf]
        %v813 = vld [vmem:[%s2 + $0x24] sm:$0xf]
        %v814 = vld [vmem:[%s2 + $0x28] sm:$0xf]
        %v815 = vld [vmem:[%s2 + $0x2c] sm:$0xf]
        %v816 = vld [vmem:[%s2 + $0x30] sm:$0xf]
        %v817 = vld [vmem:[%s2 + $0x34] sm:$0xf]
        %v818 = vld [vmem:[%s2 + $0x38] sm:$0xf]
        %v819 = vld [vmem:[%s2 + $0x3c] sm:$0xf]
        %v820 = vld [vmem:[%s11] sm:$0x1]
        %v822 = vlaneseq
        %v823 = vshrl.u32 %v822, 7
        %v824 = vsub.s32 0, %v823
        %v825 = vrot.slane %v820, %v824
        %v843 = vunpack.c.l.b16 %v804
        %v844 = vunpack.c.l.b16 %v805
        %v845 = vunpack.c.l.b16 %v806
        %v846 = vunpack.c.l.b16 %v807
        %v847 = vunpack.c.l.b16 %v808
        %v848 = vunpack.c.l.b16 %v809
        %v849 = vunpack.c.l.b16 %v810
        %v850 = vunpack.c.l.b16 %v811
        %v851 = vunpack.c.l.b16 %v812
        %v852 = vunpack.c.l.b16 %v813
        %v853 = vunpack.c.l.b16 %v814
        %v854 = vunpack.c.l.b16 %v815
        %v855 = vunpack.c.l.b16 %v816
        %v856 = vunpack.c.l.b16 %v817
        %v857 = vunpack.c.l.b16 %v818
        %v858 = vunpack.c.l.b16 %v819
        %v859 = vpack.c.b16 %v844, %v843
        %v860 = vpack.c.b16 %v846, %v845
        %v861 = vpack.c.b16 %v848, %v847
        %v862 = vpack.c.b16 %v850, %v849
        %v863 = vpack.c.b16 %v852, %v851
        %v864 = vpack.c.b16 %v854, %v853
        %v865 = vpack.c.b16 %v856, %v855
        %v866 = vpack.c.b16 %v858, %v857
        %875 = vmatprep.subr.bf16.mxu0 0
        %876 = vmatpush1.bf16.msra.mxu0 %v866
        %877 = vmatprep.subr.bf16.mxu0 0
        %878 = vmatpush1.bf16.msra.mxu0 %v865
        %879 = vmatprep.subr.bf16.mxu0 0
        %880 = vmatpush1.bf16.msra.mxu0 %v864
        %881 = vmatprep.subr.bf16.mxu0 0
        %882 = vmatpush1.bf16.msra.mxu0 %v863
        %883 = vmatprep.subr.bf16.mxu0 0
        %884 = vmatpush1.bf16.msra.mxu0 %v862
        %885 = vmatprep.subr.bf16.mxu0 0
        %886 = vmatpush1.bf16.msra.mxu0 %v861
        %887 = vmatprep.subr.bf16.mxu0 0
        %888 = vmatpush1.bf16.msra.mxu0 %v860
        %889 = vmatprep.subr.bf16.mxu0 0
        %890 = vmatpush1.bf16.msra.mxu0 %v859
        %891 = vmatprep.subr.bf16.mxu0 0
        %892 = vmatpush2.bf16.msra.mxu0 0
        %893 = vmatprep.subr.bf16.mxu0 0
        %894 = vmatpush2.bf16.msra.mxu0 0
        %895 = vmatprep.subr.bf16.mxu0 0
        %896 = vmatpush2.bf16.msra.mxu0 0
        %897 = vmatprep.subr.bf16.mxu0 0
        %898 = vmatpush2.bf16.msra.mxu0 0
        %899 = vmatprep.subr.bf16.mxu0 0
        %900 = vmatpush2.bf16.msra.mxu0 0
        %901 = vmatprep.subr.bf16.mxu0 0
        %902 = vmatpush2.bf16.msra.mxu0 0
        %903 = vmatprep.subr.bf16.mxu0 0
        %904 = vmatpush2.bf16.msra.mxu0 0
        %905 = vmatprep.subr.bf16.mxu0 0
        %906 = vmatpush2.bf16.msra.mxu0 0
        %907 = vmatprep.mubr.bf16.mxu0 0
        %908 = vmatmul.mubr.bf16.gmra.mxu0 %v800
        %v909 = vpop.f32.mrf.mxu0
        %v910 = vadd.f32 %v825, %v909
        %v911 = vpop.f32.mrf.mxu0
        %v912 = vpop.f32.mrf.mxu0
        %v913 = vadd.f32 %v825, %v912
        %v914 = vpop.f32.mrf.mxu0
        %915 = vmatprep.mubr.bf16.mxu0 0
        %916 = vmatmul.mubr.bf16.gmra.mxu0 %v801
        %v917 = vpop.f32.mrf.mxu0
        %v918 = vadd.f32 %v825, %v917
        %v919 = vpop.f32.mrf.mxu0
        %v920 = vpop.f32.mrf.mxu0
        %v921 = vadd.f32 %v825, %v920
        %v922 = vpop.f32.mrf.mxu0
        %923 = vmatprep.mubr.bf16.mxu0 0
        %924 = vmatmul.mubr.bf16.gmra.mxu0 %v802
        %v925 = vpop.f32.mrf.mxu0
        %v926 = vadd.f32 %v825, %v925
        %v927 = vpop.f32.mrf.mxu0
        %v928 = vpop.f32.mrf.mxu0
        %v929 = vadd.f32 %v825, %v928
        %v930 = vpop.f32.mrf.mxu0
        %931 = vmatprep.mubr.bf16.mxu0 0
        %932 = vmatmul.mubr.bf16.gmra.mxu0 %v803
        %v933 = vpop.f32.mrf.mxu0
        %v934 = vadd.f32 %v825, %v933
        %v935 = vpop.f32.mrf.mxu0
        %v936 = vpop.f32.mrf.mxu0
        %v937 = vadd.f32 %v825, %v936
        %v938 = vpop.f32.mrf.mxu0
        %939 = vdwg.mxu0
        %v940 = vmax.f32 %v910, 0.0
        %v941 = vmax.f32 %v913, 0.0
        %v942 = vmax.f32 %v918, 0.0
        %v943 = vmax.f32 %v921, 0.0
        %v944 = vmax.f32 %v926, 0.0
        %v945 = vmax.f32 %v929, 0.0
        %v946 = vmax.f32 %v934, 0.0
        %v947 = vmax.f32 %v937, 0.0
        %v948 = vpack.c.bf16 %v941, %v940
        %v949 = vpack.c.bf16 %v943, %v942
        %v950 = vpack.c.bf16 %v945, %v944
        %v951 = vpack.c.bf16 %v947, %v946
        %v952 = vld [vmem:[#allocation2] sm:$0xf]
        %v953 = vld [vmem:[#allocation2 + $0x4] sm:$0xf]
        %v954 = vld [vmem:[#allocation2 + $0x8] sm:$0xf]
        %v955 = vld [vmem:[#allocation2 + $0xc] sm:$0xf]
        %v956 = vld [vmem:[#allocation2 + $0x10] sm:$0xf]
        %v957 = vld [vmem:[#allocation2 + $0x14] sm:$0xf]
        %v958 = vld [vmem:[#allocation2 + $0x18] sm:$0xf]
        %v959 = vld [vmem:[#allocation2 + $0x1c] sm:$0xf]
        %v960 = vld [vmem:[#allocation2 + $0x20] sm:$0xf]
        %v961 = vld [vmem:[#allocation2 + $0x24] sm:$0xf]
        %v962 = vld [vmem:[#allocation2 + $0x28] sm:$0xf]
        %v963 = vld [vmem:[#allocation2 + $0x2c] sm:$0xf]
        %v964 = vld [vmem:[#allocation2 + $0x30] sm:$0xf]
        %v965 = vld [vmem:[#allocation2 + $0x34] sm:$0xf]
        %v966 = vld [vmem:[#allocation2 + $0x38] sm:$0xf]
        %v967 = vld [vmem:[#allocation2 + $0x3c] sm:$0xf]
        %v968 = vld [vmem:[%s12] sm:$0x1]
        %v970 = vlaneseq
        %v971 = vshrl.u32 %v970, 7
        %v972 = vsub.s32 0, %v971
        %v973 = vrot.slane %v968, %v972
        %v991 = vunpack.c.l.b16 %v952
        %v992 = vunpack.c.l.b16 %v953
        %v993 = vunpack.c.l.b16 %v954
        %v994 = vunpack.c.l.b16 %v955
        %v995 = vunpack.c.l.b16 %v956
        %v996 = vunpack.c.l.b16 %v957
        %v997 = vunpack.c.l.b16 %v958
        %v998 = vunpack.c.l.b16 %v959
        %v999 = vunpack.c.l.b16 %v960
        %v1000 = vunpack.c.l.b16 %v961
        %v1001 = vunpack.c.l.b16 %v962
        %v1002 = vunpack.c.l.b16 %v963
        %v1003 = vunpack.c.l.b16 %v964
        %v1004 = vunpack.c.l.b16 %v965
        %v1005 = vunpack.c.l.b16 %v966
        %v1006 = vunpack.c.l.b16 %v967
        %v1007 = vpack.c.b16 %v992, %v991
        %v1008 = vpack.c.b16 %v994, %v993
        %v1009 = vpack.c.b16 %v996, %v995
        %v1010 = vpack.c.b16 %v998, %v997
        %v1011 = vpack.c.b16 %v1000, %v999
        %v1012 = vpack.c.b16 %v1002, %v1001
        %v1013 = vpack.c.b16 %v1004, %v1003
        %v1014 = vpack.c.b16 %v1006, %v1005
        %1023 = vmatprep.subr.bf16.mxu0 0
        %1024 = vmatpush1.bf16.msra.mxu0 %v1014
        %1025 = vmatprep.subr.bf16.mxu0 0
        %1026 = vmatpush1.bf16.msra.mxu0 %v1013
        %1027 = vmatprep.subr.bf16.mxu0 0
        %1028 = vmatpush1.bf16.msra.mxu0 %v1012
        %1029 = vmatprep.subr.bf16.mxu0 0
        %1030 = vmatpush1.bf16.msra.mxu0 %v1011
        %1031 = vmatprep.subr.bf16.mxu0 0
        %1032 = vmatpush1.bf16.msra.mxu0 %v1010
        %1033 = vmatprep.subr.bf16.mxu0 0
        %1034 = vmatpush1.bf16.msra.mxu0 %v1009
        %1035 = vmatprep.subr.bf16.mxu0 0
        %1036 = vmatpush1.bf16.msra.mxu0 %v1008
        %1037 = vmatprep.subr.bf16.mxu0 0
        %1038 = vmatpush1.bf16.msra.mxu0 %v1007
        %1039 = vmatprep.subr.bf16.mxu0 0
        %1040 = vmatpush2.bf16.msra.mxu0 0
        %1041 = vmatprep.subr.bf16.mxu0 0
        %1042 = vmatpush2.bf16.msra.mxu0 0
        %1043 = vmatprep.subr.bf16.mxu0 0
        %1044 = vmatpush2.bf16.msra.mxu0 0
        %1045 = vmatprep.subr.bf16.mxu0 0
        %1046 = vmatpush2.bf16.msra.mxu0 0
        %1047 = vmatprep.subr.bf16.mxu0 0
        %1048 = vmatpush2.bf16.msra.mxu0 0
        %1049 = vmatprep.subr.bf16.mxu0 0
        %1050 = vmatpush2.bf16.msra.mxu0 0
        %1051 = vmatprep.subr.bf16.mxu0 0
        %1052 = vmatpush2.bf16.msra.mxu0 0
        %1053 = vmatprep.subr.bf16.mxu0 0
        %1054 = vmatpush2.bf16.msra.mxu0 0
        %1055 = vmatprep.mubr.bf16.mxu0 0
        %1056 = vmatmul.mubr.bf16.gmra.mxu0 %v948
        %v1057 = vpop.f32.mrf.mxu0
        %v1058 = vadd.f32 %v973, %v1057
        %v1059 = vpop.f32.mrf.mxu0
        %v1060 = vpop.f32.mrf.mxu0
        %v1061 = vadd.f32 %v973, %v1060
        %v1062 = vpop.f32.mrf.mxu0
        %1063 = vmatprep.mubr.bf16.mxu0 0
        %1064 = vmatmul.mubr.bf16.gmra.mxu0 %v949
        %v1065 = vpop.f32.mrf.mxu0
        %v1066 = vadd.f32 %v973, %v1065
        %v1067 = vpop.f32.mrf.mxu0
        %v1068 = vpop.f32.mrf.mxu0
        %v1069 = vadd.f32 %v973, %v1068
        %v1070 = vpop.f32.mrf.mxu0
        %1071 = vmatprep.mubr.bf16.mxu0 0
        %1072 = vmatmul.mubr.bf16.gmra.mxu0 %v950
        %v1073 = vpop.f32.mrf.mxu0
        %v1074 = vadd.f32 %v973, %v1073
        %v1075 = vpop.f32.mrf.mxu0
        %v1076 = vpop.f32.mrf.mxu0
        %v1077 = vadd.f32 %v973, %v1076
        %v1078 = vpop.f32.mrf.mxu0
        %1079 = vmatprep.mubr.bf16.mxu0 0
        %1080 = vmatmul.mubr.bf16.gmra.mxu0 %v951
        %v1081 = vpop.f32.mrf.mxu0
        %v1082 = vadd.f32 %v973, %v1081
        %v1083 = vpop.f32.mrf.mxu0
        %v1084 = vpop.f32.mrf.mxu0
        %v1085 = vadd.f32 %v973, %v1084
        %v1086 = vpop.f32.mrf.mxu0
        %1087 = vdwg.mxu0
        %v1088 = vmax.f32 %v1058, 0.0
        %v1089 = vmax.f32 %v1061, 0.0
        %v1090 = vmax.f32 %v1066, 0.0
        %v1091 = vmax.f32 %v1069, 0.0
        %v1092 = vmax.f32 %v1074, 0.0
        %v1093 = vmax.f32 %v1077, 0.0
        %v1094 = vmax.f32 %v1082, 0.0
        %v1095 = vmax.f32 %v1085, 0.0
        %v1096 = vpack.c.bf16 %v1089, %v1088
        %v1097 = vpack.c.bf16 %v1091, %v1090
        %v1098 = vpack.c.bf16 %v1093, %v1092
        %v1099 = vpack.c.bf16 %v1095, %v1094
        %v1100 = vld [vmem:[#allocation4] sm:$0xf]
        %v1101 = vld [vmem:[#allocation4 + $0x4] sm:$0xf]
        %v1102 = vld [vmem:[#allocation4 + $0x8] sm:$0xf]
        %v1103 = vld [vmem:[#allocation4 + $0xc] sm:$0xf]
        %v1104 = vld [vmem:[#allocation4 + $0x10] sm:$0xf]
        %v1105 = vld [vmem:[#allocation4 + $0x14] sm:$0xf]
        %v1106 = vld [vmem:[#allocation4 + $0x18] sm:$0xf]
        %v1107 = vld [vmem:[#allocation4 + $0x1c] sm:$0xf]
        %v1108 = vld [vmem:[#allocation4 + $0x20] sm:$0xf]
        %v1109 = vld [vmem:[#allocation4 + $0x24] sm:$0xf]
        %v1110 = vld [vmem:[#allocation4 + $0x28] sm:$0xf]
        %v1111 = vld [vmem:[#allocation4 + $0x2c] sm:$0xf]
        %v1112 = vld [vmem:[#allocation4 + $0x30] sm:$0xf]
        %v1113 = vld [vmem:[#allocation4 + $0x34] sm:$0xf]
        %v1114 = vld [vmem:[#allocation4 + $0x38] sm:$0xf]
        %v1115 = vld [vmem:[#allocation4 + $0x3c] sm:$0xf]
        %v1116 = vld [vmem:[%s13] sm:$0x1]
        %v1118 = vlaneseq
        %v1119 = vshrl.u32 %v1118, 7
        %v1120 = vsub.s32 0, %v1119
        %v1121 = vrot.slane %v1116, %v1120
        %v1139 = vunpack.c.l.b16 %v1100
        %v1140 = vunpack.c.l.b16 %v1101
        %v1141 = vunpack.c.l.b16 %v1102
        %v1142 = vunpack.c.l.b16 %v1103
        %v1143 = vunpack.c.l.b16 %v1104
        %v1144 = vunpack.c.l.b16 %v1105
        %v1145 = vunpack.c.l.b16 %v1106
        %v1146 = vunpack.c.l.b16 %v1107
        %v1147 = vunpack.c.l.b16 %v1108
        %v1148 = vunpack.c.l.b16 %v1109
        %v1149 = vunpack.c.l.b16 %v1110
        %v1150 = vunpack.c.l.b16 %v1111
        %v1151 = vunpack.c.l.b16 %v1112
        %v1152 = vunpack.c.l.b16 %v1113
        %v1153 = vunpack.c.l.b16 %v1114
        %v1154 = vunpack.c.l.b16 %v1115
        %v1155 = vpack.c.b16 %v1140, %v1139
        %v1156 = vpack.c.b16 %v1142, %v1141
        %v1157 = vpack.c.b16 %v1144, %v1143
        %v1158 = vpack.c.b16 %v1146, %v1145
        %v1159 = vpack.c.b16 %v1148, %v1147
        %v1160 = vpack.c.b16 %v1150, %v1149
        %v1161 = vpack.c.b16 %v1152, %v1151
        %v1162 = vpack.c.b16 %v1154, %v1153
        %1171 = vmatprep.subr.bf16.mxu0 0
        %1172 = vmatpush1.bf16.msra.mxu0 %v1162
        %1173 = vmatprep.subr.bf16.mxu0 0
        %1174 = vmatpush1.bf16.msra.mxu0 %v1161
        %1175 = vmatprep.subr.bf16.mxu0 0
        %1176 = vmatpush1.bf16.msra.mxu0 %v1160
        %1177 = vmatprep.subr.bf16.mxu0 0
        %1178 = vmatpush1.bf16.msra.mxu0 %v1159
        %1179 = vmatprep.subr.bf16.mxu0 0
        %1180 = vmatpush1.bf16.msra.mxu0 %v1158
        %1181 = vmatprep.subr.bf16.mxu0 0
        %1182 = vmatpush1.bf16.msra.mxu0 %v1157
        %1183 = vmatprep.subr.bf16.mxu0 0
        %1184 = vmatpush1.bf16.msra.mxu0 %v1156
        %1185 = vmatprep.subr.bf16.mxu0 0
        %1186 = vmatpush1.bf16.msra.mxu0 %v1155
        %1187 = vmatprep.subr.bf16.mxu0 0
        %1188 = vmatpush2.bf16.msra.mxu0 0
        %1189 = vmatprep.subr.bf16.mxu0 0
        %1190 = vmatpush2.bf16.msra.mxu0 0
        %1191 = vmatprep.subr.bf16.mxu0 0
        %1192 = vmatpush2.bf16.msra.mxu0 0
        %1193 = vmatprep.subr.bf16.mxu0 0
        %1194 = vmatpush2.bf16.msra.mxu0 0
        %1195 = vmatprep.subr.bf16.mxu0 0
        %1196 = vmatpush2.bf16.msra.mxu0 0
        %1197 = vmatprep.subr.bf16.mxu0 0
        %1198 = vmatpush2.bf16.msra.mxu0 0
        %1199 = vmatprep.subr.bf16.mxu0 0
        %1200 = vmatpush2.bf16.msra.mxu0 0
        %1201 = vmatprep.subr.bf16.mxu0 0
        %1202 = vmatpush2.bf16.msra.mxu0 0
        %1203 = vmatprep.mubr.bf16.mxu0 0
        %1204 = vmatmul.mubr.bf16.gmra.mxu0 %v1096
        %v1205 = vpop.f32.mrf.mxu0
        %v1206 = vadd.f32 %v1121, %v1205
        %v1207 = vpop.f32.mrf.mxu0
        %v1208 = vpop.f32.mrf.mxu0
        %v1209 = vadd.f32 %v1121, %v1208
        %v1210 = vpop.f32.mrf.mxu0
        %1211 = vmatprep.mubr.bf16.mxu0 0
        %1212 = vmatmul.mubr.bf16.gmra.mxu0 %v1097
        %v1213 = vpop.f32.mrf.mxu0
        %v1214 = vadd.f32 %v1121, %v1213
        %v1215 = vpop.f32.mrf.mxu0
        %v1216 = vpop.f32.mrf.mxu0
        %v1217 = vadd.f32 %v1121, %v1216
        %v1218 = vpop.f32.mrf.mxu0
        %1219 = vmatprep.mubr.bf16.mxu0 0
        %1220 = vmatmul.mubr.bf16.gmra.mxu0 %v1098
        %v1221 = vpop.f32.mrf.mxu0
        %v1222 = vadd.f32 %v1121, %v1221
        %v1223 = vpop.f32.mrf.mxu0
        %v1224 = vpop.f32.mrf.mxu0
        %v1225 = vadd.f32 %v1121, %v1224
        %v1226 = vpop.f32.mrf.mxu0
        %1227 = vmatprep.mubr.bf16.mxu0 0
        %1228 = vmatmul.mubr.bf16.gmra.mxu0 %v1099
        %v1229 = vpop.f32.mrf.mxu0
        %v1230 = vadd.f32 %v1121, %v1229
        %v1231 = vpop.f32.mrf.mxu0
        %v1232 = vpop.f32.mrf.mxu0
        %v1233 = vadd.f32 %v1121, %v1232
        %v1234 = vpop.f32.mrf.mxu0
        %1235 = vdwg.mxu0
        %v1236 = vmax.f32 %v1206, 0.0
        %v1237 = vmax.f32 %v1209, 0.0
        %v1238 = vmax.f32 %v1214, 0.0
        %v1239 = vmax.f32 %v1217, 0.0
        %v1240 = vmax.f32 %v1222, 0.0
        %v1241 = vmax.f32 %v1225, 0.0
        %v1242 = vmax.f32 %v1230, 0.0
        %v1243 = vmax.f32 %v1233, 0.0
        %v1244 = vpack.c.bf16 %v1237, %v1236
        %v1245 = vpack.c.bf16 %v1239, %v1238
        %v1246 = vpack.c.bf16 %v1241, %v1240
        %v1247 = vpack.c.bf16 %v1243, %v1242
        %v1248 = vld [vmem:[#allocation6] sm:$0xff]
        %v1249 = vld [vmem:[#allocation6 + $0x8] sm:$0xff]
        %v1250 = vld [vmem:[#allocation6 + $0x10] sm:$0xff]
        %v1251 = vld [vmem:[#allocation6 + $0x18] sm:$0xff]
        %v1252 = vld [vmem:[#allocation6 + $0x20] sm:$0xff]
        %v1253 = vld [vmem:[#allocation6 + $0x28] sm:$0xff]
        %v1254 = vld [vmem:[#allocation6 + $0x30] sm:$0xff]
        %v1255 = vld [vmem:[#allocation6 + $0x38] sm:$0xff]
        %v1256 = vld [vmem:[#allocation6 + $0x40] sm:$0xff]
        %v1257 = vld [vmem:[#allocation6 + $0x48] sm:$0xff]
        %v1258 = vld [vmem:[#allocation6 + $0x50] sm:$0xff]
        %v1259 = vld [vmem:[#allocation6 + $0x58] sm:$0xff]
        %v1260 = vld [vmem:[#allocation6 + $0x60] sm:$0xff]
        %v1261 = vld [vmem:[#allocation6 + $0x68] sm:$0xff]
        %v1262 = vld [vmem:[#allocation6 + $0x70] sm:$0xff]
        %v1263 = vld [vmem:[#allocation6 + $0x78] sm:$0xff]
        %v1264 = vld [vmem:[%s14] sm:$0x3]
        %v1266 = vlaneseq
        %v1267 = vshrl.u32 %v1266, 7
        %v1268 = vsub.s32 0, %v1267
        %v1269 = vrot.slane %v1264, %v1268
        %v1270 = vlaneseq
        %v1271 = vshrl.u32 %v1270, 7
        %v1272 = vsub.s32 1, %v1271
        %v1273 = vrot.slane %v1264, %v1272
        %v1292 = vunpack.c.l.b16 %v1248
        %v1293 = vunpack.c.h.b16 %v1248
        %v1294 = vunpack.c.l.b16 %v1249
        %v1295 = vunpack.c.h.b16 %v1249
        %v1296 = vunpack.c.l.b16 %v1250
        %v1297 = vunpack.c.h.b16 %v1250
        %v1298 = vunpack.c.l.b16 %v1251
        %v1299 = vunpack.c.h.b16 %v1251
        %v1300 = vunpack.c.l.b16 %v1252
        %v1301 = vunpack.c.h.b16 %v1252
        %v1302 = vunpack.c.l.b16 %v1253
        %v1303 = vunpack.c.h.b16 %v1253
        %v1304 = vunpack.c.l.b16 %v1254
        %v1305 = vunpack.c.h.b16 %v1254
        %v1306 = vunpack.c.l.b16 %v1255
        %v1307 = vunpack.c.h.b16 %v1255
        %v1308 = vunpack.c.l.b16 %v1256
        %v1309 = vunpack.c.h.b16 %v1256
        %v1310 = vunpack.c.l.b16 %v1257
        %v1311 = vunpack.c.h.b16 %v1257
        %v1312 = vunpack.c.l.b16 %v1258
        %v1313 = vunpack.c.h.b16 %v1258
        %v1314 = vunpack.c.l.b16 %v1259
        %v1315 = vunpack.c.h.b16 %v1259
        %v1316 = vunpack.c.l.b16 %v1260
        %v1317 = vunpack.c.h.b16 %v1260
        %v1318 = vunpack.c.l.b16 %v1261
        %v1319 = vunpack.c.h.b16 %v1261
        %v1320 = vunpack.c.l.b16 %v1262
        %v1321 = vunpack.c.h.b16 %v1262
        %v1322 = vunpack.c.l.b16 %v1263
        %v1323 = vunpack.c.h.b16 %v1263
        %v1324 = vpack.c.b16 %v1294, %v1292
        %v1325 = vpack.c.b16 %v1295, %v1293
        %v1326 = vpack.c.b16 %v1298, %v1296
        %v1327 = vpack.c.b16 %v1299, %v1297
        %v1328 = vpack.c.b16 %v1302, %v1300
        %v1329 = vpack.c.b16 %v1303, %v1301
        %v1330 = vpack.c.b16 %v1306, %v1304
        %v1331 = vpack.c.b16 %v1307, %v1305
        %v1332 = vpack.c.b16 %v1310, %v1308
        %v1333 = vpack.c.b16 %v1311, %v1309
        %v1334 = vpack.c.b16 %v1314, %v1312
        %v1335 = vpack.c.b16 %v1315, %v1313
        %v1336 = vpack.c.b16 %v1318, %v1316
        %v1337 = vpack.c.b16 %v1319, %v1317
        %v1338 = vpack.c.b16 %v1322, %v1320
        %v1339 = vpack.c.b16 %v1323, %v1321
        %1356 = vmatprep.subr.bf16.mxu0 %v1339
        %1357 = vmatpush1.bf16.msra.mxu0 %v1338
        %1358 = vmatprep.subr.bf16.mxu0 %v1337
        %1359 = vmatpush1.bf16.msra.mxu0 %v1336
        %1360 = vmatprep.subr.bf16.mxu0 %v1335
        %1361 = vmatpush1.bf16.msra.mxu0 %v1334
        %1362 = vmatprep.subr.bf16.mxu0 %v1333
        %1363 = vmatpush1.bf16.msra.mxu0 %v1332
        %1364 = vmatprep.subr.bf16.mxu0 %v1331
        %1365 = vmatpush1.bf16.msra.mxu0 %v1330
        %1366 = vmatprep.subr.bf16.mxu0 %v1329
        %1367 = vmatpush1.bf16.msra.mxu0 %v1328
        %1368 = vmatprep.subr.bf16.mxu0 %v1327
        %1369 = vmatpush1.bf16.msra.mxu0 %v1326
        %1370 = vmatprep.subr.bf16.mxu0 %v1325
        %1371 = vmatpush1.bf16.msra.mxu0 %v1324
        %1372 = vmatprep.subr.bf16.mxu0 0
        %1373 = vmatpush2.bf16.msra.mxu0 0
        %1374 = vmatprep.subr.bf16.mxu0 0
        %1375 = vmatpush2.bf16.msra.mxu0 0
        %1376 = vmatprep.subr.bf16.mxu0 0
        %1377 = vmatpush2.bf16.msra.mxu0 0
        %1378 = vmatprep.subr.bf16.mxu0 0
        %1379 = vmatpush2.bf16.msra.mxu0 0
        %1380 = vmatprep.subr.bf16.mxu0 0
        %1381 = vmatpush2.bf16.msra.mxu0 0
        %1382 = vmatprep.subr.bf16.mxu0 0
        %1383 = vmatpush2.bf16.msra.mxu0 0
        %1384 = vmatprep.subr.bf16.mxu0 0
        %1385 = vmatpush2.bf16.msra.mxu0 0
        %1386 = vmatprep.subr.bf16.mxu0 0
        %1387 = vmatpush2.bf16.msra.mxu0 0
        %1388 = vmatprep.mubr.bf16.mxu0 0
        %1389 = vmatmul.mubr.bf16.gmra.mxu0 %v1244
        %v1390 = vpop.f32.mrf.mxu0
        %v1391 = vadd.f32 %v1269, %v1390
        %v1392 = vpop.f32.mrf.mxu0
        %v1393 = vadd.f32 %v1273, %v1392
        %v1394 = vpop.f32.mrf.mxu0
        %v1395 = vadd.f32 %v1269, %v1394
        %v1396 = vpop.f32.mrf.mxu0
        %v1397 = vadd.f32 %v1273, %v1396
        %1398 = vmatprep.mubr.bf16.mxu0 0
        %1399 = vmatmul.mubr.bf16.gmra.mxu0 %v1245
        %v1400 = vpop.f32.mrf.mxu0
        %v1401 = vadd.f32 %v1269, %v1400
        %v1402 = vpop.f32.mrf.mxu0
        %v1403 = vadd.f32 %v1273, %v1402
        %v1404 = vpop.f32.mrf.mxu0
        %v1405 = vadd.f32 %v1269, %v1404
        %v1406 = vpop.f32.mrf.mxu0
        %v1407 = vadd.f32 %v1273, %v1406
        %1408 = vmatprep.mubr.bf16.mxu0 0
        %1409 = vmatmul.mubr.bf16.gmra.mxu0 %v1246
        %v1410 = vpop.f32.mrf.mxu0
        %v1411 = vadd.f32 %v1269, %v1410
        %v1412 = vpop.f32.mrf.mxu0
        %v1413 = vadd.f32 %v1273, %v1412
        %v1414 = vpop.f32.mrf.mxu0
        %v1415 = vadd.f32 %v1269, %v1414
        %v1416 = vpop.f32.mrf.mxu0
        %v1417 = vadd.f32 %v1273, %v1416
        %1418 = vmatprep.mubr.bf16.mxu0 0
        %1419 = vmatmul.mubr.bf16.gmra.mxu0 %v1247
        %v1420 = vpop.f32.mrf.mxu0
        %v1421 = vadd.f32 %v1269, %v1420
        %v1422 = vpop.f32.mrf.mxu0
        %v1423 = vadd.f32 %v1273, %v1422
        %v1424 = vpop.f32.mrf.mxu0
        %v1425 = vadd.f32 %v1269, %v1424
        %v1426 = vpop.f32.mrf.mxu0
        %v1427 = vadd.f32 %v1273, %v1426
        %1428 = vdwg.mxu0
        %v1429 = vmax.f32 %v1391, 0.0
        %v1430 = vmax.f32 %v1393, 0.0
        %v1431 = vmax.f32 %v1395, 0.0
        %v1432 = vmax.f32 %v1397, 0.0
        %v1433 = vmax.f32 %v1401, 0.0
        %v1434 = vmax.f32 %v1403, 0.0
        %v1435 = vmax.f32 %v1405, 0.0
        %v1436 = vmax.f32 %v1407, 0.0
        %v1437 = vmax.f32 %v1411, 0.0
        %v1438 = vmax.f32 %v1413, 0.0
        %v1439 = vmax.f32 %v1415, 0.0
        %v1440 = vmax.f32 %v1417, 0.0
        %v1441 = vmax.f32 %v1421, 0.0
        %v1442 = vmax.f32 %v1423, 0.0
        %v1443 = vmax.f32 %v1425, 0.0
        %v1444 = vmax.f32 %v1427, 0.0
        %v1445 = vpack.c.bf16 %v1431, %v1429
        %v1446 = vpack.c.bf16 %v1432, %v1430
        %v1447 = vpack.c.bf16 %v1435, %v1433
        %v1448 = vpack.c.bf16 %v1436, %v1434
        %v1449 = vpack.c.bf16 %v1439, %v1437
        %v1450 = vpack.c.bf16 %v1440, %v1438
        %v1451 = vpack.c.bf16 %v1443, %v1441
        %v1452 = vpack.c.bf16 %v1444, %v1442
        %v1453 = vld [vmem:[%s6] sm:$0xff]
        %v1454 = vld [vmem:[%s6 + $0x8] sm:$0xff]
        %v1455 = vld [vmem:[%s6 + $0x10] sm:$0xff]
        %v1456 = vld [vmem:[%s6 + $0x18] sm:$0xff]
        %v1457 = vld [vmem:[%s6 + $0x20] sm:$0xff]
        %v1458 = vld [vmem:[%s6 + $0x28] sm:$0xff]
        %v1459 = vld [vmem:[%s6 + $0x30] sm:$0xff]
        %v1460 = vld [vmem:[%s6 + $0x38] sm:$0xff]
        %v1461 = vld [vmem:[%s6 + $0x40] sm:$0xff]
        %v1462 = vld [vmem:[%s6 + $0x48] sm:$0xff]
        %v1463 = vld [vmem:[%s6 + $0x50] sm:$0xff]
        %v1464 = vld [vmem:[%s6 + $0x58] sm:$0xff]
        %v1465 = vld [vmem:[%s6 + $0x60] sm:$0xff]
        %v1466 = vld [vmem:[%s6 + $0x68] sm:$0xff]
        %v1467 = vld [vmem:[%s6 + $0x70] sm:$0xff]
        %v1468 = vld [vmem:[%s6 + $0x78] sm:$0xff]
        %v1469 = vld [vmem:[%s6 + $0x80] sm:$0xff]
        %v1470 = vld [vmem:[%s6 + $0x88] sm:$0xff]
        %v1471 = vld [vmem:[%s6 + $0x90] sm:$0xff]
        %v1472 = vld [vmem:[%s6 + $0x98] sm:$0xff]
        %v1473 = vld [vmem:[%s6 + $0xa0] sm:$0xff]
        %v1474 = vld [vmem:[%s6 + $0xa8] sm:$0xff]
        %v1475 = vld [vmem:[%s6 + $0xb0] sm:$0xff]
        %v1476 = vld [vmem:[%s6 + $0xb8] sm:$0xff]
        %v1477 = vld [vmem:[%s6 + $0xc0] sm:$0xff]
        %v1478 = vld [vmem:[%s6 + $0xc8] sm:$0xff]
        %v1479 = vld [vmem:[%s6 + $0xd0] sm:$0xff]
        %v1480 = vld [vmem:[%s6 + $0xd8] sm:$0xff]
        %v1481 = vld [vmem:[%s6 + $0xe0] sm:$0xff]
        %v1482 = vld [vmem:[%s6 + $0xe8] sm:$0xff]
        %v1483 = vld [vmem:[%s6 + $0xf0] sm:$0xff]
        %v1484 = vld [vmem:[%s6 + $0xf8] sm:$0xff]
        %v1485 = vld [vmem:[%s15] sm:$0x3]
        %v1487 = vlaneseq
        %v1488 = vshrl.u32 %v1487, 7
        %v1489 = vsub.s32 0, %v1488
        %v1490 = vrot.slane %v1485, %v1489
        %v1491 = vlaneseq
        %v1492 = vshrl.u32 %v1491, 7
        %v1493 = vsub.s32 1, %v1492
        %v1494 = vrot.slane %v1485, %v1493
        %v1529 = vunpack.c.l.b16 %v1453
        %v1530 = vunpack.c.h.b16 %v1453
        %v1531 = vunpack.c.l.b16 %v1454
        %v1532 = vunpack.c.h.b16 %v1454
        %v1533 = vunpack.c.l.b16 %v1455
        %v1534 = vunpack.c.h.b16 %v1455
        %v1535 = vunpack.c.l.b16 %v1456
        %v1536 = vunpack.c.h.b16 %v1456
        %v1537 = vunpack.c.l.b16 %v1457
        %v1538 = vunpack.c.h.b16 %v1457
        %v1539 = vunpack.c.l.b16 %v1458
        %v1540 = vunpack.c.h.b16 %v1458
        %v1541 = vunpack.c.l.b16 %v1459
        %v1542 = vunpack.c.h.b16 %v1459
        %v1543 = vunpack.c.l.b16 %v1460
        %v1544 = vunpack.c.h.b16 %v1460
        %v1545 = vunpack.c.l.b16 %v1461
        %v1546 = vunpack.c.h.b16 %v1461
        %v1547 = vunpack.c.l.b16 %v1462
        %v1548 = vunpack.c.h.b16 %v1462
        %v1549 = vunpack.c.l.b16 %v1463
        %v1550 = vunpack.c.h.b16 %v1463
        %v1551 = vunpack.c.l.b16 %v1464
        %v1552 = vunpack.c.h.b16 %v1464
        %v1553 = vunpack.c.l.b16 %v1465
        %v1554 = vunpack.c.h.b16 %v1465
        %v1555 = vunpack.c.l.b16 %v1466
        %v1556 = vunpack.c.h.b16 %v1466
        %v1557 = vunpack.c.l.b16 %v1467
        %v1558 = vunpack.c.h.b16 %v1467
        %v1559 = vunpack.c.l.b16 %v1468
        %v1560 = vunpack.c.h.b16 %v1468
        %v1561 = vunpack.c.l.b16 %v1469
        %v1562 = vunpack.c.h.b16 %v1469
        %v1563 = vunpack.c.l.b16 %v1470
        %v1564 = vunpack.c.h.b16 %v1470
        %v1565 = vunpack.c.l.b16 %v1471
        %v1566 = vunpack.c.h.b16 %v1471
        %v1567 = vunpack.c.l.b16 %v1472
        %v1568 = vunpack.c.h.b16 %v1472
        %v1569 = vunpack.c.l.b16 %v1473
        %v1570 = vunpack.c.h.b16 %v1473
        %v1571 = vunpack.c.l.b16 %v1474
        %v1572 = vunpack.c.h.b16 %v1474
        %v1573 = vunpack.c.l.b16 %v1475
        %v1574 = vunpack.c.h.b16 %v1475
        %v1575 = vunpack.c.l.b16 %v1476
        %v1576 = vunpack.c.h.b16 %v1476
        %v1577 = vunpack.c.l.b16 %v1477
        %v1578 = vunpack.c.h.b16 %v1477
        %v1579 = vunpack.c.l.b16 %v1478
        %v1580 = vunpack.c.h.b16 %v1478
        %v1581 = vunpack.c.l.b16 %v1479
        %v1582 = vunpack.c.h.b16 %v1479
        %v1583 = vunpack.c.l.b16 %v1480
        %v1584 = vunpack.c.h.b16 %v1480
        %v1585 = vunpack.c.l.b16 %v1481
        %v1586 = vunpack.c.h.b16 %v1481
        %v1587 = vunpack.c.l.b16 %v1482
        %v1588 = vunpack.c.h.b16 %v1482
        %v1589 = vunpack.c.l.b16 %v1483
        %v1590 = vunpack.c.h.b16 %v1483
        %v1591 = vunpack.c.l.b16 %v1484
        %v1592 = vunpack.c.h.b16 %v1484
        %v1593 = vpack.c.b16 %v1531, %v1529
        %v1594 = vpack.c.b16 %v1532, %v1530
        %v1595 = vpack.c.b16 %v1535, %v1533
        %v1596 = vpack.c.b16 %v1536, %v1534
        %v1597 = vpack.c.b16 %v1539, %v1537
        %v1598 = vpack.c.b16 %v1540, %v1538
        %v1599 = vpack.c.b16 %v1543, %v1541
        %v1600 = vpack.c.b16 %v1544, %v1542
        %v1601 = vpack.c.b16 %v1547, %v1545
        %v1602 = vpack.c.b16 %v1548, %v1546
        %v1603 = vpack.c.b16 %v1551, %v1549
        %v1604 = vpack.c.b16 %v1552, %v1550
        %v1605 = vpack.c.b16 %v1555, %v1553
        %v1606 = vpack.c.b16 %v1556, %v1554
        %v1607 = vpack.c.b16 %v1559, %v1557
        %v1608 = vpack.c.b16 %v1560, %v1558
        %v1609 = vpack.c.b16 %v1563, %v1561
        %v1610 = vpack.c.b16 %v1564, %v1562
        %v1611 = vpack.c.b16 %v1567, %v1565
        %v1612 = vpack.c.b16 %v1568, %v1566
        %v1613 = vpack.c.b16 %v1571, %v1569
        %v1614 = vpack.c.b16 %v1572, %v1570
        %v1615 = vpack.c.b16 %v1575, %v1573
        %v1616 = vpack.c.b16 %v1576, %v1574
        %v1617 = vpack.c.b16 %v1579, %v1577
        %v1618 = vpack.c.b16 %v1580, %v1578
        %v1619 = vpack.c.b16 %v1583, %v1581
        %v1620 = vpack.c.b16 %v1584, %v1582
        %v1621 = vpack.c.b16 %v1587, %v1585
        %v1622 = vpack.c.b16 %v1588, %v1586
        %v1623 = vpack.c.b16 %v1591, %v1589
        %v1624 = vpack.c.b16 %v1592, %v1590
        %1657 = vmatprep.subr.bf16.mxu0 %v1608
        %1658 = vmatpush1.bf16.msra.mxu0 %v1607
        %1659 = vmatprep.subr.bf16.mxu0 %v1606
        %1660 = vmatpush1.bf16.msra.mxu0 %v1605
        %1661 = vmatprep.subr.bf16.mxu0 %v1604
        %1662 = vmatpush1.bf16.msra.mxu0 %v1603
        %1663 = vmatprep.subr.bf16.mxu0 %v1602
        %1664 = vmatpush1.bf16.msra.mxu0 %v1601
        %1665 = vmatprep.subr.bf16.mxu0 %v1600
        %1666 = vmatpush1.bf16.msra.mxu0 %v1599
        %1667 = vmatprep.subr.bf16.mxu0 %v1598
        %1668 = vmatpush1.bf16.msra.mxu0 %v1597
        %1669 = vmatprep.subr.bf16.mxu0 %v1596
        %1670 = vmatpush1.bf16.msra.mxu0 %v1595
        %1671 = vmatprep.subr.bf16.mxu0 %v1594
        %1672 = vmatpush1.bf16.msra.mxu0 %v1593
        %1673 = vmatprep.subr.bf16.mxu0 %v1624
        %1674 = vmatpush2.bf16.msra.mxu0 %v1623
        %1675 = vmatprep.subr.bf16.mxu0 %v1622
        %1676 = vmatpush2.bf16.msra.mxu0 %v1621
        %1677 = vmatprep.subr.bf16.mxu0 %v1620
        %1678 = vmatpush2.bf16.msra.mxu0 %v1619
        %1679 = vmatprep.subr.bf16.mxu0 %v1618
        %1680 = vmatpush2.bf16.msra.mxu0 %v1617
        %1681 = vmatprep.subr.bf16.mxu0 %v1616
        %1682 = vmatpush2.bf16.msra.mxu0 %v1615
        %1683 = vmatprep.subr.bf16.mxu0 %v1614
        %1684 = vmatpush2.bf16.msra.mxu0 %v1613
        %1685 = vmatprep.subr.bf16.mxu0 %v1612
        %1686 = vmatpush2.bf16.msra.mxu0 %v1611
        %1687 = vmatprep.subr.bf16.mxu0 %v1610
        %1688 = vmatpush2.bf16.msra.mxu0 %v1609
        %1689 = vmatprep.mubr.bf16.mxu0 %v1446
        %1690 = vmatmul.mubr.bf16.gmra.mxu0 %v1445
        %v1691 = vpop.f32.mrf.mxu0
        %v1692 = vadd.f32 %v1490, %v1691
        %v1693 = vpop.f32.mrf.mxu0
        %v1694 = vadd.f32 %v1494, %v1693
        %v1695 = vpop.f32.mrf.mxu0
        %v1696 = vadd.f32 %v1490, %v1695
        %v1697 = vpop.f32.mrf.mxu0
        %v1698 = vadd.f32 %v1494, %v1697
        %1699 = vmatprep.mubr.bf16.mxu0 %v1448
        %1700 = vmatmul.mubr.bf16.gmra.mxu0 %v1447
        %v1701 = vpop.f32.mrf.mxu0
        %v1702 = vadd.f32 %v1490, %v1701
        %v1703 = vpop.f32.mrf.mxu0
        %v1704 = vadd.f32 %v1494, %v1703
        %v1705 = vpop.f32.mrf.mxu0
        %v1706 = vadd.f32 %v1490, %v1705
        %v1707 = vpop.f32.mrf.mxu0
        %v1708 = vadd.f32 %v1494, %v1707
        %1709 = vmatprep.mubr.bf16.mxu0 %v1450
        %1710 = vmatmul.mubr.bf16.gmra.mxu0 %v1449
        %v1711 = vpop.f32.mrf.mxu0
        %v1712 = vadd.f32 %v1490, %v1711
        %v1713 = vpop.f32.mrf.mxu0
        %v1714 = vadd.f32 %v1494, %v1713
        %v1715 = vpop.f32.mrf.mxu0
        %v1716 = vadd.f32 %v1490, %v1715
        %v1717 = vpop.f32.mrf.mxu0
        %v1718 = vadd.f32 %v1494, %v1717
        %1719 = vmatprep.mubr.bf16.mxu0 %v1452
        %1720 = vmatmul.mubr.bf16.gmra.mxu0 %v1451
        %v1721 = vpop.f32.mrf.mxu0
        %v1722 = vadd.f32 %v1490, %v1721
        %v1723 = vpop.f32.mrf.mxu0
        %v1724 = vadd.f32 %v1494, %v1723
        %v1725 = vpop.f32.mrf.mxu0
        %v1726 = vadd.f32 %v1490, %v1725
        %v1727 = vpop.f32.mrf.mxu0
        %v1728 = vadd.f32 %v1494, %v1727
        %1729 = vdwg.mxu0
        %v1730 = vmax.f32 %v1692, 0.0
        %v1731 = vmax.f32 %v1694, 0.0
        %v1732 = vmax.f32 %v1696, 0.0
        %v1733 = vmax.f32 %v1698, 0.0
        %v1734 = vmax.f32 %v1702, 0.0
        %v1735 = vmax.f32 %v1704, 0.0
        %v1736 = vmax.f32 %v1706, 0.0
        %v1737 = vmax.f32 %v1708, 0.0
        %v1738 = vmax.f32 %v1712, 0.0
        %v1739 = vmax.f32 %v1714, 0.0
        %v1740 = vmax.f32 %v1716, 0.0
        %v1741 = vmax.f32 %v1718, 0.0
        %v1742 = vmax.f32 %v1722, 0.0
        %v1743 = vmax.f32 %v1724, 0.0
        %v1744 = vmax.f32 %v1726, 0.0
        %v1745 = vmax.f32 %v1728, 0.0
        %v1746 = vpack.c.bf16 %v1732, %v1730
        %v1747 = vpack.c.bf16 %v1733, %v1731
        %v1748 = vpack.c.bf16 %v1736, %v1734
        %v1749 = vpack.c.bf16 %v1737, %v1735
        %v1750 = vpack.c.bf16 %v1740, %v1738
        %v1751 = vpack.c.bf16 %v1741, %v1739
        %v1752 = vpack.c.bf16 %v1744, %v1742
        %v1753 = vpack.c.bf16 %v1745, %v1743
        %v1754 = vld [vmem:[%s7] sm:$0xff]
        %v1755 = vld [vmem:[%s7 + $0x8] sm:$0xff]
        %v1756 = vld [vmem:[%s7 + $0x10] sm:$0xff]
        %v1757 = vld [vmem:[%s7 + $0x18] sm:$0xff]
        %v1758 = vld [vmem:[%s7 + $0x20] sm:$0xff]
        %v1759 = vld [vmem:[%s7 + $0x28] sm:$0xff]
        %v1760 = vld [vmem:[%s7 + $0x30] sm:$0xff]
        %v1761 = vld [vmem:[%s7 + $0x38] sm:$0xff]
        %v1762 = vld [vmem:[%s7 + $0x40] sm:$0xff]
        %v1763 = vld [vmem:[%s7 + $0x48] sm:$0xff]
        %v1764 = vld [vmem:[%s7 + $0x50] sm:$0xff]
        %v1765 = vld [vmem:[%s7 + $0x58] sm:$0xff]
        %v1766 = vld [vmem:[%s7 + $0x60] sm:$0xff]
        %v1767 = vld [vmem:[%s7 + $0x68] sm:$0xff]
        %v1768 = vld [vmem:[%s7 + $0x70] sm:$0xff]
        %v1769 = vld [vmem:[%s7 + $0x78] sm:$0xff]
        %v1770 = vld [vmem:[%s7 + $0x80] sm:$0xff]
        %v1771 = vld [vmem:[%s7 + $0x88] sm:$0xff]
        %v1772 = vld [vmem:[%s7 + $0x90] sm:$0xff]
        %v1773 = vld [vmem:[%s7 + $0x98] sm:$0xff]
        %v1774 = vld [vmem:[%s7 + $0xa0] sm:$0xff]
        %v1775 = vld [vmem:[%s7 + $0xa8] sm:$0xff]
        %v1776 = vld [vmem:[%s7 + $0xb0] sm:$0xff]
        %v1777 = vld [vmem:[%s7 + $0xb8] sm:$0xff]
        %v1778 = vld [vmem:[%s7 + $0xc0] sm:$0xff]
        %v1779 = vld [vmem:[%s7 + $0xc8] sm:$0xff]
        %v1780 = vld [vmem:[%s7 + $0xd0] sm:$0xff]
        %v1781 = vld [vmem:[%s7 + $0xd8] sm:$0xff]
        %v1782 = vld [vmem:[%s7 + $0xe0] sm:$0xff]
        %v1783 = vld [vmem:[%s7 + $0xe8] sm:$0xff]
        %v1784 = vld [vmem:[%s7 + $0xf0] sm:$0xff]
        %v1785 = vld [vmem:[%s7 + $0xf8] sm:$0xff]
        %v1786 = vld [vmem:[%s7 + $0x100] sm:$0xff]
        %v1787 = vld [vmem:[%s7 + $0x108] sm:$0xff]
        %v1788 = vld [vmem:[%s7 + $0x110] sm:$0xff]
        %v1789 = vld [vmem:[%s7 + $0x118] sm:$0xff]
        %v1790 = vld [vmem:[%s7 + $0x120] sm:$0xff]
        %v1791 = vld [vmem:[%s7 + $0x128] sm:$0xff]
        %v1792 = vld [vmem:[%s7 + $0x130] sm:$0xff]
        %v1793 = vld [vmem:[%s7 + $0x138] sm:$0xff]
        %v1794 = vld [vmem:[%s7 + $0x140] sm:$0xff]
        %v1795 = vld [vmem:[%s7 + $0x148] sm:$0xff]
        %v1796 = vld [vmem:[%s7 + $0x150] sm:$0xff]
        %v1797 = vld [vmem:[%s7 + $0x158] sm:$0xff]
        %v1798 = vld [vmem:[%s7 + $0x160] sm:$0xff]
        %v1799 = vld [vmem:[%s7 + $0x168] sm:$0xff]
        %v1800 = vld [vmem:[%s7 + $0x170] sm:$0xff]
        %v1801 = vld [vmem:[%s7 + $0x178] sm:$0xff]
        %v1802 = vld [vmem:[%s7 + $0x180] sm:$0xff]
        %v1803 = vld [vmem:[%s7 + $0x188] sm:$0xff]
        %v1804 = vld [vmem:[%s7 + $0x190] sm:$0xff]
        %v1805 = vld [vmem:[%s7 + $0x198] sm:$0xff]
        %v1806 = vld [vmem:[%s7 + $0x1a0] sm:$0xff]
        %v1807 = vld [vmem:[%s7 + $0x1a8] sm:$0xff]
        %v1808 = vld [vmem:[%s7 + $0x1b0] sm:$0xff]
        %v1809 = vld [vmem:[%s7 + $0x1b8] sm:$0xff]
        %v1810 = vld [vmem:[%s7 + $0x1c0] sm:$0xff]
        %v1811 = vld [vmem:[%s7 + $0x1c8] sm:$0xff]
        %v1812 = vld [vmem:[%s7 + $0x1d0] sm:$0xff]
        %v1813 = vld [vmem:[%s7 + $0x1d8] sm:$0xff]
        %v1814 = vld [vmem:[%s7 + $0x1e0] sm:$0xff]
        %v1815 = vld [vmem:[%s7 + $0x1e8] sm:$0xff]
        %v1816 = vld [vmem:[%s7 + $0x1f0] sm:$0xff]
        %v1817 = vld [vmem:[%s7 + $0x1f8] sm:$0xff]
        %v1818 = vld [vmem:[%s16] sm:$0xf]
        %v1820 = vlaneseq
        %v1821 = vshrl.u32 %v1820, 7
        %v1822 = vsub.s32 0, %v1821
        %v1823 = vrot.slane %v1818, %v1822
        %v1824 = vlaneseq
        %v1825 = vshrl.u32 %v1824, 7
        %v1826 = vsub.s32 1, %v1825
        %v1827 = vrot.slane %v1818, %v1826
        %v1828 = vlaneseq
        %v1829 = vshrl.u32 %v1828, 7
        %v1830 = vsub.s32 2, %v1829
        %v1831 = vrot.slane %v1818, %v1830
        %v1832 = vlaneseq
        %v1833 = vshrl.u32 %v1832, 7
        %v1834 = vsub.s32 3, %v1833
        %v1835 = vrot.slane %v1818, %v1834
        %v1904 = vunpack.c.l.b16 %v1754
        %v1905 = vunpack.c.h.b16 %v1754
        %v1906 = vunpack.c.l.b16 %v1755
        %v1907 = vunpack.c.h.b16 %v1755
        %v1908 = vunpack.c.l.b16 %v1756
        %v1909 = vunpack.c.h.b16 %v1756
        %v1910 = vunpack.c.l.b16 %v1757
        %v1911 = vunpack.c.h.b16 %v1757
        %v1912 = vunpack.c.l.b16 %v1758
        %v1913 = vunpack.c.h.b16 %v1758
        %v1914 = vunpack.c.l.b16 %v1759
        %v1915 = vunpack.c.h.b16 %v1759
        %v1916 = vunpack.c.l.b16 %v1760
        %v1917 = vunpack.c.h.b16 %v1760
        %v1918 = vunpack.c.l.b16 %v1761
        %v1919 = vunpack.c.h.b16 %v1761
        %v1920 = vunpack.c.l.b16 %v1762
        %v1921 = vunpack.c.h.b16 %v1762
        %v1922 = vunpack.c.l.b16 %v1763
        %v1923 = vunpack.c.h.b16 %v1763
        %v1924 = vunpack.c.l.b16 %v1764
        %v1925 = vunpack.c.h.b16 %v1764
        %v1926 = vunpack.c.l.b16 %v1765
        %v1927 = vunpack.c.h.b16 %v1765
        %v1928 = vunpack.c.l.b16 %v1766
        %v1929 = vunpack.c.h.b16 %v1766
        %v1930 = vunpack.c.l.b16 %v1767
        %v1931 = vunpack.c.h.b16 %v1767
        %v1932 = vunpack.c.l.b16 %v1768
        %v1933 = vunpack.c.h.b16 %v1768
        %v1934 = vunpack.c.l.b16 %v1769
        %v1935 = vunpack.c.h.b16 %v1769
        %v1936 = vunpack.c.l.b16 %v1770
        %v1937 = vunpack.c.h.b16 %v1770
        %v1938 = vunpack.c.l.b16 %v1771
        %v1939 = vunpack.c.h.b16 %v1771
        %v1940 = vunpack.c.l.b16 %v1772
        %v1941 = vunpack.c.h.b16 %v1772
        %v1942 = vunpack.c.l.b16 %v1773
        %v1943 = vunpack.c.h.b16 %v1773
        %v1944 = vunpack.c.l.b16 %v1774
        %v1945 = vunpack.c.h.b16 %v1774
        %v1946 = vunpack.c.l.b16 %v1775
        %v1947 = vunpack.c.h.b16 %v1775
        %v1948 = vunpack.c.l.b16 %v1776
        %v1949 = vunpack.c.h.b16 %v1776
        %v1950 = vunpack.c.l.b16 %v1777
        %v1951 = vunpack.c.h.b16 %v1777
        %v1952 = vunpack.c.l.b16 %v1778
        %v1953 = vunpack.c.h.b16 %v1778
        %v1954 = vunpack.c.l.b16 %v1779
        %v1955 = vunpack.c.h.b16 %v1779
        %v1956 = vunpack.c.l.b16 %v1780
        %v1957 = vunpack.c.h.b16 %v1780
        %v1958 = vunpack.c.l.b16 %v1781
        %v1959 = vunpack.c.h.b16 %v1781
        %v1960 = vunpack.c.l.b16 %v1782
        %v1961 = vunpack.c.h.b16 %v1782
        %v1962 = vunpack.c.l.b16 %v1783
        %v1963 = vunpack.c.h.b16 %v1783
        %v1964 = vunpack.c.l.b16 %v1784
        %v1965 = vunpack.c.h.b16 %v1784
        %v1966 = vunpack.c.l.b16 %v1785
        %v1967 = vunpack.c.h.b16 %v1785
        %v1968 = vunpack.c.l.b16 %v1786
        %v1969 = vunpack.c.h.b16 %v1786
        %v1970 = vunpack.c.l.b16 %v1787
        %v1971 = vunpack.c.h.b16 %v1787
        %v1972 = vunpack.c.l.b16 %v1788
        %v1973 = vunpack.c.h.b16 %v1788
        %v1974 = vunpack.c.l.b16 %v1789
        %v1975 = vunpack.c.h.b16 %v1789
        %v1976 = vunpack.c.l.b16 %v1790
        %v1977 = vunpack.c.h.b16 %v1790
        %v1978 = vunpack.c.l.b16 %v1791
        %v1979 = vunpack.c.h.b16 %v1791
        %v1980 = vunpack.c.l.b16 %v1792
        %v1981 = vunpack.c.h.b16 %v1792
        %v1982 = vunpack.c.l.b16 %v1793
        %v1983 = vunpack.c.h.b16 %v1793
        %v1984 = vunpack.c.l.b16 %v1794
        %v1985 = vunpack.c.h.b16 %v1794
        %v1986 = vunpack.c.l.b16 %v1795
        %v1987 = vunpack.c.h.b16 %v1795
        %v1988 = vunpack.c.l.b16 %v1796
        %v1989 = vunpack.c.h.b16 %v1796
        %v1990 = vunpack.c.l.b16 %v1797
        %v1991 = vunpack.c.h.b16 %v1797
        %v1992 = vunpack.c.l.b16 %v1798
        %v1993 = vunpack.c.h.b16 %v1798
        %v1994 = vunpack.c.l.b16 %v1799
        %v1995 = vunpack.c.h.b16 %v1799
        %v1996 = vunpack.c.l.b16 %v1800
        %v1997 = vunpack.c.h.b16 %v1800
        %v1998 = vunpack.c.l.b16 %v1801
        %v1999 = vunpack.c.h.b16 %v1801
        %v2000 = vunpack.c.l.b16 %v1802
        %v2001 = vunpack.c.h.b16 %v1802
        %v2002 = vunpack.c.l.b16 %v1803
        %v2003 = vunpack.c.h.b16 %v1803
        %v2004 = vunpack.c.l.b16 %v1804
        %v2005 = vunpack.c.h.b16 %v1804
        %v2006 = vunpack.c.l.b16 %v1805
        %v2007 = vunpack.c.h.b16 %v1805
        %v2008 = vunpack.c.l.b16 %v1806
        %v2009 = vunpack.c.h.b16 %v1806
        %v2010 = vunpack.c.l.b16 %v1807
        %v2011 = vunpack.c.h.b16 %v1807
        %v2012 = vunpack.c.l.b16 %v1808
        %v2013 = vunpack.c.h.b16 %v1808
        %v2014 = vunpack.c.l.b16 %v1809
        %v2015 = vunpack.c.h.b16 %v1809
        %v2016 = vunpack.c.l.b16 %v1810
        %v2017 = vunpack.c.h.b16 %v1810
        %v2018 = vunpack.c.l.b16 %v1811
        %v2019 = vunpack.c.h.b16 %v1811
        %v2020 = vunpack.c.l.b16 %v1812
        %v2021 = vunpack.c.h.b16 %v1812
        %v2022 = vunpack.c.l.b16 %v1813
        %v2023 = vunpack.c.h.b16 %v1813
        %v2024 = vunpack.c.l.b16 %v1814
        %v2025 = vunpack.c.h.b16 %v1814
        %v2026 = vunpack.c.l.b16 %v1815
        %v2027 = vunpack.c.h.b16 %v1815
        %v2028 = vunpack.c.l.b16 %v1816
        %v2029 = vunpack.c.h.b16 %v1816
        %v2030 = vunpack.c.l.b16 %v1817
        %v2031 = vunpack.c.h.b16 %v1817
        %v2032 = vpack.c.b16 %v1908, %v1904
        %v2033 = vpack.c.b16 %v1909, %v1905
        %v2034 = vpack.c.b16 %v1910, %v1906
        %v2035 = vpack.c.b16 %v1911, %v1907
        %v2036 = vpack.c.b16 %v1916, %v1912
        %v2037 = vpack.c.b16 %v1917, %v1913
        %v2038 = vpack.c.b16 %v1918, %v1914
        %v2039 = vpack.c.b16 %v1919, %v1915
        %v2040 = vpack.c.b16 %v1924, %v1920
        %v2041 = vpack.c.b16 %v1925, %v1921
        %v2042 = vpack.c.b16 %v1926, %v1922
        %v2043 = vpack.c.b16 %v1927, %v1923
        %v2044 = vpack.c.b16 %v1932, %v1928
        %v2045 = vpack.c.b16 %v1933, %v1929
        %v2046 = vpack.c.b16 %v1934, %v1930
        %v2047 = vpack.c.b16 %v1935, %v1931
        %v2048 = vpack.c.b16 %v1940, %v1936
        %v2049 = vpack.c.b16 %v1941, %v1937
        %v2050 = vpack.c.b16 %v1942, %v1938
        %v2051 = vpack.c.b16 %v1943, %v1939
        %v2052 = vpack.c.b16 %v1948, %v1944
        %v2053 = vpack.c.b16 %v1949, %v1945
        %v2054 = vpack.c.b16 %v1950, %v1946
        %v2055 = vpack.c.b16 %v1951, %v1947
        %v2056 = vpack.c.b16 %v1956, %v1952
        %v2057 = vpack.c.b16 %v1957, %v1953
        %v2058 = vpack.c.b16 %v1958, %v1954
        %v2059 = vpack.c.b16 %v1959, %v1955
        %v2060 = vpack.c.b16 %v1964, %v1960
        %v2061 = vpack.c.b16 %v1965, %v1961
        %v2062 = vpack.c.b16 %v1966, %v1962
        %v2063 = vpack.c.b16 %v1967, %v1963
        %v2064 = vpack.c.b16 %v1972, %v1968
        %v2065 = vpack.c.b16 %v1973, %v1969
        %v2066 = vpack.c.b16 %v1974, %v1970
        %v2067 = vpack.c.b16 %v1975, %v1971
        %v2068 = vpack.c.b16 %v1980, %v1976
        %v2069 = vpack.c.b16 %v1981, %v1977
        %v2070 = vpack.c.b16 %v1982, %v1978
        %v2071 = vpack.c.b16 %v1983, %v1979
        %v2072 = vpack.c.b16 %v1988, %v1984
        %v2073 = vpack.c.b16 %v1989, %v1985
        %v2074 = vpack.c.b16 %v1990, %v1986
        %v2075 = vpack.c.b16 %v1991, %v1987
        %v2076 = vpack.c.b16 %v1996, %v1992
        %v2077 = vpack.c.b16 %v1997, %v1993
        %v2078 = vpack.c.b16 %v1998, %v1994
        %v2079 = vpack.c.b16 %v1999, %v1995
        %v2080 = vpack.c.b16 %v2004, %v2000
        %v2081 = vpack.c.b16 %v2005, %v2001
        %v2082 = vpack.c.b16 %v2006, %v2002
        %v2083 = vpack.c.b16 %v2007, %v2003
        %v2084 = vpack.c.b16 %v2012, %v2008
        %v2085 = vpack.c.b16 %v2013, %v2009
        %v2086 = vpack.c.b16 %v2014, %v2010
        %v2087 = vpack.c.b16 %v2015, %v2011
        %v2088 = vpack.c.b16 %v2020, %v2016
        %v2089 = vpack.c.b16 %v2021, %v2017
        %v2090 = vpack.c.b16 %v2022, %v2018
        %v2091 = vpack.c.b16 %v2023, %v2019
        %v2092 = vpack.c.b16 %v2028, %v2024
        %v2093 = vpack.c.b16 %v2029, %v2025
        %v2094 = vpack.c.b16 %v2030, %v2026
        %v2095 = vpack.c.b16 %v2031, %v2027
        %2160 = vmatprep.subr.bf16.mxu0 %v2061
        %2161 = vmatpush1.bf16.msra.mxu0 %v2060
        %2162 = vmatprep.subr.bf16.mxu0 %v2057
        %2163 = vmatpush1.bf16.msra.mxu0 %v2056
        %2164 = vmatprep.subr.bf16.mxu0 %v2053
        %2165 = vmatpush1.bf16.msra.mxu0 %v2052
        %2166 = vmatprep.subr.bf16.mxu0 %v2049
        %2167 = vmatpush1.bf16.msra.mxu0 %v2048
        %2168 = vmatprep.subr.bf16.mxu0 %v2045
        %2169 = vmatpush1.bf16.msra.mxu0 %v2044
        %2170 = vmatprep.subr.bf16.mxu0 %v2041
        %2171 = vmatpush1.bf16.msra.mxu0 %v2040
        %2172 = vmatprep.subr.bf16.mxu0 %v2037
        %2173 = vmatpush1.bf16.msra.mxu0 %v2036
        %2174 = vmatprep.subr.bf16.mxu0 %v2033
        %2175 = vmatpush1.bf16.msra.mxu0 %v2032
        %2176 = vmatprep.subr.bf16.mxu0 %v2093
        %2177 = vmatpush2.bf16.msra.mxu0 %v2092
        %2178 = vmatprep.subr.bf16.mxu0 %v2089
        %2179 = vmatpush2.bf16.msra.mxu0 %v2088
        %2180 = vmatprep.subr.bf16.mxu0 %v2085
        %2181 = vmatpush2.bf16.msra.mxu0 %v2084
        %2182 = vmatprep.subr.bf16.mxu0 %v2081
        %2183 = vmatpush2.bf16.msra.mxu0 %v2080
        %2184 = vmatprep.subr.bf16.mxu0 %v2077
        %2185 = vmatpush2.bf16.msra.mxu0 %v2076
        %2186 = vmatprep.subr.bf16.mxu0 %v2073
        %2187 = vmatpush2.bf16.msra.mxu0 %v2072
        %2188 = vmatprep.subr.bf16.mxu0 %v2069
        %2189 = vmatpush2.bf16.msra.mxu0 %v2068
        %2190 = vmatprep.subr.bf16.mxu0 %v2065
        %2191 = vmatpush2.bf16.msra.mxu0 %v2064
        %2192 = vmatprep.mubr.bf16.mxu0 %v1747
        %2193 = vmatmul.mubr.bf16.gmra.mxu0 %v1746
        %v2194 = vpop.f32.mrf.mxu0
        %v2195 = vadd.f32 %v1823, %v2194
        %v2196 = vpop.f32.mrf.mxu0
        %v2197 = vadd.f32 %v1827, %v2196
        %v2198 = vpop.f32.mrf.mxu0
        %v2199 = vadd.f32 %v1823, %v2198
        %v2200 = vpop.f32.mrf.mxu0
        %v2201 = vadd.f32 %v1827, %v2200
        %2202 = vmatprep.mubr.bf16.mxu0 %v1749
        %2203 = vmatmul.mubr.bf16.gmra.mxu0 %v1748
        %v2204 = vpop.f32.mrf.mxu0
        %v2205 = vadd.f32 %v1823, %v2204
        %v2206 = vpop.f32.mrf.mxu0
        %v2207 = vadd.f32 %v1827, %v2206
        %v2208 = vpop.f32.mrf.mxu0
        %v2209 = vadd.f32 %v1823, %v2208
        %v2210 = vpop.f32.mrf.mxu0
        %v2211 = vadd.f32 %v1827, %v2210
        %2212 = vmatprep.mubr.bf16.mxu0 %v1751
        %2213 = vmatmul.mubr.bf16.gmra.mxu0 %v1750
        %v2214 = vpop.f32.mrf.mxu0
        %v2215 = vadd.f32 %v1823, %v2214
        %v2216 = vpop.f32.mrf.mxu0
        %v2217 = vadd.f32 %v1827, %v2216
        %v2218 = vpop.f32.mrf.mxu0
        %v2219 = vadd.f32 %v1823, %v2218
        %v2220 = vpop.f32.mrf.mxu0
        %v2221 = vadd.f32 %v1827, %v2220
        %2222 = vmatprep.mubr.bf16.mxu0 %v1753
        %2223 = vmatmul.mubr.bf16.gmra.mxu0 %v1752
        %v2224 = vpop.f32.mrf.mxu0
        %v2225 = vadd.f32 %v1823, %v2224
        %v2226 = vpop.f32.mrf.mxu0
        %v2227 = vadd.f32 %v1827, %v2226
        %v2228 = vpop.f32.mrf.mxu0
        %v2229 = vadd.f32 %v1823, %v2228
        %v2230 = vpop.f32.mrf.mxu0
        %v2231 = vadd.f32 %v1827, %v2230
        %2232 = vdwg.mxu0
        %2233 = vmatprep.subr.bf16.mxu0 %v2063
        %2234 = vmatpush1.bf16.msra.mxu0 %v2062
        %2235 = vmatprep.subr.bf16.mxu0 %v2059
        %2236 = vmatpush1.bf16.msra.mxu0 %v2058
        %2237 = vmatprep.subr.bf16.mxu0 %v2055
        %2238 = vmatpush1.bf16.msra.mxu0 %v2054
        %2239 = vmatprep.subr.bf16.mxu0 %v2051
        %2240 = vmatpush1.bf16.msra.mxu0 %v2050
        %2241 = vmatprep.subr.bf16.mxu0 %v2047
        %2242 = vmatpush1.bf16.msra.mxu0 %v2046
        %2243 = vmatprep.subr.bf16.mxu0 %v2043
        %2244 = vmatpush1.bf16.msra.mxu0 %v2042
        %2245 = vmatprep.subr.bf16.mxu0 %v2039
        %2246 = vmatpush1.bf16.msra.mxu0 %v2038
        %2247 = vmatprep.subr.bf16.mxu0 %v2035
        %2248 = vmatpush1.bf16.msra.mxu0 %v2034
        %2249 = vmatprep.subr.bf16.mxu0 %v2095
        %2250 = vmatpush2.bf16.msra.mxu0 %v2094
        %2251 = vmatprep.subr.bf16.mxu0 %v2091
        %2252 = vmatpush2.bf16.msra.mxu0 %v2090
        %2253 = vmatprep.subr.bf16.mxu0 %v2087
        %2254 = vmatpush2.bf16.msra.mxu0 %v2086
        %2255 = vmatprep.subr.bf16.mxu0 %v2083
        %2256 = vmatpush2.bf16.msra.mxu0 %v2082
        %2257 = vmatprep.subr.bf16.mxu0 %v2079
        %2258 = vmatpush2.bf16.msra.mxu0 %v2078
        %2259 = vmatprep.subr.bf16.mxu0 %v2075
        %2260 = vmatpush2.bf16.msra.mxu0 %v2074
        %2261 = vmatprep.subr.bf16.mxu0 %v2071
        %2262 = vmatpush2.bf16.msra.mxu0 %v2070
        %2263 = vmatprep.subr.bf16.mxu0 %v2067
        %2264 = vmatpush2.bf16.msra.mxu0 %v2066
        %2265 = vmatprep.mubr.bf16.mxu0 %v1747
        %2266 = vmatmul.mubr.bf16.gmra.mxu0 %v1746
        %v2267 = vpop.f32.mrf.mxu0
        %v2268 = vadd.f32 %v1831, %v2267
        %v2269 = vpop.f32.mrf.mxu0
        %v2270 = vadd.f32 %v1835, %v2269
        %v2271 = vpop.f32.mrf.mxu0
        %v2272 = vadd.f32 %v1831, %v2271
        %v2273 = vpop.f32.mrf.mxu0
        %v2274 = vadd.f32 %v1835, %v2273
        %2275 = vmatprep.mubr.bf16.mxu0 %v1749
        %2276 = vmatmul.mubr.bf16.gmra.mxu0 %v1748
        %v2277 = vpop.f32.mrf.mxu0
        %v2278 = vadd.f32 %v1831, %v2277
        %v2279 = vpop.f32.mrf.mxu0
        %v2280 = vadd.f32 %v1835, %v2279
        %v2281 = vpop.f32.mrf.mxu0
        %v2282 = vadd.f32 %v1831, %v2281
        %v2283 = vpop.f32.mrf.mxu0
        %v2284 = vadd.f32 %v1835, %v2283
        %2285 = vmatprep.mubr.bf16.mxu0 %v1751
        %2286 = vmatmul.mubr.bf16.gmra.mxu0 %v1750
        %v2287 = vpop.f32.mrf.mxu0
        %v2288 = vadd.f32 %v1831, %v2287
        %v2289 = vpop.f32.mrf.mxu0
        %v2290 = vadd.f32 %v1835, %v2289
        %v2291 = vpop.f32.mrf.mxu0
        %v2292 = vadd.f32 %v1831, %v2291
        %v2293 = vpop.f32.mrf.mxu0
        %v2294 = vadd.f32 %v1835, %v2293
        %2295 = vmatprep.mubr.bf16.mxu0 %v1753
        %2296 = vmatmul.mubr.bf16.gmra.mxu0 %v1752
        %v2297 = vpop.f32.mrf.mxu0
        %v2298 = vadd.f32 %v1831, %v2297
        %v2299 = vpop.f32.mrf.mxu0
        %v2300 = vadd.f32 %v1835, %v2299
        %v2301 = vpop.f32.mrf.mxu0
        %v2302 = vadd.f32 %v1831, %v2301
        %v2303 = vpop.f32.mrf.mxu0
        %v2304 = vadd.f32 %v1835, %v2303
        %2305 = vdwg.mxu0
        %v2306 = vmax.f32 %v2195, 0.0
        %v2307 = vmax.f32 %v2197, 0.0
        %v2308 = vmax.f32 %v2268, 0.0
        %v2309 = vmax.f32 %v2270, 0.0
        %v2310 = vmax.f32 %v2199, 0.0
        %v2311 = vmax.f32 %v2201, 0.0
        %v2312 = vmax.f32 %v2272, 0.0
        %v2313 = vmax.f32 %v2274, 0.0
        %v2314 = vmax.f32 %v2205, 0.0
        %v2315 = vmax.f32 %v2207, 0.0
        %v2316 = vmax.f32 %v2278, 0.0
        %v2317 = vmax.f32 %v2280, 0.0
        %v2318 = vmax.f32 %v2209, 0.0
        %v2319 = vmax.f32 %v2211, 0.0
        %v2320 = vmax.f32 %v2282, 0.0
        %v2321 = vmax.f32 %v2284, 0.0
        %v2322 = vmax.f32 %v2215, 0.0
        %v2323 = vmax.f32 %v2217, 0.0
        %v2324 = vmax.f32 %v2288, 0.0
        %v2325 = vmax.f32 %v2290, 0.0
        %v2326 = vmax.f32 %v2219, 0.0
        %v2327 = vmax.f32 %v2221, 0.0
        %v2328 = vmax.f32 %v2292, 0.0
        %v2329 = vmax.f32 %v2294, 0.0
        %v2330 = vmax.f32 %v2225, 0.0
        %v2331 = vmax.f32 %v2227, 0.0
        %v2332 = vmax.f32 %v2298, 0.0
        %v2333 = vmax.f32 %v2300, 0.0
        %v2334 = vmax.f32 %v2229, 0.0
        %v2335 = vmax.f32 %v2231, 0.0
        %v2336 = vmax.f32 %v2302, 0.0
        %v2337 = vmax.f32 %v2304, 0.0
        %v2338 = vpack.c.bf16 %v2310, %v2306
        %v2339 = vpack.c.bf16 %v2311, %v2307
        %v2340 = vpack.c.bf16 %v2312, %v2308
        %v2341 = vpack.c.bf16 %v2313, %v2309
        %v2342 = vpack.c.bf16 %v2318, %v2314
        %v2343 = vpack.c.bf16 %v2319, %v2315
        %v2344 = vpack.c.bf16 %v2320, %v2316
        %v2345 = vpack.c.bf16 %v2321, %v2317
        %v2346 = vpack.c.bf16 %v2326, %v2322
        %v2347 = vpack.c.bf16 %v2327, %v2323
        %v2348 = vpack.c.bf16 %v2328, %v2324
        %v2349 = vpack.c.bf16 %v2329, %v2325
        %v2350 = vpack.c.bf16 %v2334, %v2330
        %v2351 = vpack.c.bf16 %v2335, %v2331
        %v2352 = vpack.c.bf16 %v2336, %v2332
        %v2353 = vpack.c.bf16 %v2337, %v2333
        %v2354 = vld [vmem:[%s8] sm:$0xff]
        %v2355 = vld [vmem:[%s8 + $0x8] sm:$0xff]
        %v2356 = vld [vmem:[%s8 + $0x10] sm:$0xff]
        %v2357 = vld [vmem:[%s8 + $0x18] sm:$0xff]
        %v2358 = vld [vmem:[%s8 + $0x20] sm:$0xff]
        %v2359 = vld [vmem:[%s8 + $0x28] sm:$0xff]
        %v2360 = vld [vmem:[%s8 + $0x30] sm:$0xff]
        %v2361 = vld [vmem:[%s8 + $0x38] sm:$0xff]
        %v2362 = vld [vmem:[%s8 + $0x40] sm:$0xff]
        %v2363 = vld [vmem:[%s8 + $0x48] sm:$0xff]
        %v2364 = vld [vmem:[%s8 + $0x50] sm:$0xff]
        %v2365 = vld [vmem:[%s8 + $0x58] sm:$0xff]
        %v2366 = vld [vmem:[%s8 + $0x60] sm:$0xff]
        %v2367 = vld [vmem:[%s8 + $0x68] sm:$0xff]
        %v2368 = vld [vmem:[%s8 + $0x70] sm:$0xff]
        %v2369 = vld [vmem:[%s8 + $0x78] sm:$0xff]
        %v2370 = vld [vmem:[%s8 + $0x80] sm:$0xff]
        %v2371 = vld [vmem:[%s8 + $0x88] sm:$0xff]
        %v2372 = vld [vmem:[%s8 + $0x90] sm:$0xff]
        %v2373 = vld [vmem:[%s8 + $0x98] sm:$0xff]
        %v2374 = vld [vmem:[%s8 + $0xa0] sm:$0xff]
        %v2375 = vld [vmem:[%s8 + $0xa8] sm:$0xff]
        %v2376 = vld [vmem:[%s8 + $0xb0] sm:$0xff]
        %v2377 = vld [vmem:[%s8 + $0xb8] sm:$0xff]
        %v2378 = vld [vmem:[%s8 + $0xc0] sm:$0xff]
        %v2379 = vld [vmem:[%s8 + $0xc8] sm:$0xff]
        %v2380 = vld [vmem:[%s8 + $0xd0] sm:$0xff]
        %v2381 = vld [vmem:[%s8 + $0xd8] sm:$0xff]
        %v2382 = vld [vmem:[%s8 + $0xe0] sm:$0xff]
        %v2383 = vld [vmem:[%s8 + $0xe8] sm:$0xff]
        %v2384 = vld [vmem:[%s8 + $0xf0] sm:$0xff]
        %v2385 = vld [vmem:[%s8 + $0xf8] sm:$0xff]
        %v2386 = vld [vmem:[%s8 + $0x100] sm:$0xff]
        %v2387 = vld [vmem:[%s8 + $0x108] sm:$0xff]
        %v2388 = vld [vmem:[%s8 + $0x110] sm:$0xff]
        %v2389 = vld [vmem:[%s8 + $0x118] sm:$0xff]
        %v2390 = vld [vmem:[%s8 + $0x120] sm:$0xff]
        %v2391 = vld [vmem:[%s8 + $0x128] sm:$0xff]
        %v2392 = vld [vmem:[%s8 + $0x130] sm:$0xff]
        %v2393 = vld [vmem:[%s8 + $0x138] sm:$0xff]
        %v2394 = vld [vmem:[%s8 + $0x140] sm:$0xff]
        %v2395 = vld [vmem:[%s8 + $0x148] sm:$0xff]
        %v2396 = vld [vmem:[%s8 + $0x150] sm:$0xff]
        %v2397 = vld [vmem:[%s8 + $0x158] sm:$0xff]
        %v2398 = vld [vmem:[%s8 + $0x160] sm:$0xff]
        %v2399 = vld [vmem:[%s8 + $0x168] sm:$0xff]
        %v2400 = vld [vmem:[%s8 + $0x170] sm:$0xff]
        %v2401 = vld [vmem:[%s8 + $0x178] sm:$0xff]
        %v2402 = vld [vmem:[%s8 + $0x180] sm:$0xff]
        %v2403 = vld [vmem:[%s8 + $0x188] sm:$0xff]
        %v2404 = vld [vmem:[%s8 + $0x190] sm:$0xff]
        %v2405 = vld [vmem:[%s8 + $0x198] sm:$0xff]
        %v2406 = vld [vmem:[%s8 + $0x1a0] sm:$0xff]
        %v2407 = vld [vmem:[%s8 + $0x1a8] sm:$0xff]
        %v2408 = vld [vmem:[%s8 + $0x1b0] sm:$0xff]
        %v2409 = vld [vmem:[%s8 + $0x1b8] sm:$0xff]
        %v2410 = vld [vmem:[%s8 + $0x1c0] sm:$0xff]
        %v2411 = vld [vmem:[%s8 + $0x1c8] sm:$0xff]
        %v2412 = vld [vmem:[%s8 + $0x1d0] sm:$0xff]
        %v2413 = vld [vmem:[%s8 + $0x1d8] sm:$0xff]
        %v2414 = vld [vmem:[%s8 + $0x1e0] sm:$0xff]
        %v2415 = vld [vmem:[%s8 + $0x1e8] sm:$0xff]
        %v2416 = vld [vmem:[%s8 + $0x1f0] sm:$0xff]
        %v2417 = vld [vmem:[%s8 + $0x1f8] sm:$0xff]
        %v2418 = vld [vmem:[%s8 + $0x200] sm:$0xff]
        %v2419 = vld [vmem:[%s8 + $0x208] sm:$0xff]
        %v2420 = vld [vmem:[%s8 + $0x210] sm:$0xff]
        %v2421 = vld [vmem:[%s8 + $0x218] sm:$0xff]
        %v2422 = vld [vmem:[%s8 + $0x220] sm:$0xff]
        %v2423 = vld [vmem:[%s8 + $0x228] sm:$0xff]
        %v2424 = vld [vmem:[%s8 + $0x230] sm:$0xff]
        %v2425 = vld [vmem:[%s8 + $0x238] sm:$0xff]
        %v2426 = vld [vmem:[%s8 + $0x240] sm:$0xff]
        %v2427 = vld [vmem:[%s8 + $0x248] sm:$0xff]
        %v2428 = vld [vmem:[%s8 + $0x250] sm:$0xff]
        %v2429 = vld [vmem:[%s8 + $0x258] sm:$0xff]
        %v2430 = vld [vmem:[%s8 + $0x260] sm:$0xff]
        %v2431 = vld [vmem:[%s8 + $0x268] sm:$0xff]
        %v2432 = vld [vmem:[%s8 + $0x270] sm:$0xff]
        %v2433 = vld [vmem:[%s8 + $0x278] sm:$0xff]
        %v2434 = vld [vmem:[%s8 + $0x280] sm:$0xff]
        %v2435 = vld [vmem:[%s8 + $0x288] sm:$0xff]
        %v2436 = vld [vmem:[%s8 + $0x290] sm:$0xff]
        %v2437 = vld [vmem:[%s8 + $0x298] sm:$0xff]
        %v2438 = vld [vmem:[%s8 + $0x2a0] sm:$0xff]
        %v2439 = vld [vmem:[%s8 + $0x2a8] sm:$0xff]
        %v2440 = vld [vmem:[%s8 + $0x2b0] sm:$0xff]
        %v2441 = vld [vmem:[%s8 + $0x2b8] sm:$0xff]
        %v2442 = vld [vmem:[%s8 + $0x2c0] sm:$0xff]
        %v2443 = vld [vmem:[%s8 + $0x2c8] sm:$0xff]
        %v2444 = vld [vmem:[%s8 + $0x2d0] sm:$0xff]
        %v2445 = vld [vmem:[%s8 + $0x2d8] sm:$0xff]
        %v2446 = vld [vmem:[%s8 + $0x2e0] sm:$0xff]
        %v2447 = vld [vmem:[%s8 + $0x2e8] sm:$0xff]
        %v2448 = vld [vmem:[%s8 + $0x2f0] sm:$0xff]
        %v2449 = vld [vmem:[%s8 + $0x2f8] sm:$0xff]
        %v2450 = vld [vmem:[%s8 + $0x300] sm:$0xff]
        %v2451 = vld [vmem:[%s8 + $0x308] sm:$0xff]
        %v2452 = vld [vmem:[%s8 + $0x310] sm:$0xff]
        %v2453 = vld [vmem:[%s8 + $0x318] sm:$0xff]
        %v2454 = vld [vmem:[%s8 + $0x320] sm:$0xff]
        %v2455 = vld [vmem:[%s8 + $0x328] sm:$0xff]
        %v2456 = vld [vmem:[%s8 + $0x330] sm:$0xff]
        %v2457 = vld [vmem:[%s8 + $0x338] sm:$0xff]
        %v2458 = vld [vmem:[%s8 + $0x340] sm:$0xff]
        %v2459 = vld [vmem:[%s8 + $0x348] sm:$0xff]
        %v2460 = vld [vmem:[%s8 + $0x350] sm:$0xff]
        %v2461 = vld [vmem:[%s8 + $0x358] sm:$0xff]
        %v2462 = vld [vmem:[%s8 + $0x360] sm:$0xff]
        %v2463 = vld [vmem:[%s8 + $0x368] sm:$0xff]
        %v2464 = vld [vmem:[%s8 + $0x370] sm:$0xff]
        %v2465 = vld [vmem:[%s8 + $0x378] sm:$0xff]
        %v2466 = vld [vmem:[%s8 + $0x380] sm:$0xff]
        %v2467 = vld [vmem:[%s8 + $0x388] sm:$0xff]
        %v2468 = vld [vmem:[%s8 + $0x390] sm:$0xff]
        %v2469 = vld [vmem:[%s8 + $0x398] sm:$0xff]
        %v2470 = vld [vmem:[%s8 + $0x3a0] sm:$0xff]
        %v2471 = vld [vmem:[%s8 + $0x3a8] sm:$0xff]
        %v2472 = vld [vmem:[%s8 + $0x3b0] sm:$0xff]
        %v2473 = vld [vmem:[%s8 + $0x3b8] sm:$0xff]
        %v2474 = vld [vmem:[%s8 + $0x3c0] sm:$0xff]
        %v2475 = vld [vmem:[%s8 + $0x3c8] sm:$0xff]
        %v2476 = vld [vmem:[%s8 + $0x3d0] sm:$0xff]
        %v2477 = vld [vmem:[%s8 + $0x3d8] sm:$0xff]
        %v2478 = vld [vmem:[%s8 + $0x3e0] sm:$0xff]
        %v2479 = vld [vmem:[%s8 + $0x3e8] sm:$0xff]
        %v2480 = vld [vmem:[%s8 + $0x3f0] sm:$0xff]
        %v2481 = vld [vmem:[%s8 + $0x3f8] sm:$0xff]
        %v2482 = vld [vmem:[%s17] sm:$0xf]
        %v2484 = vlaneseq
        %v2485 = vshrl.u32 %v2484, 7
        %v2486 = vsub.s32 0, %v2485
        %v2487 = vrot.slane %v2482, %v2486
        %v2488 = vlaneseq
        %v2489 = vshrl.u32 %v2488, 7
        %v2490 = vsub.s32 1, %v2489
        %v2491 = vrot.slane %v2482, %v2490
        %v2492 = vlaneseq
        %v2493 = vshrl.u32 %v2492, 7
        %v2494 = vsub.s32 2, %v2493
        %v2495 = vrot.slane %v2482, %v2494
        %v2496 = vlaneseq
        %v2497 = vshrl.u32 %v2496, 7
        %v2498 = vsub.s32 3, %v2497
        %v2499 = vrot.slane %v2482, %v2498
        %v2632 = vunpack.c.l.b16 %v2354
        %v2633 = vunpack.c.h.b16 %v2354
        %v2634 = vunpack.c.l.b16 %v2355
        %v2635 = vunpack.c.h.b16 %v2355
        %v2636 = vunpack.c.l.b16 %v2356
        %v2637 = vunpack.c.h.b16 %v2356
        %v2638 = vunpack.c.l.b16 %v2357
        %v2639 = vunpack.c.h.b16 %v2357
        %v2640 = vunpack.c.l.b16 %v2358
        %v2641 = vunpack.c.h.b16 %v2358
        %v2642 = vunpack.c.l.b16 %v2359
        %v2643 = vunpack.c.h.b16 %v2359
        %v2644 = vunpack.c.l.b16 %v2360
        %v2645 = vunpack.c.h.b16 %v2360
        %v2646 = vunpack.c.l.b16 %v2361
        %v2647 = vunpack.c.h.b16 %v2361
        %v2648 = vunpack.c.l.b16 %v2362
        %v2649 = vunpack.c.h.b16 %v2362
        %v2650 = vunpack.c.l.b16 %v2363
        %v2651 = vunpack.c.h.b16 %v2363
        %v2652 = vunpack.c.l.b16 %v2364
        %v2653 = vunpack.c.h.b16 %v2364
        %v2654 = vunpack.c.l.b16 %v2365
        %v2655 = vunpack.c.h.b16 %v2365
        %v2656 = vunpack.c.l.b16 %v2366
        %v2657 = vunpack.c.h.b16 %v2366
        %v2658 = vunpack.c.l.b16 %v2367
        %v2659 = vunpack.c.h.b16 %v2367
        %v2660 = vunpack.c.l.b16 %v2368
        %v2661 = vunpack.c.h.b16 %v2368
        %v2662 = vunpack.c.l.b16 %v2369
        %v2663 = vunpack.c.h.b16 %v2369
        %v2664 = vunpack.c.l.b16 %v2370
        %v2665 = vunpack.c.h.b16 %v2370
        %v2666 = vunpack.c.l.b16 %v2371
        %v2667 = vunpack.c.h.b16 %v2371
        %v2668 = vunpack.c.l.b16 %v2372
        %v2669 = vunpack.c.h.b16 %v2372
        %v2670 = vunpack.c.l.b16 %v2373
        %v2671 = vunpack.c.h.b16 %v2373
        %v2672 = vunpack.c.l.b16 %v2374
        %v2673 = vunpack.c.h.b16 %v2374
        %v2674 = vunpack.c.l.b16 %v2375
        %v2675 = vunpack.c.h.b16 %v2375
        %v2676 = vunpack.c.l.b16 %v2376
        %v2677 = vunpack.c.h.b16 %v2376
        %v2678 = vunpack.c.l.b16 %v2377
        %v2679 = vunpack.c.h.b16 %v2377
        %v2680 = vunpack.c.l.b16 %v2378
        %v2681 = vunpack.c.h.b16 %v2378
        %v2682 = vunpack.c.l.b16 %v2379
        %v2683 = vunpack.c.h.b16 %v2379
        %v2684 = vunpack.c.l.b16 %v2380
        %v2685 = vunpack.c.h.b16 %v2380
        %v2686 = vunpack.c.l.b16 %v2381
        %v2687 = vunpack.c.h.b16 %v2381
        %v2688 = vunpack.c.l.b16 %v2382
        %v2689 = vunpack.c.h.b16 %v2382
        %v2690 = vunpack.c.l.b16 %v2383
        %v2691 = vunpack.c.h.b16 %v2383
        %v2692 = vunpack.c.l.b16 %v2384
        %v2693 = vunpack.c.h.b16 %v2384
        %v2694 = vunpack.c.l.b16 %v2385
        %v2695 = vunpack.c.h.b16 %v2385
        %v2696 = vunpack.c.l.b16 %v2386
        %v2697 = vunpack.c.h.b16 %v2386
        %v2698 = vunpack.c.l.b16 %v2387
        %v2699 = vunpack.c.h.b16 %v2387
        %v2700 = vunpack.c.l.b16 %v2388
        %v2701 = vunpack.c.h.b16 %v2388
        %v2702 = vunpack.c.l.b16 %v2389
        %v2703 = vunpack.c.h.b16 %v2389
        %v2704 = vunpack.c.l.b16 %v2390
        %v2705 = vunpack.c.h.b16 %v2390
        %v2706 = vunpack.c.l.b16 %v2391
        %v2707 = vunpack.c.h.b16 %v2391
        %v2708 = vunpack.c.l.b16 %v2392
        %v2709 = vunpack.c.h.b16 %v2392
        %v2710 = vunpack.c.l.b16 %v2393
        %v2711 = vunpack.c.h.b16 %v2393
        %v2712 = vunpack.c.l.b16 %v2394
        %v2713 = vunpack.c.h.b16 %v2394
        %v2714 = vunpack.c.l.b16 %v2395
        %v2715 = vunpack.c.h.b16 %v2395
        %v2716 = vunpack.c.l.b16 %v2396
        %v2717 = vunpack.c.h.b16 %v2396
        %v2718 = vunpack.c.l.b16 %v2397
        %v2719 = vunpack.c.h.b16 %v2397
        %v2720 = vunpack.c.l.b16 %v2398
        %v2721 = vunpack.c.h.b16 %v2398
        %v2722 = vunpack.c.l.b16 %v2399
        %v2723 = vunpack.c.h.b16 %v2399
        %v2724 = vunpack.c.l.b16 %v2400
        %v2725 = vunpack.c.h.b16 %v2400
        %v2726 = vunpack.c.l.b16 %v2401
        %v2727 = vunpack.c.h.b16 %v2401
        %v2728 = vunpack.c.l.b16 %v2402
        %v2729 = vunpack.c.h.b16 %v2402
        %v2730 = vunpack.c.l.b16 %v2403
        %v2731 = vunpack.c.h.b16 %v2403
        %v2732 = vunpack.c.l.b16 %v2404
        %v2733 = vunpack.c.h.b16 %v2404
        %v2734 = vunpack.c.l.b16 %v2405
        %v2735 = vunpack.c.h.b16 %v2405
        %v2736 = vunpack.c.l.b16 %v2406
        %v2737 = vunpack.c.h.b16 %v2406
        %v2738 = vunpack.c.l.b16 %v2407
        %v2739 = vunpack.c.h.b16 %v2407
        %v2740 = vunpack.c.l.b16 %v2408
        %v2741 = vunpack.c.h.b16 %v2408
        %v2742 = vunpack.c.l.b16 %v2409
        %v2743 = vunpack.c.h.b16 %v2409
        %v2744 = vunpack.c.l.b16 %v2410
        %v2745 = vunpack.c.h.b16 %v2410
        %v2746 = vunpack.c.l.b16 %v2411
        %v2747 = vunpack.c.h.b16 %v2411
        %v2748 = vunpack.c.l.b16 %v2412
        %v2749 = vunpack.c.h.b16 %v2412
        %v2750 = vunpack.c.l.b16 %v2413
        %v2751 = vunpack.c.h.b16 %v2413
        %v2752 = vunpack.c.l.b16 %v2414
        %v2753 = vunpack.c.h.b16 %v2414
        %v2754 = vunpack.c.l.b16 %v2415
        %v2755 = vunpack.c.h.b16 %v2415
        %v2756 = vunpack.c.l.b16 %v2416
        %v2757 = vunpack.c.h.b16 %v2416
        %v2758 = vunpack.c.l.b16 %v2417
        %v2759 = vunpack.c.h.b16 %v2417
        %v2760 = vunpack.c.l.b16 %v2418
        %v2761 = vunpack.c.h.b16 %v2418
        %v2762 = vunpack.c.l.b16 %v2419
        %v2763 = vunpack.c.h.b16 %v2419
        %v2764 = vunpack.c.l.b16 %v2420
        %v2765 = vunpack.c.h.b16 %v2420
        %v2766 = vunpack.c.l.b16 %v2421
        %v2767 = vunpack.c.h.b16 %v2421
        %v2768 = vunpack.c.l.b16 %v2422
        %v2769 = vunpack.c.h.b16 %v2422
        %v2770 = vunpack.c.l.b16 %v2423
        %v2771 = vunpack.c.h.b16 %v2423
        %v2772 = vunpack.c.l.b16 %v2424
        %v2773 = vunpack.c.h.b16 %v2424
        %v2774 = vunpack.c.l.b16 %v2425
        %v2775 = vunpack.c.h.b16 %v2425
        %v2776 = vunpack.c.l.b16 %v2426
        %v2777 = vunpack.c.h.b16 %v2426
        %v2778 = vunpack.c.l.b16 %v2427
        %v2779 = vunpack.c.h.b16 %v2427
        %v2780 = vunpack.c.l.b16 %v2428
        %v2781 = vunpack.c.h.b16 %v2428
        %v2782 = vunpack.c.l.b16 %v2429
        %v2783 = vunpack.c.h.b16 %v2429
        %v2784 = vunpack.c.l.b16 %v2430
        %v2785 = vunpack.c.h.b16 %v2430
        %v2786 = vunpack.c.l.b16 %v2431
        %v2787 = vunpack.c.h.b16 %v2431
        %v2788 = vunpack.c.l.b16 %v2432
        %v2789 = vunpack.c.h.b16 %v2432
        %v2790 = vunpack.c.l.b16 %v2433
        %v2791 = vunpack.c.h.b16 %v2433
        %v2792 = vunpack.c.l.b16 %v2434
        %v2793 = vunpack.c.h.b16 %v2434
        %v2794 = vunpack.c.l.b16 %v2435
        %v2795 = vunpack.c.h.b16 %v2435
        %v2796 = vunpack.c.l.b16 %v2436
        %v2797 = vunpack.c.h.b16 %v2436
        %v2798 = vunpack.c.l.b16 %v2437
        %v2799 = vunpack.c.h.b16 %v2437
        %v2800 = vunpack.c.l.b16 %v2438
        %v2801 = vunpack.c.h.b16 %v2438
        %v2802 = vunpack.c.l.b16 %v2439
        %v2803 = vunpack.c.h.b16 %v2439
        %v2804 = vunpack.c.l.b16 %v2440
        %v2805 = vunpack.c.h.b16 %v2440
        %v2806 = vunpack.c.l.b16 %v2441
        %v2807 = vunpack.c.h.b16 %v2441
        %v2808 = vunpack.c.l.b16 %v2442
        %v2809 = vunpack.c.h.b16 %v2442
        %v2810 = vunpack.c.l.b16 %v2443
        %v2811 = vunpack.c.h.b16 %v2443
        %v2812 = vunpack.c.l.b16 %v2444
        %v2813 = vunpack.c.h.b16 %v2444
        %v2814 = vunpack.c.l.b16 %v2445
        %v2815 = vunpack.c.h.b16 %v2445
        %v2816 = vunpack.c.l.b16 %v2446
        %v2817 = vunpack.c.h.b16 %v2446
        %v2818 = vunpack.c.l.b16 %v2447
        %v2819 = vunpack.c.h.b16 %v2447
        %v2820 = vunpack.c.l.b16 %v2448
        %v2821 = vunpack.c.h.b16 %v2448
        %v2822 = vunpack.c.l.b16 %v2449
        %v2823 = vunpack.c.h.b16 %v2449
        %v2824 = vunpack.c.l.b16 %v2450
        %v2825 = vunpack.c.h.b16 %v2450
        %v2826 = vunpack.c.l.b16 %v2451
        %v2827 = vunpack.c.h.b16 %v2451
        %v2828 = vunpack.c.l.b16 %v2452
        %v2829 = vunpack.c.h.b16 %v2452
        %v2830 = vunpack.c.l.b16 %v2453
        %v2831 = vunpack.c.h.b16 %v2453
        %v2832 = vunpack.c.l.b16 %v2454
        %v2833 = vunpack.c.h.b16 %v2454
        %v2834 = vunpack.c.l.b16 %v2455
        %v2835 = vunpack.c.h.b16 %v2455
        %v2836 = vunpack.c.l.b16 %v2456
        %v2837 = vunpack.c.h.b16 %v2456
        %v2838 = vunpack.c.l.b16 %v2457
        %v2839 = vunpack.c.h.b16 %v2457
        %v2840 = vunpack.c.l.b16 %v2458
        %v2841 = vunpack.c.h.b16 %v2458
        %v2842 = vunpack.c.l.b16 %v2459
        %v2843 = vunpack.c.h.b16 %v2459
        %v2844 = vunpack.c.l.b16 %v2460
        %v2845 = vunpack.c.h.b16 %v2460
        %v2846 = vunpack.c.l.b16 %v2461
        %v2847 = vunpack.c.h.b16 %v2461
        %v2848 = vunpack.c.l.b16 %v2462
        %v2849 = vunpack.c.h.b16 %v2462
        %v2850 = vunpack.c.l.b16 %v2463
        %v2851 = vunpack.c.h.b16 %v2463
        %v2852 = vunpack.c.l.b16 %v2464
        %v2853 = vunpack.c.h.b16 %v2464
        %v2854 = vunpack.c.l.b16 %v2465
        %v2855 = vunpack.c.h.b16 %v2465
        %v2856 = vunpack.c.l.b16 %v2466
        %v2857 = vunpack.c.h.b16 %v2466
        %v2858 = vunpack.c.l.b16 %v2467
        %v2859 = vunpack.c.h.b16 %v2467
        %v2860 = vunpack.c.l.b16 %v2468
        %v2861 = vunpack.c.h.b16 %v2468
        %v2862 = vunpack.c.l.b16 %v2469
        %v2863 = vunpack.c.h.b16 %v2469
        %v2864 = vunpack.c.l.b16 %v2470
        %v2865 = vunpack.c.h.b16 %v2470
        %v2866 = vunpack.c.l.b16 %v2471
        %v2867 = vunpack.c.h.b16 %v2471
        %v2868 = vunpack.c.l.b16 %v2472
        %v2869 = vunpack.c.h.b16 %v2472
        %v2870 = vunpack.c.l.b16 %v2473
        %v2871 = vunpack.c.h.b16 %v2473
        %v2872 = vunpack.c.l.b16 %v2474
        %v2873 = vunpack.c.h.b16 %v2474
        %v2874 = vunpack.c.l.b16 %v2475
        %v2875 = vunpack.c.h.b16 %v2475
        %v2876 = vunpack.c.l.b16 %v2476
        %v2877 = vunpack.c.h.b16 %v2476
        %v2878 = vunpack.c.l.b16 %v2477
        %v2879 = vunpack.c.h.b16 %v2477
        %v2880 = vunpack.c.l.b16 %v2478
        %v2881 = vunpack.c.h.b16 %v2478
        %v2882 = vunpack.c.l.b16 %v2479
        %v2883 = vunpack.c.h.b16 %v2479
        %v2884 = vunpack.c.l.b16 %v2480
        %v2885 = vunpack.c.h.b16 %v2480
        %v2886 = vunpack.c.l.b16 %v2481
        %v2887 = vunpack.c.h.b16 %v2481
        %v2888 = vpack.c.b16 %v2636, %v2632
        %v2889 = vpack.c.b16 %v2637, %v2633
        %v2890 = vpack.c.b16 %v2638, %v2634
        %v2891 = vpack.c.b16 %v2639, %v2635
        %v2892 = vpack.c.b16 %v2644, %v2640
        %v2893 = vpack.c.b16 %v2645, %v2641
        %v2894 = vpack.c.b16 %v2646, %v2642
        %v2895 = vpack.c.b16 %v2647, %v2643
        %v2896 = vpack.c.b16 %v2652, %v2648
        %v2897 = vpack.c.b16 %v2653, %v2649
        %v2898 = vpack.c.b16 %v2654, %v2650
        %v2899 = vpack.c.b16 %v2655, %v2651
        %v2900 = vpack.c.b16 %v2660, %v2656
        %v2901 = vpack.c.b16 %v2661, %v2657
        %v2902 = vpack.c.b16 %v2662, %v2658
        %v2903 = vpack.c.b16 %v2663, %v2659
        %v2904 = vpack.c.b16 %v2668, %v2664
        %v2905 = vpack.c.b16 %v2669, %v2665
        %v2906 = vpack.c.b16 %v2670, %v2666
        %v2907 = vpack.c.b16 %v2671, %v2667
        %v2908 = vpack.c.b16 %v2676, %v2672
        %v2909 = vpack.c.b16 %v2677, %v2673
        %v2910 = vpack.c.b16 %v2678, %v2674
        %v2911 = vpack.c.b16 %v2679, %v2675
        %v2912 = vpack.c.b16 %v2684, %v2680
        %v2913 = vpack.c.b16 %v2685, %v2681
        %v2914 = vpack.c.b16 %v2686, %v2682
        %v2915 = vpack.c.b16 %v2687, %v2683
        %v2916 = vpack.c.b16 %v2692, %v2688
        %v2917 = vpack.c.b16 %v2693, %v2689
        %v2918 = vpack.c.b16 %v2694, %v2690
        %v2919 = vpack.c.b16 %v2695, %v2691
        %v2920 = vpack.c.b16 %v2700, %v2696
        %v2921 = vpack.c.b16 %v2701, %v2697
        %v2922 = vpack.c.b16 %v2702, %v2698
        %v2923 = vpack.c.b16 %v2703, %v2699
        %v2924 = vpack.c.b16 %v2708, %v2704
        %v2925 = vpack.c.b16 %v2709, %v2705
        %v2926 = vpack.c.b16 %v2710, %v2706
        %v2927 = vpack.c.b16 %v2711, %v2707
        %v2928 = vpack.c.b16 %v2716, %v2712
        %v2929 = vpack.c.b16 %v2717, %v2713
        %v2930 = vpack.c.b16 %v2718, %v2714
        %v2931 = vpack.c.b16 %v2719, %v2715
        %v2932 = vpack.c.b16 %v2724, %v2720
        %v2933 = vpack.c.b16 %v2725, %v2721
        %v2934 = vpack.c.b16 %v2726, %v2722
        %v2935 = vpack.c.b16 %v2727, %v2723
        %v2936 = vpack.c.b16 %v2732, %v2728
        %v2937 = vpack.c.b16 %v2733, %v2729
        %v2938 = vpack.c.b16 %v2734, %v2730
        %v2939 = vpack.c.b16 %v2735, %v2731
        %v2940 = vpack.c.b16 %v2740, %v2736
        %v2941 = vpack.c.b16 %v2741, %v2737
        %v2942 = vpack.c.b16 %v2742, %v2738
        %v2943 = vpack.c.b16 %v2743, %v2739
        %v2944 = vpack.c.b16 %v2748, %v2744
        %v2945 = vpack.c.b16 %v2749, %v2745
        %v2946 = vpack.c.b16 %v2750, %v2746
        %v2947 = vpack.c.b16 %v2751, %v2747
        %v2948 = vpack.c.b16 %v2756, %v2752
        %v2949 = vpack.c.b16 %v2757, %v2753
        %v2950 = vpack.c.b16 %v2758, %v2754
        %v2951 = vpack.c.b16 %v2759, %v2755
        %v2952 = vpack.c.b16 %v2764, %v2760
        %v2953 = vpack.c.b16 %v2765, %v2761
        %v2954 = vpack.c.b16 %v2766, %v2762
        %v2955 = vpack.c.b16 %v2767, %v2763
        %v2956 = vpack.c.b16 %v2772, %v2768
        %v2957 = vpack.c.b16 %v2773, %v2769
        %v2958 = vpack.c.b16 %v2774, %v2770
        %v2959 = vpack.c.b16 %v2775, %v2771
        %v2960 = vpack.c.b16 %v2780, %v2776
        %v2961 = vpack.c.b16 %v2781, %v2777
        %v2962 = vpack.c.b16 %v2782, %v2778
        %v2963 = vpack.c.b16 %v2783, %v2779
        %v2964 = vpack.c.b16 %v2788, %v2784
        %v2965 = vpack.c.b16 %v2789, %v2785
        %v2966 = vpack.c.b16 %v2790, %v2786
        %v2967 = vpack.c.b16 %v2791, %v2787
        %v2968 = vpack.c.b16 %v2796, %v2792
        %v2969 = vpack.c.b16 %v2797, %v2793
        %v2970 = vpack.c.b16 %v2798, %v2794
        %v2971 = vpack.c.b16 %v2799, %v2795
        %v2972 = vpack.c.b16 %v2804, %v2800
        %v2973 = vpack.c.b16 %v2805, %v2801
        %v2974 = vpack.c.b16 %v2806, %v2802
        %v2975 = vpack.c.b16 %v2807, %v2803
        %v2976 = vpack.c.b16 %v2812, %v2808
        %v2977 = vpack.c.b16 %v2813, %v2809
        %v2978 = vpack.c.b16 %v2814, %v2810
        %v2979 = vpack.c.b16 %v2815, %v2811
        %v2980 = vpack.c.b16 %v2820, %v2816
        %v2981 = vpack.c.b16 %v2821, %v2817
        %v2982 = vpack.c.b16 %v2822, %v2818
        %v2983 = vpack.c.b16 %v2823, %v2819
        %v2984 = vpack.c.b16 %v2828, %v2824
        %v2985 = vpack.c.b16 %v2829, %v2825
        %v2986 = vpack.c.b16 %v2830, %v2826
        %v2987 = vpack.c.b16 %v2831, %v2827
        %v2988 = vpack.c.b16 %v2836, %v2832
        %v2989 = vpack.c.b16 %v2837, %v2833
        %v2990 = vpack.c.b16 %v2838, %v2834
        %v2991 = vpack.c.b16 %v2839, %v2835
        %v2992 = vpack.c.b16 %v2844, %v2840
        %v2993 = vpack.c.b16 %v2845, %v2841
        %v2994 = vpack.c.b16 %v2846, %v2842
        %v2995 = vpack.c.b16 %v2847, %v2843
        %v2996 = vpack.c.b16 %v2852, %v2848
        %v2997 = vpack.c.b16 %v2853, %v2849
        %v2998 = vpack.c.b16 %v2854, %v2850
        %v2999 = vpack.c.b16 %v2855, %v2851
        %v3000 = vpack.c.b16 %v2860, %v2856
        %v3001 = vpack.c.b16 %v2861, %v2857
        %v3002 = vpack.c.b16 %v2862, %v2858
        %v3003 = vpack.c.b16 %v2863, %v2859
        %v3004 = vpack.c.b16 %v2868, %v2864
        %v3005 = vpack.c.b16 %v2869, %v2865
        %v3006 = vpack.c.b16 %v2870, %v2866
        %v3007 = vpack.c.b16 %v2871, %v2867
        %v3008 = vpack.c.b16 %v2876, %v2872
        %v3009 = vpack.c.b16 %v2877, %v2873
        %v3010 = vpack.c.b16 %v2878, %v2874
        %v3011 = vpack.c.b16 %v2879, %v2875
        %v3012 = vpack.c.b16 %v2884, %v2880
        %v3013 = vpack.c.b16 %v2885, %v2881
        %v3014 = vpack.c.b16 %v2886, %v2882
        %v3015 = vpack.c.b16 %v2887, %v2883
        %3144 = vmatprep.subr.bf16.mxu0 %v2917
        %3145 = vmatpush1.bf16.msra.mxu0 %v2916
        %3146 = vmatprep.subr.bf16.mxu0 %v2913
        %3147 = vmatpush1.bf16.msra.mxu0 %v2912
        %3148 = vmatprep.subr.bf16.mxu0 %v2909
        %3149 = vmatpush1.bf16.msra.mxu0 %v2908
        %3150 = vmatprep.subr.bf16.mxu0 %v2905
        %3151 = vmatpush1.bf16.msra.mxu0 %v2904
        %3152 = vmatprep.subr.bf16.mxu0 %v2901
        %3153 = vmatpush1.bf16.msra.mxu0 %v2900
        %3154 = vmatprep.subr.bf16.mxu0 %v2897
        %3155 = vmatpush1.bf16.msra.mxu0 %v2896
        %3156 = vmatprep.subr.bf16.mxu0 %v2893
        %3157 = vmatpush1.bf16.msra.mxu0 %v2892
        %3158 = vmatprep.subr.bf16.mxu0 %v2889
        %3159 = vmatpush1.bf16.msra.mxu0 %v2888
        %3160 = vmatprep.subr.bf16.mxu0 %v2949
        %3161 = vmatpush2.bf16.msra.mxu0 %v2948
        %3162 = vmatprep.subr.bf16.mxu0 %v2945
        %3163 = vmatpush2.bf16.msra.mxu0 %v2944
        %3164 = vmatprep.subr.bf16.mxu0 %v2941
        %3165 = vmatpush2.bf16.msra.mxu0 %v2940
        %3166 = vmatprep.subr.bf16.mxu0 %v2937
        %3167 = vmatpush2.bf16.msra.mxu0 %v2936
        %3168 = vmatprep.subr.bf16.mxu0 %v2933
        %3169 = vmatpush2.bf16.msra.mxu0 %v2932
        %3170 = vmatprep.subr.bf16.mxu0 %v2929
        %3171 = vmatpush2.bf16.msra.mxu0 %v2928
        %3172 = vmatprep.subr.bf16.mxu0 %v2925
        %3173 = vmatpush2.bf16.msra.mxu0 %v2924
        %3174 = vmatprep.subr.bf16.mxu0 %v2921
        %3175 = vmatpush2.bf16.msra.mxu0 %v2920
        %3176 = vmatprep.mubr.bf16.mxu0 %v2339
        %3177 = vmatmul.mubr.bf16.gmra.mxu0 %v2338
        %v3178 = vpop.f32.mrf.mxu0
        %v3179 = vadd.f32 %v2487, %v3178
        %v3180 = vpop.f32.mrf.mxu0
        %v3181 = vadd.f32 %v2491, %v3180
        %v3182 = vpop.f32.mrf.mxu0
        %v3183 = vadd.f32 %v2487, %v3182
        %v3184 = vpop.f32.mrf.mxu0
        %v3185 = vadd.f32 %v2491, %v3184
        %3186 = vmatprep.mubr.bf16.mxu0 %v2343
        %3187 = vmatmul.mubr.bf16.gmra.mxu0 %v2342
        %v3188 = vpop.f32.mrf.mxu0
        %v3189 = vadd.f32 %v2487, %v3188
        %v3190 = vpop.f32.mrf.mxu0
        %v3191 = vadd.f32 %v2491, %v3190
        %v3192 = vpop.f32.mrf.mxu0
        %v3193 = vadd.f32 %v2487, %v3192
        %v3194 = vpop.f32.mrf.mxu0
        %v3195 = vadd.f32 %v2491, %v3194
        %3196 = vmatprep.mubr.bf16.mxu0 %v2347
        %3197 = vmatmul.mubr.bf16.gmra.mxu0 %v2346
        %v3198 = vpop.f32.mrf.mxu0
        %v3199 = vadd.f32 %v2487, %v3198
        %v3200 = vpop.f32.mrf.mxu0
        %v3201 = vadd.f32 %v2491, %v3200
        %v3202 = vpop.f32.mrf.mxu0
        %v3203 = vadd.f32 %v2487, %v3202
        %v3204 = vpop.f32.mrf.mxu0
        %v3205 = vadd.f32 %v2491, %v3204
        %3206 = vmatprep.mubr.bf16.mxu0 %v2351
        %3207 = vmatmul.mubr.bf16.gmra.mxu0 %v2350
        %v3208 = vpop.f32.mrf.mxu0
        %v3209 = vadd.f32 %v2487, %v3208
        %v3210 = vpop.f32.mrf.mxu0
        %v3211 = vadd.f32 %v2491, %v3210
        %v3212 = vpop.f32.mrf.mxu0
        %v3213 = vadd.f32 %v2487, %v3212
        %v3214 = vpop.f32.mrf.mxu0
        %v3215 = vadd.f32 %v2491, %v3214
        %3216 = vdwg.mxu0
        %3217 = vmatprep.subr.bf16.mxu0 %v2981
        %3218 = vmatpush1.bf16.msra.mxu0 %v2980
        %3219 = vmatprep.subr.bf16.mxu0 %v2977
        %3220 = vmatpush1.bf16.msra.mxu0 %v2976
        %3221 = vmatprep.subr.bf16.mxu0 %v2973
        %3222 = vmatpush1.bf16.msra.mxu0 %v2972
        %3223 = vmatprep.subr.bf16.mxu0 %v2969
        %3224 = vmatpush1.bf16.msra.mxu0 %v2968
        %3225 = vmatprep.subr.bf16.mxu0 %v2965
        %3226 = vmatpush1.bf16.msra.mxu0 %v2964
        %3227 = vmatprep.subr.bf16.mxu0 %v2961
        %3228 = vmatpush1.bf16.msra.mxu0 %v2960
        %3229 = vmatprep.subr.bf16.mxu0 %v2957
        %3230 = vmatpush1.bf16.msra.mxu0 %v2956
        %3231 = vmatprep.subr.bf16.mxu0 %v2953
        %3232 = vmatpush1.bf16.msra.mxu0 %v2952
        %3233 = vmatprep.subr.bf16.mxu0 %v3013
        %3234 = vmatpush2.bf16.msra.mxu0 %v3012
        %3235 = vmatprep.subr.bf16.mxu0 %v3009
        %3236 = vmatpush2.bf16.msra.mxu0 %v3008
        %3237 = vmatprep.subr.bf16.mxu0 %v3005
        %3238 = vmatpush2.bf16.msra.mxu0 %v3004
        %3239 = vmatprep.subr.bf16.mxu0 %v3001
        %3240 = vmatpush2.bf16.msra.mxu0 %v3000
        %3241 = vmatprep.subr.bf16.mxu0 %v2997
        %3242 = vmatpush2.bf16.msra.mxu0 %v2996
        %3243 = vmatprep.subr.bf16.mxu0 %v2993
        %3244 = vmatpush2.bf16.msra.mxu0 %v2992
        %3245 = vmatprep.subr.bf16.mxu0 %v2989
        %3246 = vmatpush2.bf16.msra.mxu0 %v2988
        %3247 = vmatprep.subr.bf16.mxu0 %v2985
        %3248 = vmatpush2.bf16.msra.mxu0 %v2984
        %3249 = vmatprep.mubr.bf16.mxu0 %v2341
        %3250 = vmatmul.mubr.bf16.gmra.mxu0 %v2340
        %v3251 = vpop.f32.mrf.mxu0
        %v3252 = vadd.f32 %v3179, %v3251
        %v3253 = vpop.f32.mrf.mxu0
        %v3254 = vadd.f32 %v3181, %v3253
        %v3255 = vpop.f32.mrf.mxu0
        %v3256 = vadd.f32 %v3183, %v3255
        %v3257 = vpop.f32.mrf.mxu0
        %v3258 = vadd.f32 %v3185, %v3257
        %3259 = vmatprep.mubr.bf16.mxu0 %v2345
        %3260 = vmatmul.mubr.bf16.gmra.mxu0 %v2344
        %v3261 = vpop.f32.mrf.mxu0
        %v3262 = vadd.f32 %v3189, %v3261
        %v3263 = vpop.f32.mrf.mxu0
        %v3264 = vadd.f32 %v3191, %v3263
        %v3265 = vpop.f32.mrf.mxu0
        %v3266 = vadd.f32 %v3193, %v3265
        %v3267 = vpop.f32.mrf.mxu0
        %v3268 = vadd.f32 %v3195, %v3267
        %3269 = vmatprep.mubr.bf16.mxu0 %v2349
        %3270 = vmatmul.mubr.bf16.gmra.mxu0 %v2348
        %v3271 = vpop.f32.mrf.mxu0
        %v3272 = vadd.f32 %v3199, %v3271
        %v3273 = vpop.f32.mrf.mxu0
        %v3274 = vadd.f32 %v3201, %v3273
        %v3275 = vpop.f32.mrf.mxu0
        %v3276 = vadd.f32 %v3203, %v3275
        %v3277 = vpop.f32.mrf.mxu0
        %v3278 = vadd.f32 %v3205, %v3277
        %3279 = vmatprep.mubr.bf16.mxu0 %v2353
        %3280 = vmatmul.mubr.bf16.gmra.mxu0 %v2352
        %v3281 = vpop.f32.mrf.mxu0
        %v3282 = vadd.f32 %v3209, %v3281
        %v3283 = vpop.f32.mrf.mxu0
        %v3284 = vadd.f32 %v3211, %v3283
        %v3285 = vpop.f32.mrf.mxu0
        %v3286 = vadd.f32 %v3213, %v3285
        %v3287 = vpop.f32.mrf.mxu0
        %v3288 = vadd.f32 %v3215, %v3287
        %3289 = vdwg.mxu0
        %3290 = vmatprep.subr.bf16.mxu0 %v2919
        %3291 = vmatpush1.bf16.msra.mxu0 %v2918
        %3292 = vmatprep.subr.bf16.mxu0 %v2915
        %3293 = vmatpush1.bf16.msra.mxu0 %v2914
        %3294 = vmatprep.subr.bf16.mxu0 %v2911
        %3295 = vmatpush1.bf16.msra.mxu0 %v2910
        %3296 = vmatprep.subr.bf16.mxu0 %v2907
        %3297 = vmatpush1.bf16.msra.mxu0 %v2906
        %3298 = vmatprep.subr.bf16.mxu0 %v2903
        %3299 = vmatpush1.bf16.msra.mxu0 %v2902
        %3300 = vmatprep.subr.bf16.mxu0 %v2899
        %3301 = vmatpush1.bf16.msra.mxu0 %v2898
        %3302 = vmatprep.subr.bf16.mxu0 %v2895
        %3303 = vmatpush1.bf16.msra.mxu0 %v2894
        %3304 = vmatprep.subr.bf16.mxu0 %v2891
        %3305 = vmatpush1.bf16.msra.mxu0 %v2890
        %3306 = vmatprep.subr.bf16.mxu0 %v2951
        %3307 = vmatpush2.bf16.msra.mxu0 %v2950
        %3308 = vmatprep.subr.bf16.mxu0 %v2947
        %3309 = vmatpush2.bf16.msra.mxu0 %v2946
        %3310 = vmatprep.subr.bf16.mxu0 %v2943
        %3311 = vmatpush2.bf16.msra.mxu0 %v2942
        %3312 = vmatprep.subr.bf16.mxu0 %v2939
        %3313 = vmatpush2.bf16.msra.mxu0 %v2938
        %3314 = vmatprep.subr.bf16.mxu0 %v2935
        %3315 = vmatpush2.bf16.msra.mxu0 %v2934
        %3316 = vmatprep.subr.bf16.mxu0 %v2931
        %3317 = vmatpush2.bf16.msra.mxu0 %v2930
        %3318 = vmatprep.subr.bf16.mxu0 %v2927
        %3319 = vmatpush2.bf16.msra.mxu0 %v2926
        %3320 = vmatprep.subr.bf16.mxu0 %v2923
        %3321 = vmatpush2.bf16.msra.mxu0 %v2922
        %3322 = vmatprep.mubr.bf16.mxu0 %v2339
        %3323 = vmatmul.mubr.bf16.gmra.mxu0 %v2338
        %v3324 = vpop.f32.mrf.mxu0
        %v3325 = vadd.f32 %v2495, %v3324
        %v3326 = vpop.f32.mrf.mxu0
        %v3327 = vadd.f32 %v2499, %v3326
        %v3328 = vpop.f32.mrf.mxu0
        %v3329 = vadd.f32 %v2495, %v3328
        %v3330 = vpop.f32.mrf.mxu0
        %v3331 = vadd.f32 %v2499, %v3330
        %3332 = vmatprep.mubr.bf16.mxu0 %v2343
        %3333 = vmatmul.mubr.bf16.gmra.mxu0 %v2342
        %v3334 = vpop.f32.mrf.mxu0
        %v3335 = vadd.f32 %v2495, %v3334
        %v3336 = vpop.f32.mrf.mxu0
        %v3337 = vadd.f32 %v2499, %v3336
        %v3338 = vpop.f32.mrf.mxu0
        %v3339 = vadd.f32 %v2495, %v3338
        %v3340 = vpop.f32.mrf.mxu0
        %v3341 = vadd.f32 %v2499, %v3340
        %3342 = vmatprep.mubr.bf16.mxu0 %v2347
        %3343 = vmatmul.mubr.bf16.gmra.mxu0 %v2346
        %v3344 = vpop.f32.mrf.mxu0
        %v3345 = vadd.f32 %v2495, %v3344
        %v3346 = vpop.f32.mrf.mxu0
        %v3347 = vadd.f32 %v2499, %v3346
        %v3348 = vpop.f32.mrf.mxu0
        %v3349 = vadd.f32 %v2495, %v3348
        %v3350 = vpop.f32.mrf.mxu0
        %v3351 = vadd.f32 %v2499, %v3350
        %3352 = vmatprep.mubr.bf16.mxu0 %v2351
        %3353 = vmatmul.mubr.bf16.gmra.mxu0 %v2350
        %v3354 = vpop.f32.mrf.mxu0
        %v3355 = vadd.f32 %v2495, %v3354
        %v3356 = vpop.f32.mrf.mxu0
        %v3357 = vadd.f32 %v2499, %v3356
        %v3358 = vpop.f32.mrf.mxu0
        %v3359 = vadd.f32 %v2495, %v3358
        %v3360 = vpop.f32.mrf.mxu0
        %v3361 = vadd.f32 %v2499, %v3360
        %3362 = vdwg.mxu0
        %3363 = vmatprep.subr.bf16.mxu0 %v2983
        %3364 = vmatpush1.bf16.msra.mxu0 %v2982
        %3365 = vmatprep.subr.bf16.mxu0 %v2979
        %3366 = vmatpush1.bf16.msra.mxu0 %v2978
        %3367 = vmatprep.subr.bf16.mxu0 %v2975
        %3368 = vmatpush1.bf16.msra.mxu0 %v2974
        %3369 = vmatprep.subr.bf16.mxu0 %v2971
        %3370 = vmatpush1.bf16.msra.mxu0 %v2970
        %3371 = vmatprep.subr.bf16.mxu0 %v2967
        %3372 = vmatpush1.bf16.msra.mxu0 %v2966
        %3373 = vmatprep.subr.bf16.mxu0 %v2963
        %3374 = vmatpush1.bf16.msra.mxu0 %v2962
        %3375 = vmatprep.subr.bf16.mxu0 %v2959
        %3376 = vmatpush1.bf16.msra.mxu0 %v2958
        %3377 = vmatprep.subr.bf16.mxu0 %v2955
        %3378 = vmatpush1.bf16.msra.mxu0 %v2954
        %3379 = vmatprep.subr.bf16.mxu0 %v3015
        %3380 = vmatpush2.bf16.msra.mxu0 %v3014
        %3381 = vmatprep.subr.bf16.mxu0 %v3011
        %3382 = vmatpush2.bf16.msra.mxu0 %v3010
        %3383 = vmatprep.subr.bf16.mxu0 %v3007
        %3384 = vmatpush2.bf16.msra.mxu0 %v3006
        %3385 = vmatprep.subr.bf16.mxu0 %v3003
        %3386 = vmatpush2.bf16.msra.mxu0 %v3002
        %3387 = vmatprep.subr.bf16.mxu0 %v2999
        %3388 = vmatpush2.bf16.msra.mxu0 %v2998
        %3389 = vmatprep.subr.bf16.mxu0 %v2995
        %3390 = vmatpush2.bf16.msra.mxu0 %v2994
        %3391 = vmatprep.subr.bf16.mxu0 %v2991
        %3392 = vmatpush2.bf16.msra.mxu0 %v2990
        %3393 = vmatprep.subr.bf16.mxu0 %v2987
        %3394 = vmatpush2.bf16.msra.mxu0 %v2986
        %3395 = vmatprep.mubr.bf16.mxu0 %v2341
        %3396 = vmatmul.mubr.bf16.gmra.mxu0 %v2340
        %v3397 = vpop.f32.mrf.mxu0
        %v3398 = vadd.f32 %v3325, %v3397
        %v3399 = vpop.f32.mrf.mxu0
        %v3400 = vadd.f32 %v3327, %v3399
        %v3401 = vpop.f32.mrf.mxu0
        %v3402 = vadd.f32 %v3329, %v3401
        %v3403 = vpop.f32.mrf.mxu0
        %v3404 = vadd.f32 %v3331, %v3403
        %3405 = vmatprep.mubr.bf16.mxu0 %v2345
        %3406 = vmatmul.mubr.bf16.gmra.mxu0 %v2344
        %v3407 = vpop.f32.mrf.mxu0
        %v3408 = vadd.f32 %v3335, %v3407
        %v3409 = vpop.f32.mrf.mxu0
        %v3410 = vadd.f32 %v3337, %v3409
        %v3411 = vpop.f32.mrf.mxu0
        %v3412 = vadd.f32 %v3339, %v3411
        %v3413 = vpop.f32.mrf.mxu0
        %v3414 = vadd.f32 %v3341, %v3413
        %3415 = vmatprep.mubr.bf16.mxu0 %v2349
        %3416 = vmatmul.mubr.bf16.gmra.mxu0 %v2348
        %v3417 = vpop.f32.mrf.mxu0
        %v3418 = vadd.f32 %v3345, %v3417
        %v3419 = vpop.f32.mrf.mxu0
        %v3420 = vadd.f32 %v3347, %v3419
        %v3421 = vpop.f32.mrf.mxu0
        %v3422 = vadd.f32 %v3349, %v3421
        %v3423 = vpop.f32.mrf.mxu0
        %v3424 = vadd.f32 %v3351, %v3423
        %3425 = vmatprep.mubr.bf16.mxu0 %v2353
        %3426 = vmatmul.mubr.bf16.gmra.mxu0 %v2352
        %v3427 = vpop.f32.mrf.mxu0
        %v3428 = vadd.f32 %v3355, %v3427
        %v3429 = vpop.f32.mrf.mxu0
        %v3430 = vadd.f32 %v3357, %v3429
        %v3431 = vpop.f32.mrf.mxu0
        %v3432 = vadd.f32 %v3359, %v3431
        %v3433 = vpop.f32.mrf.mxu0
        %v3434 = vadd.f32 %v3361, %v3433
        %3435 = vdwg.mxu0
        %v3436 = vmax.f32 %v3252, 0.0
        %v3437 = vmax.f32 %v3254, 0.0
        %v3438 = vmax.f32 %v3398, 0.0
        %v3439 = vmax.f32 %v3400, 0.0
        %v3440 = vmax.f32 %v3256, 0.0
        %v3441 = vmax.f32 %v3258, 0.0
        %v3442 = vmax.f32 %v3402, 0.0
        %v3443 = vmax.f32 %v3404, 0.0
        %v3444 = vmax.f32 %v3262, 0.0
        %v3445 = vmax.f32 %v3264, 0.0
        %v3446 = vmax.f32 %v3408, 0.0
        %v3447 = vmax.f32 %v3410, 0.0
        %v3448 = vmax.f32 %v3266, 0.0
        %v3449 = vmax.f32 %v3268, 0.0
        %v3450 = vmax.f32 %v3412, 0.0
        %v3451 = vmax.f32 %v3414, 0.0
        %v3452 = vmax.f32 %v3272, 0.0
        %v3453 = vmax.f32 %v3274, 0.0
        %v3454 = vmax.f32 %v3418, 0.0
        %v3455 = vmax.f32 %v3420, 0.0
        %v3456 = vmax.f32 %v3276, 0.0
        %v3457 = vmax.f32 %v3278, 0.0
        %v3458 = vmax.f32 %v3422, 0.0
        %v3459 = vmax.f32 %v3424, 0.0
        %v3460 = vmax.f32 %v3282, 0.0
        %v3461 = vmax.f32 %v3284, 0.0
        %v3462 = vmax.f32 %v3428, 0.0
        %v3463 = vmax.f32 %v3430, 0.0
        %v3464 = vmax.f32 %v3286, 0.0
        %v3465 = vmax.f32 %v3288, 0.0
        %v3466 = vmax.f32 %v3432, 0.0
        %v3467 = vmax.f32 %v3434, 0.0
        %v3468 = vpack.c.bf16 %v3440, %v3436
        %v3469 = vpack.c.bf16 %v3441, %v3437
        %v3470 = vpack.c.bf16 %v3442, %v3438
        %v3471 = vpack.c.bf16 %v3443, %v3439
        %v3472 = vpack.c.bf16 %v3448, %v3444
        %v3473 = vpack.c.bf16 %v3449, %v3445
        %v3474 = vpack.c.bf16 %v3450, %v3446
        %v3475 = vpack.c.bf16 %v3451, %v3447
        %v3476 = vpack.c.bf16 %v3456, %v3452
        %v3477 = vpack.c.bf16 %v3457, %v3453
        %v3478 = vpack.c.bf16 %v3458, %v3454
        %v3479 = vpack.c.bf16 %v3459, %v3455
        %v3480 = vpack.c.bf16 %v3464, %v3460
        %v3481 = vpack.c.bf16 %v3465, %v3461
        %v3482 = vpack.c.bf16 %v3466, %v3462
        %v3483 = vpack.c.bf16 %v3467, %v3463
        %v3484 = vunpack.c.l.bf16 %v3468
        %v3485 = vunpack.c.l.bf16 %v3469
        %v3486 = vunpack.c.l.bf16 %v3470
        %v3487 = vunpack.c.l.bf16 %v3471
        %v3488 = vunpack.c.h.bf16 %v3468
        %v3489 = vunpack.c.h.bf16 %v3469
        %v3490 = vunpack.c.h.bf16 %v3470
        %v3491 = vunpack.c.h.bf16 %v3471
        %v3492 = vunpack.c.l.bf16 %v3472
        %v3493 = vunpack.c.l.bf16 %v3473
        %v3494 = vunpack.c.l.bf16 %v3474
        %v3495 = vunpack.c.l.bf16 %v3475
        %v3496 = vunpack.c.h.bf16 %v3472
        %v3497 = vunpack.c.h.bf16 %v3473
        %v3498 = vunpack.c.h.bf16 %v3474
        %v3499 = vunpack.c.h.bf16 %v3475
        %v3500 = vunpack.c.l.bf16 %v3476
        %v3501 = vunpack.c.l.bf16 %v3477
        %v3502 = vunpack.c.l.bf16 %v3478
        %v3503 = vunpack.c.l.bf16 %v3479
        %v3504 = vunpack.c.h.bf16 %v3476
        %v3505 = vunpack.c.h.bf16 %v3477
        %v3506 = vunpack.c.h.bf16 %v3478
        %v3507 = vunpack.c.h.bf16 %v3479
        %v3508 = vunpack.c.l.bf16 %v3480
        %v3509 = vunpack.c.l.bf16 %v3481
        %v3510 = vunpack.c.l.bf16 %v3482
        %v3511 = vunpack.c.l.bf16 %v3483
        %v3512 = vunpack.c.h.bf16 %v3480
        %v3513 = vunpack.c.h.bf16 %v3481
        %v3514 = vunpack.c.h.bf16 %v3482
        %v3515 = vunpack.c.h.bf16 %v3483
        %v3516 = vadd.f32 %v3484, %v3488
        %v3517 = vadd.f32 %v3516, %v3492
        %v3518 = vadd.f32 %v3517, %v3496
        %v3519 = vadd.f32 %v3518, %v3500
        %v3520 = vadd.f32 %v3519, %v3504
        %v3521 = vadd.f32 %v3520, %v3508
        %v3522 = vadd.f32 %v3521, %v3512
        %v3523 = vrot.slane %v3522, 4
        %v3524 = vadd.f32 %v3522, %v3523
        %v3525 = vrot.slane %v3524, 2
        %v3526 = vadd.f32 %v3524, %v3525
        %v3527 = vrot.slane %v3526, 1
        %v3528 = vadd.f32 %v3526, %v3527
        %v3529 = vadd.f32 %v3485, %v3489
        %v3530 = vadd.f32 %v3529, %v3493
        %v3531 = vadd.f32 %v3530, %v3497
        %v3532 = vadd.f32 %v3531, %v3501
        %v3533 = vadd.f32 %v3532, %v3505
        %v3534 = vadd.f32 %v3533, %v3509
        %v3535 = vadd.f32 %v3534, %v3513
        %v3536 = vrot.slane %v3535, 4
        %v3537 = vadd.f32 %v3535, %v3536
        %v3538 = vrot.slane %v3537, 2
        %v3539 = vadd.f32 %v3537, %v3538
        %v3540 = vrot.slane %v3539, 1
        %v3541 = vadd.f32 %v3539, %v3540
        %v3542 = vadd.f32 %v3486, %v3490
        %v3543 = vadd.f32 %v3542, %v3494
        %v3544 = vadd.f32 %v3543, %v3498
        %v3545 = vadd.f32 %v3544, %v3502
        %v3546 = vadd.f32 %v3545, %v3506
        %v3547 = vadd.f32 %v3546, %v3510
        %v3548 = vadd.f32 %v3547, %v3514
        %v3549 = vrot.slane %v3548, 4
        %v3550 = vadd.f32 %v3548, %v3549
        %v3551 = vrot.slane %v3550, 2
        %v3552 = vadd.f32 %v3550, %v3551
        %v3553 = vrot.slane %v3552, 1
        %v3554 = vadd.f32 %v3552, %v3553
        %v3555 = vadd.f32 %v3487, %v3491
        %v3556 = vadd.f32 %v3555, %v3495
        %v3557 = vadd.f32 %v3556, %v3499
        %v3558 = vadd.f32 %v3557, %v3503
        %v3559 = vadd.f32 %v3558, %v3507
        %v3560 = vadd.f32 %v3559, %v3511
        %v3561 = vadd.f32 %v3560, %v3515
        %v3562 = vrot.slane %v3561, 4
        %v3563 = vadd.f32 %v3561, %v3562
        %v3564 = vrot.slane %v3563, 2
        %v3565 = vadd.f32 %v3563, %v3564
        %v3566 = vrot.slane %v3565, 1
        %v3567 = vadd.f32 %v3565, %v3566
        %v3568 = vmul.f32 %v3528, 0.015625
        %v3569 = vmul.f32 %v3541, 0.015625
        %v3570 = vmul.f32 %v3554, 0.015625
        %v3571 = vmul.f32 %v3567, 0.015625
        %v3572 = vpack.c.bf16 %v3568, %v3568
        %v3573 = vpack.c.bf16 %v3569, %v3569
        %v3574 = vpack.c.bf16 %v3570, %v3570
        %v3575 = vpack.c.bf16 %v3571, %v3571
        %v3576 = vld [vmem:[#allocation7] sm:$0xf]
        %v3577 = vld [vmem:[#allocation7 + $0x4] sm:$0xf]
        %v3578 = vld [vmem:[#allocation7 + $0x8] sm:$0xf]
        %v3579 = vld [vmem:[#allocation7 + $0xc] sm:$0xf]
        %v3580 = vld [vmem:[#allocation7 + $0x10] sm:$0xf]
        %v3581 = vld [vmem:[#allocation7 + $0x14] sm:$0xf]
        %v3582 = vld [vmem:[#allocation7 + $0x18] sm:$0xf]
        %v3583 = vld [vmem:[#allocation7 + $0x1c] sm:$0xf]
        %v3584 = vld [vmem:[#allocation7 + $0x20] sm:$0xf]
        %v3585 = vld [vmem:[#allocation7 + $0x24] sm:$0xf]
        %v3586 = vld [vmem:[#allocation7 + $0x28] sm:$0xf]
        %v3587 = vld [vmem:[#allocation7 + $0x2c] sm:$0xf]
        %v3588 = vld [vmem:[#allocation7 + $0x30] sm:$0xf]
        %v3589 = vld [vmem:[#allocation7 + $0x34] sm:$0xf]
        %v3590 = vld [vmem:[#allocation7 + $0x38] sm:$0xf]
        %v3591 = vld [vmem:[#allocation7 + $0x3c] sm:$0xf]
        %v3592 = vld [vmem:[#allocation7 + $0x40] sm:$0xf]
        %v3593 = vld [vmem:[#allocation7 + $0x44] sm:$0xf]
        %v3594 = vld [vmem:[#allocation7 + $0x48] sm:$0xf]
        %v3595 = vld [vmem:[#allocation7 + $0x4c] sm:$0xf]
        %v3596 = vld [vmem:[#allocation7 + $0x50] sm:$0xf]
        %v3597 = vld [vmem:[#allocation7 + $0x54] sm:$0xf]
        %v3598 = vld [vmem:[#allocation7 + $0x58] sm:$0xf]
        %v3599 = vld [vmem:[#allocation7 + $0x5c] sm:$0xf]
        %v3600 = vld [vmem:[#allocation7 + $0x60] sm:$0xf]
        %v3601 = vld [vmem:[#allocation7 + $0x64] sm:$0xf]
        %v3602 = vld [vmem:[#allocation7 + $0x68] sm:$0xf]
        %v3603 = vld [vmem:[#allocation7 + $0x6c] sm:$0xf]
        %v3604 = vld [vmem:[#allocation7 + $0x70] sm:$0xf]
        %v3605 = vld [vmem:[#allocation7 + $0x74] sm:$0xf]
        %v3606 = vld [vmem:[#allocation7 + $0x78] sm:$0xf]
        %v3607 = vld [vmem:[#allocation7 + $0x7c] sm:$0xf]
        %v3608 = vld [vmem:[#allocation7 + $0x80] sm:$0xf]
        %v3609 = vld [vmem:[#allocation7 + $0x84] sm:$0xf]
        %v3610 = vld [vmem:[#allocation7 + $0x88] sm:$0xf]
        %v3611 = vld [vmem:[#allocation7 + $0x8c] sm:$0xf]
        %v3612 = vld [vmem:[#allocation7 + $0x90] sm:$0xf]
        %v3613 = vld [vmem:[#allocation7 + $0x94] sm:$0xf]
        %v3614 = vld [vmem:[#allocation7 + $0x98] sm:$0xf]
        %v3615 = vld [vmem:[#allocation7 + $0x9c] sm:$0xf]
        %v3616 = vld [vmem:[#allocation7 + $0xa0] sm:$0xf]
        %v3617 = vld [vmem:[#allocation7 + $0xa4] sm:$0xf]
        %v3618 = vld [vmem:[#allocation7 + $0xa8] sm:$0xf]
        %v3619 = vld [vmem:[#allocation7 + $0xac] sm:$0xf]
        %v3620 = vld [vmem:[#allocation7 + $0xb0] sm:$0xf]
        %v3621 = vld [vmem:[#allocation7 + $0xb4] sm:$0xf]
        %v3622 = vld [vmem:[#allocation7 + $0xb8] sm:$0xf]
        %v3623 = vld [vmem:[#allocation7 + $0xbc] sm:$0xf]
        %v3624 = vld [vmem:[#allocation7 + $0xc0] sm:$0xf]
        %v3625 = vld [vmem:[#allocation7 + $0xc4] sm:$0xf]
        %v3626 = vld [vmem:[#allocation7 + $0xc8] sm:$0xf]
        %v3627 = vld [vmem:[#allocation7 + $0xcc] sm:$0xf]
        %v3628 = vld [vmem:[#allocation7 + $0xd0] sm:$0xf]
        %v3629 = vld [vmem:[#allocation7 + $0xd4] sm:$0xf]
        %v3630 = vld [vmem:[#allocation7 + $0xd8] sm:$0xf]
        %v3631 = vld [vmem:[#allocation7 + $0xdc] sm:$0xf]
        %v3632 = vld [vmem:[#allocation7 + $0xe0] sm:$0xf]
        %v3633 = vld [vmem:[#allocation7 + $0xe4] sm:$0xf]
        %v3634 = vld [vmem:[#allocation7 + $0xe8] sm:$0xf]
        %v3635 = vld [vmem:[#allocation7 + $0xec] sm:$0xf]
        %v3636 = vld [vmem:[#allocation7 + $0xf0] sm:$0xf]
        %v3637 = vld [vmem:[#allocation7 + $0xf4] sm:$0xf]
        %v3638 = vld [vmem:[#allocation7 + $0xf8] sm:$0xf]
        %v3639 = vld [vmem:[#allocation7 + $0xfc] sm:$0xf]
        %v3640 = vld [vmem:[%s18] sm:$0x1]
        %v3642 = vlaneseq
        %v3643 = vshrl.u32 %v3642, 7
        %v3644 = vsub.s32 0, %v3643
        %v3645 = vrot.slane %v3640, %v3644
        %v3711 = vunpack.c.l.b16 %v3576
        %v3712 = vunpack.c.l.b16 %v3577
        %v3713 = vunpack.c.l.b16 %v3578
        %v3714 = vunpack.c.l.b16 %v3579
        %v3715 = vunpack.c.l.b16 %v3580
        %v3716 = vunpack.c.l.b16 %v3581
        %v3717 = vunpack.c.l.b16 %v3582
        %v3718 = vunpack.c.l.b16 %v3583
        %v3719 = vunpack.c.l.b16 %v3584
        %v3720 = vunpack.c.l.b16 %v3585
        %v3721 = vunpack.c.l.b16 %v3586
        %v3722 = vunpack.c.l.b16 %v3587
        %v3723 = vunpack.c.l.b16 %v3588
        %v3724 = vunpack.c.l.b16 %v3589
        %v3725 = vunpack.c.l.b16 %v3590
        %v3726 = vunpack.c.l.b16 %v3591
        %v3727 = vunpack.c.l.b16 %v3592
        %v3728 = vunpack.c.l.b16 %v3593
        %v3729 = vunpack.c.l.b16 %v3594
        %v3730 = vunpack.c.l.b16 %v3595
        %v3731 = vunpack.c.l.b16 %v3596
        %v3732 = vunpack.c.l.b16 %v3597
        %v3733 = vunpack.c.l.b16 %v3598
        %v3734 = vunpack.c.l.b16 %v3599
        %v3735 = vunpack.c.l.b16 %v3600
        %v3736 = vunpack.c.l.b16 %v3601
        %v3737 = vunpack.c.l.b16 %v3602
        %v3738 = vunpack.c.l.b16 %v3603
        %v3739 = vunpack.c.l.b16 %v3604
        %v3740 = vunpack.c.l.b16 %v3605
        %v3741 = vunpack.c.l.b16 %v3606
        %v3742 = vunpack.c.l.b16 %v3607
        %v3743 = vunpack.c.l.b16 %v3608
        %v3744 = vunpack.c.l.b16 %v3609
        %v3745 = vunpack.c.l.b16 %v3610
        %v3746 = vunpack.c.l.b16 %v3611
        %v3747 = vunpack.c.l.b16 %v3612
        %v3748 = vunpack.c.l.b16 %v3613
        %v3749 = vunpack.c.l.b16 %v3614
        %v3750 = vunpack.c.l.b16 %v3615
        %v3751 = vunpack.c.l.b16 %v3616
        %v3752 = vunpack.c.l.b16 %v3617
        %v3753 = vunpack.c.l.b16 %v3618
        %v3754 = vunpack.c.l.b16 %v3619
        %v3755 = vunpack.c.l.b16 %v3620
        %v3756 = vunpack.c.l.b16 %v3621
        %v3757 = vunpack.c.l.b16 %v3622
        %v3758 = vunpack.c.l.b16 %v3623
        %v3759 = vunpack.c.l.b16 %v3624
        %v3760 = vunpack.c.l.b16 %v3625
        %v3761 = vunpack.c.l.b16 %v3626
        %v3762 = vunpack.c.l.b16 %v3627
        %v3763 = vunpack.c.l.b16 %v3628
        %v3764 = vunpack.c.l.b16 %v3629
        %v3765 = vunpack.c.l.b16 %v3630
        %v3766 = vunpack.c.l.b16 %v3631
        %v3767 = vunpack.c.l.b16 %v3632
        %v3768 = vunpack.c.l.b16 %v3633
        %v3769 = vunpack.c.l.b16 %v3634
        %v3770 = vunpack.c.l.b16 %v3635
        %v3771 = vunpack.c.l.b16 %v3636
        %v3772 = vunpack.c.l.b16 %v3637
        %v3773 = vunpack.c.l.b16 %v3638
        %v3774 = vunpack.c.l.b16 %v3639
        %v3775 = vpack.c.b16 %v3712, %v3711
        %v3776 = vpack.c.b16 %v3714, %v3713
        %v3777 = vpack.c.b16 %v3716, %v3715
        %v3778 = vpack.c.b16 %v3718, %v3717
        %v3779 = vpack.c.b16 %v3720, %v3719
        %v3780 = vpack.c.b16 %v3722, %v3721
        %v3781 = vpack.c.b16 %v3724, %v3723
        %v3782 = vpack.c.b16 %v3726, %v3725
        %v3783 = vpack.c.b16 %v3728, %v3727
        %v3784 = vpack.c.b16 %v3730, %v3729
        %v3785 = vpack.c.b16 %v3732, %v3731
        %v3786 = vpack.c.b16 %v3734, %v3733
        %v3787 = vpack.c.b16 %v3736, %v3735
        %v3788 = vpack.c.b16 %v3738, %v3737
        %v3789 = vpack.c.b16 %v3740, %v3739
        %v3790 = vpack.c.b16 %v3742, %v3741
        %v3791 = vpack.c.b16 %v3744, %v3743
        %v3792 = vpack.c.b16 %v3746, %v3745
        %v3793 = vpack.c.b16 %v3748, %v3747
        %v3794 = vpack.c.b16 %v3750, %v3749
        %v3795 = vpack.c.b16 %v3752, %v3751
        %v3796 = vpack.c.b16 %v3754, %v3753
        %v3797 = vpack.c.b16 %v3756, %v3755
        %v3798 = vpack.c.b16 %v3758, %v3757
        %v3799 = vpack.c.b16 %v3760, %v3759
        %v3800 = vpack.c.b16 %v3762, %v3761
        %v3801 = vpack.c.b16 %v3764, %v3763
        %v3802 = vpack.c.b16 %v3766, %v3765
        %v3803 = vpack.c.b16 %v3768, %v3767
        %v3804 = vpack.c.b16 %v3770, %v3769
        %v3805 = vpack.c.b16 %v3772, %v3771
        %v3806 = vpack.c.b16 %v3774, %v3773
        %3839 = vmatprep.subr.bf16.mxu0 0
        %3840 = vmatpush1.bf16.msra.mxu0 %v3782
        %3841 = vmatprep.subr.bf16.mxu0 0
        %3842 = vmatpush1.bf16.msra.mxu0 %v3781
        %3843 = vmatprep.subr.bf16.mxu0 0
        %3844 = vmatpush1.bf16.msra.mxu0 %v3780
        %3845 = vmatprep.subr.bf16.mxu0 0
        %3846 = vmatpush1.bf16.msra.mxu0 %v3779
        %3847 = vmatprep.subr.bf16.mxu0 0
        %3848 = vmatpush1.bf16.msra.mxu0 %v3778
        %3849 = vmatprep.subr.bf16.mxu0 0
        %3850 = vmatpush1.bf16.msra.mxu0 %v3777
        %3851 = vmatprep.subr.bf16.mxu0 0
        %3852 = vmatpush1.bf16.msra.mxu0 %v3776
        %3853 = vmatprep.subr.bf16.mxu0 0
        %3854 = vmatpush1.bf16.msra.mxu0 %v3775
        %3855 = vmatprep.subr.bf16.mxu0 0
        %3856 = vmatpush2.bf16.msra.mxu0 %v3790
        %3857 = vmatprep.subr.bf16.mxu0 0
        %3858 = vmatpush2.bf16.msra.mxu0 %v3789
        %3859 = vmatprep.subr.bf16.mxu0 0
        %3860 = vmatpush2.bf16.msra.mxu0 %v3788
        %3861 = vmatprep.subr.bf16.mxu0 0
        %3862 = vmatpush2.bf16.msra.mxu0 %v3787
        %3863 = vmatprep.subr.bf16.mxu0 0
        %3864 = vmatpush2.bf16.msra.mxu0 %v3786
        %3865 = vmatprep.subr.bf16.mxu0 0
        %3866 = vmatpush2.bf16.msra.mxu0 %v3785
        %3867 = vmatprep.subr.bf16.mxu0 0
        %3868 = vmatpush2.bf16.msra.mxu0 %v3784
        %3869 = vmatprep.subr.bf16.mxu0 0
        %3870 = vmatpush2.bf16.msra.mxu0 %v3783
        %3871 = vmatprep.mubr.bf16.mxu0 %v3573
        %3872 = vmatmul.mubr.bf16.gmra.mxu0 %v3572
        %v3873 = vpop.f32.mrf.mxu0
        %v3874 = vadd.f32 %v3645, %v3873
        %v3875 = vpop.f32.mrf.mxu0
        %v3876 = vpop.f32.mrf.mxu0
        %v3877 = vpop.f32.mrf.mxu0
        %3878 = vdwg.mxu0
        %3879 = vmatprep.subr.bf16.mxu0 0
        %3880 = vmatpush1.bf16.msra.mxu0 %v3798
        %3881 = vmatprep.subr.bf16.mxu0 0
        %3882 = vmatpush1.bf16.msra.mxu0 %v3797
        %3883 = vmatprep.subr.bf16.mxu0 0
        %3884 = vmatpush1.bf16.msra.mxu0 %v3796
        %3885 = vmatprep.subr.bf16.mxu0 0
        %3886 = vmatpush1.bf16.msra.mxu0 %v3795
        %3887 = vmatprep.subr.bf16.mxu0 0
        %3888 = vmatpush1.bf16.msra.mxu0 %v3794
        %3889 = vmatprep.subr.bf16.mxu0 0
        %3890 = vmatpush1.bf16.msra.mxu0 %v3793
        %3891 = vmatprep.subr.bf16.mxu0 0
        %3892 = vmatpush1.bf16.msra.mxu0 %v3792
        %3893 = vmatprep.subr.bf16.mxu0 0
        %3894 = vmatpush1.bf16.msra.mxu0 %v3791
        %3895 = vmatprep.subr.bf16.mxu0 0
        %3896 = vmatpush2.bf16.msra.mxu0 %v3806
        %3897 = vmatprep.subr.bf16.mxu0 0
        %3898 = vmatpush2.bf16.msra.mxu0 %v3805
        %3899 = vmatprep.subr.bf16.mxu0 0
        %3900 = vmatpush2.bf16.msra.mxu0 %v3804
        %3901 = vmatprep.subr.bf16.mxu0 0
        %3902 = vmatpush2.bf16.msra.mxu0 %v3803
        %3903 = vmatprep.subr.bf16.mxu0 0
        %3904 = vmatpush2.bf16.msra.mxu0 %v3802
        %3905 = vmatprep.subr.bf16.mxu0 0
        %3906 = vmatpush2.bf16.msra.mxu0 %v3801
        %3907 = vmatprep.subr.bf16.mxu0 0
        %3908 = vmatpush2.bf16.msra.mxu0 %v3800
        %3909 = vmatprep.subr.bf16.mxu0 0
        %3910 = vmatpush2.bf16.msra.mxu0 %v3799
        %3911 = vmatprep.mubr.bf16.mxu0 %v3575
        %3912 = vmatmul.mubr.bf16.gmra.mxu0 %v3574
        %v3913 = vpop.f32.mrf.mxu0
        %v3914 = vadd.f32 %v3874, %v3913
        %v3915 = vpop.f32.mrf.mxu0
        %v3916 = vpop.f32.mrf.mxu0
        %v3917 = vpop.f32.mrf.mxu0
        %3918 = vdwg.mxu0
        %3919 = vst [vmem:[%s661] sm:$0xff] %v3914
        %p3920 = scmp.lt.s32.totalorder %s33, 1
        %s3921 = scalar_select %p3920, %s33, 1
        %s3922 = smul.addr %s3921, 8
        %s3923 = scalar_lea.vmem %s19, %s3922
        // Predicated region
        $region113: #{_forward_padded.1} parent=95 // pred_check
          %p3924 = pneg %p455
        $region114: #{_forward_padded.1} parent=95 // pred_check_branch
          %3926 = sbr.rel (%p3924) target = $region116
        $region115: #{_forward_padded.1} parent=95 // pred_region
          _
        $region116: #{_forward_padded.1} parent=95 // pred_fallthru
          _
      $region96: #{_forward_padded.1} parent=5 // pred_fallthru
        _
      %p3927 = scmp.le.s32.totalorder 2, %s28
      // Predicated region
      $region117: #{_forward_padded.1} parent=5 // pred_check
        %p3928 = pneg %p3927
      $region118: #{_forward_padded.1} parent=5 // pred_check_branch
        %3930 = sbr.rel (%p3928) target = $region120
      $region119: #{_forward_padded.1} parent=5 // pred_region
        %s3931 = ssub.s32 %s28, 2
        // Predicated region
        $region121: #{_forward_padded.1} parent=119 // pred_check
          %p3932 = pneg %p461
        $region122: #{_forward_padded.1} parent=119 // pred_check_branch
          %3934 = sbr.rel (%p3932) target = $region124
        $region123: #{_forward_padded.1} parent=119 // pred_region
          %p3935 = scmp.lt.s32.totalorder %s34, 1
          %s3936 = scalar_select %p3935, %s34, 1
          %s3937 = smul.addr %s3936, 8
          %s3938 = scalar_lea.vmem %s19, %s3937
        $region124: #{_forward_padded.1} parent=119 // pred_fallthru
          _
      $region120: #{_forward_padded.1} parent=5 // pred_fallthru
        _
    $region6: #{_forward_padded.1} parent=1 // loop_footer
      %s32 = sadd.s32 1, %s28
    $region7: #{_forward_padded.1} parent=1 // loop_footer_branch
      %27 = sbr.rel target = $region3
    $region8: #{_forward_padded.1} parent=1 // loop_exit
      _
    %3939 = vsyncpa [#allocation3], 1
    %s3940 = scalar_lea.sflag [#allocation3], 1
    %3941 = vsyncpa %s3940, 1
    %3942 = vsyncpa [#allocation5], 1
    %3943 = vsyncpa [#allocation8], 1

</llo_original>
